<compile_context>
chip_gen: v5e
topology: v5e:2x2
jax: 0.10.0
libtpu: 0.0.40
codegen_flags: <defaults>
</compile_context>

<pallas_src>
import math

import jax
import jax.numpy as jnp
import numpy as np
from jax.experimental import pallas as pl
from jax.experimental.pallas import tpu as pltpu

HID = 128
HALF = HID // 2  # 64 (timestep embedding half dim)

WEIGHT_ORDER = [
    "m2w1", "m2b1", "m2w2", "m2b2",   # mlp2
    "pw1", "pb1", "pw2", "pb2",       # Proj
    "ow1", "ob1", "ow2", "ob2",       # out head
]


# ----------------------------------------------------------------------------
# Pallas kernel: mlp2 + Proj(temb) + residual add + out head + skip subtraction
# ----------------------------------------------------------------------------
def dynamics_kernel(
    x_ref, temb_ref,
    m2w1, m2b1, m2w2, m2b2,
    pw1, pb1, pw2, pb2,
    ow1, ob1, ow2, ob2,
    out_ref,
):
    f32 = jnp.float32
    bf16 = jnp.bfloat16

    x = x_ref[...]                                                   # [TN, 128] f32

    # target_hidden = mlp2(noitarget)
    h = jax.nn.silu(
        jnp.dot(x.astype(bf16), m2w1[...], preferred_element_type=f32) + m2b1[...]
    )
    h = jnp.dot(h.astype(bf16), m2w2[...], preferred_element_type=f32) + m2b2[...]

    # temb = Proj(TimestepEmbedding(t, 128))  (embedding precomputed in wrapper, bf16)
    temb = temb_ref[...]                                             # [TN, 128] bf16
    p = jax.nn.silu(
        jnp.dot(temb, pw1[...], preferred_element_type=f32) + pb1[...]
    )
    p = jnp.dot(p.astype(bf16), pw2[...], preferred_element_type=f32) + pb2[...]

    # target_hidden = target_hidden + temb ; output = out(target_hidden)
    th = h + p                                                       # [TN, 128] f32
    o = jax.nn.silu(
        jnp.dot(th.astype(bf16), ow1[...], preferred_element_type=f32) + ob1[...]
    )
    o = jnp.dot(o.astype(bf16), ow2[...], preferred_element_type=f32) + ob2[...]

    # output = noitarget - output
    out_ref[...] = x - o


# ----------------------------------------------------------------------------
# Wrapper
# ----------------------------------------------------------------------------
def dynamics_forward(noidata, t, params, *, tile_n=256):
    # The PyTorch module ends with .squeeze(1); handle a possible [N, 1, 128] input.
    if noidata.ndim == 3 and noidata.shape[1] == 1:
        noidata = noidata[:, 0, :]
    N, D = noidata.shape
    assert D == HID
    tile_n = min(tile_n, N)
    assert N % tile_n == 0, "N must be divisible by tile_n"

    # TimestepEmbedding(t, 128) computed in the wrapper (cheap XLA), cast to bf16.
    freqs = jnp.exp(
        -math.log(10000.0) * jnp.arange(HALF, dtype=jnp.float32) / HALF
    )
    args = t.astype(jnp.float32)[:, None] * freqs[None, :]           # [N, 64]
    temb = jnp.concatenate([jnp.cos(args), jnp.sin(args)], axis=-1)  # [N, 128]
    temb = temb.astype(jnp.bfloat16)

    # Cast weight matrices to bf16 once; biases stay f32 (added to f32 accumulators).
    weights = []
    weight_specs = []
    for name in WEIGHT_ORDER:
        w = params[name]
        if "w" in name:
            w = w.astype(jnp.bfloat16)
        else:
            w = w.astype(jnp.float32)
        weights.append(w)
        r, c = w.shape
        weight_specs.append(pl.BlockSpec((r, c), lambda i: (0, 0)))

    row_spec = pl.BlockSpec((tile_n, HID), lambda i: (i, 0))

    out = pl.pallas_call(
        dynamics_kernel,
        out_shape=jax.ShapeDtypeStruct((N, HID), jnp.float32),
        grid=(N // tile_n,),
        in_specs=[row_spec, row_spec] + weight_specs,
        out_specs=row_spec,
        compiler_params=pltpu.CompilerParams(
            dimension_semantics=("parallel",)
        ),
    )(noidata.astype(jnp.float32), temb, *weights)
    return out


# ----------------------------------------------------------------------------
# Pure-JAX f32 reference (same math, for verification)
# ----------------------------------------------------------------------------
def reference_forward(noidata, t, params):
    freqs = jnp.exp(-math.log(10000.0) * jnp.arange(HALF, dtype=jnp.float32) / HALF)
    args = t.astype(jnp.float32)[:, None] * freqs[None, :]
    temb = jnp.concatenate([jnp.cos(args), jnp.sin(args)], axis=-1)

    h = jax.nn.silu(noidata @ params["m2w1"] + params["m2b1"]) @ params["m2w2"] + params["m2b2"]
    p = jax.nn.silu(temb @ params["pw1"] + params["pb1"]) @ params["pw2"] + params["pb2"]
    th = h + p
    o = jax.nn.silu(th @ params["ow1"] + params["ob1"]) @ params["ow2"] + params["ob2"]
    return noidata - o


# ----------------------------------------------------------------------------
def make_params(key):
    names_shapes = [
        ("m2w1", (HID, HID)), ("m2b1", (1, HID)), ("m2w2", (HID, HID)), ("m2b2", (1, HID)),
        ("pw1", (HID, HID)), ("pb1", (1, HID)), ("pw2", (HID, HID)), ("pb2", (1, HID)),
        ("ow1", (HID, HID)), ("ob1", (1, HID)), ("ow2", (HID, HID)), ("ob2", (1, HID)),
    ]
    params = {}
    keys = jax.random.split(key, len(names_shapes))
    for k, (name, shape) in zip(keys, names_shapes):
        params[name] = (0.05 * jax.random.normal(k, shape)).astype(jnp.float32)
    return params


if __name__ == "__main__":
    key = jax.random.PRNGKey(0)
    k_par, k_noi, k_t = jax.random.split(key, 3)

    # Sampling path: num_samples rows of 128-dim latents (module hardcodes 2000;
    # kept small here but large enough for 4 grid steps at tile_n=256).
    N = 1024
    params = make_params(k_par)

    noidata = jax.random.normal(k_noi, (N, HID), dtype=jnp.float32)
    t = jax.random.uniform(k_t, (N,), dtype=jnp.float32) * 1000.0

    out = dynamics_forward(noidata, t, params, tile_n=256)
    out = jax.block_until_ready(out)

    ref = reference_forward(noidata, t, params)
    np.testing.assert_allclose(np.asarray(out), np.asarray(ref), rtol=2e-2, atol=2e-2)

    print("KERNEL_OK")
</pallas_src>

<mosaic_0001>
module attributes {stable_mosaic.version = 11 : i64} {
  func.func @dynamics_kernel(%arg0: i32, %arg1: memref<256x128xf32, #tpu.memory_space<vmem>>, %arg2: memref<256x128xbf16, #tpu.memory_space<vmem>>, %arg3: memref<128x128xbf16, #tpu.memory_space<vmem>>, %arg4: memref<1x128xf32, #tpu.memory_space<vmem>>, %arg5: memref<128x128xbf16, #tpu.memory_space<vmem>>, %arg6: memref<1x128xf32, #tpu.memory_space<vmem>>, %arg7: memref<128x128xbf16, #tpu.memory_space<vmem>>, %arg8: memref<1x128xf32, #tpu.memory_space<vmem>>, %arg9: memref<128x128xbf16, #tpu.memory_space<vmem>>, %arg10: memref<1x128xf32, #tpu.memory_space<vmem>>, %arg11: memref<128x128xbf16, #tpu.memory_space<vmem>>, %arg12: memref<1x128xf32, #tpu.memory_space<vmem>>, %arg13: memref<128x128xbf16, #tpu.memory_space<vmem>>, %arg14: memref<1x128xf32, #tpu.memory_space<vmem>>, %arg15: memref<256x128xf32, #tpu.memory_space<vmem>>) attributes {dimension_semantics = [#tpu.dimension_semantics<parallel>], iteration_bounds = array<i64: 4>, scalar_prefetch = 0 : i64, scratch_operands = 0 : i64, tpu.core_type = #tpu.core_type<tc>, window_params = [{transform_indices = @transform_0, window_bounds = array<i64: 256, 128>}, {transform_indices = @transform_1, window_bounds = array<i64: 256, 128>}, {pipeline_mode = #tpu.pipeline_mode<synchronous>, transform_indices = @transform_2, window_bounds = array<i64: 128, 128>}, {pipeline_mode = #tpu.pipeline_mode<synchronous>, transform_indices = @transform_3, window_bounds = array<i64: 1, 128>}, {pipeline_mode = #tpu.pipeline_mode<synchronous>, transform_indices = @transform_4, window_bounds = array<i64: 128, 128>}, {pipeline_mode = #tpu.pipeline_mode<synchronous>, transform_indices = @transform_5, window_bounds = array<i64: 1, 128>}, {pipeline_mode = #tpu.pipeline_mode<synchronous>, transform_indices = @transform_6, window_bounds = array<i64: 128, 128>}, {pipeline_mode = #tpu.pipeline_mode<synchronous>, transform_indices = @transform_7, window_bounds = array<i64: 1, 128>}, {pipeline_mode = #tpu.pipeline_mode<synchronous>, transform_indices = @transform_8, window_bounds = array<i64: 128, 128>}, {pipeline_mode = #tpu.pipeline_mode<synchronous>, transform_indices = @transform_9, window_bounds = array<i64: 1, 128>}, {pipeline_mode = #tpu.pipeline_mode<synchronous>, transform_indices = @transform_10, window_bounds = array<i64: 128, 128>}, {pipeline_mode = #tpu.pipeline_mode<synchronous>, transform_indices = @transform_11, window_bounds = array<i64: 1, 128>}, {pipeline_mode = #tpu.pipeline_mode<synchronous>, transform_indices = @transform_12, window_bounds = array<i64: 128, 128>}, {pipeline_mode = #tpu.pipeline_mode<synchronous>, transform_indices = @transform_13, window_bounds = array<i64: 1, 128>}, {transform_indices = @transform_14, window_bounds = array<i64: 256, 128>}]} {
    %c0 = arith.constant 0 : index
    %c0_0 = arith.constant 0 : index
    %0 = vector.load %arg1[%c0, %c0_0] : memref<256x128xf32, #tpu.memory_space<vmem>>, vector<256x128xf32>
    %1 = arith.truncf %0 : vector<256x128xf32> to vector<256x128xbf16>
    %c0_1 = arith.constant 0 : index
    %c0_2 = arith.constant 0 : index
    %2 = vector.load %arg3[%c0_1, %c0_2] : memref<128x128xbf16, #tpu.memory_space<vmem>>, vector<128x128xbf16>
    %cst = arith.constant dense<0.000000e+00> : vector<256x128xf32>
    %3 = tpu.matmul %1, %2, %cst {dimension_numbers = #tpu.dot_dimension_numbers<[1], [0], [0], [1], [0, 0, 1, 1], [], []>} : vector<256x128xbf16>, vector<128x128xbf16>, vector<256x128xf32> -> vector<256x128xf32>
    %c0_3 = arith.constant 0 : index
    %c0_4 = arith.constant 0 : index
    %4 = vector.load %arg4[%c0_3, %c0_4] : memref<1x128xf32, #tpu.memory_space<vmem>>, vector<1x128xf32>
    %5 = vector.broadcast %4 : vector<1x128xf32> to vector<256x128xf32>
    %6 = arith.addf %3, %5 : vector<256x128xf32>
    %7 = arith.negf %6 : vector<256x128xf32>
    %8 = math.exp %7 : vector<256x128xf32>
    %cst_5 = arith.constant 1.000000e+00 : f32
    %9 = vector.broadcast %cst_5 : f32 to vector<256x128xf32>
    %10 = arith.addf %9, %8 : vector<256x128xf32>
    %11 = arith.divf %9, %10 : vector<256x128xf32>
    %12 = arith.mulf %6, %11 : vector<256x128xf32>
    %13 = arith.truncf %12 : vector<256x128xf32> to vector<256x128xbf16>
    %c0_6 = arith.constant 0 : index
    %c0_7 = arith.constant 0 : index
    %14 = vector.load %arg5[%c0_6, %c0_7] : memref<128x128xbf16, #tpu.memory_space<vmem>>, vector<128x128xbf16>
    %cst_8 = arith.constant dense<0.000000e+00> : vector<256x128xf32>
    %15 = tpu.matmul %13, %14, %cst_8 {dimension_numbers = #tpu.dot_dimension_numbers<[1], [0], [0], [1], [0, 0, 1, 1], [], []>} : vector<256x128xbf16>, vector<128x128xbf16>, vector<256x128xf32> -> vector<256x128xf32>
    %c0_9 = arith.constant 0 : index
    %c0_10 = arith.constant 0 : index
    %16 = vector.load %arg6[%c0_9, %c0_10] : memref<1x128xf32, #tpu.memory_space<vmem>>, vector<1x128xf32>
    %17 = vector.broadcast %16 : vector<1x128xf32> to vector<256x128xf32>
    %18 = arith.addf %15, %17 : vector<256x128xf32>
    %c0_11 = arith.constant 0 : index
    %c0_12 = arith.constant 0 : index
    %19 = vector.load %arg2[%c0_11, %c0_12] : memref<256x128xbf16, #tpu.memory_space<vmem>>, vector<256x128xbf16>
    %c0_13 = arith.constant 0 : index
    %c0_14 = arith.constant 0 : index
    %20 = vector.load %arg7[%c0_13, %c0_14] : memref<128x128xbf16, #tpu.memory_space<vmem>>, vector<128x128xbf16>
    %cst_15 = arith.constant dense<0.000000e+00> : vector<256x128xf32>
    %21 = tpu.matmul %19, %20, %cst_15 {dimension_numbers = #tpu.dot_dimension_numbers<[1], [0], [0], [1], [0, 0, 1, 1], [], []>} : vector<256x128xbf16>, vector<128x128xbf16>, vector<256x128xf32> -> vector<256x128xf32>
    %c0_16 = arith.constant 0 : index
    %c0_17 = arith.constant 0 : index
    %22 = vector.load %arg8[%c0_16, %c0_17] : memref<1x128xf32, #tpu.memory_space<vmem>>, vector<1x128xf32>
    %23 = vector.broadcast %22 : vector<1x128xf32> to vector<256x128xf32>
    %24 = arith.addf %21, %23 : vector<256x128xf32>
    %25 = arith.negf %24 : vector<256x128xf32>
    %26 = math.exp %25 : vector<256x128xf32>
    %cst_18 = arith.constant 1.000000e+00 : f32
    %27 = vector.broadcast %cst_18 : f32 to vector<256x128xf32>
    %28 = arith.addf %27, %26 : vector<256x128xf32>
    %29 = arith.divf %27, %28 : vector<256x128xf32>
    %30 = arith.mulf %24, %29 : vector<256x128xf32>
    %31 = arith.truncf %30 : vector<256x128xf32> to vector<256x128xbf16>
    %c0_19 = arith.constant 0 : index
    %c0_20 = arith.constant 0 : index
    %32 = vector.load %arg9[%c0_19, %c0_20] : memref<128x128xbf16, #tpu.memory_space<vmem>>, vector<128x128xbf16>
    %cst_21 = arith.constant dense<0.000000e+00> : vector<256x128xf32>
    %33 = tpu.matmul %31, %32, %cst_21 {dimension_numbers = #tpu.dot_dimension_numbers<[1], [0], [0], [1], [0, 0, 1, 1], [], []>} : vector<256x128xbf16>, vector<128x128xbf16>, vector<256x128xf32> -> vector<256x128xf32>
    %c0_22 = arith.constant 0 : index
    %c0_23 = arith.constant 0 : index
    %34 = vector.load %arg10[%c0_22, %c0_23] : memref<1x128xf32, #tpu.memory_space<vmem>>, vector<1x128xf32>
    %35 = vector.broadcast %34 : vector<1x128xf32> to vector<256x128xf32>
    %36 = arith.addf %33, %35 : vector<256x128xf32>
    %37 = arith.addf %18, %36 : vector<256x128xf32>
    %38 = arith.truncf %37 : vector<256x128xf32> to vector<256x128xbf16>
    %c0_24 = arith.constant 0 : index
    %c0_25 = arith.constant 0 : index
    %39 = vector.load %arg11[%c0_24, %c0_25] : memref<128x128xbf16, #tpu.memory_space<vmem>>, vector<128x128xbf16>
    %cst_26 = arith.constant dense<0.000000e+00> : vector<256x128xf32>
    %40 = tpu.matmul %38, %39, %cst_26 {dimension_numbers = #tpu.dot_dimension_numbers<[1], [0], [0], [1], [0, 0, 1, 1], [], []>} : vector<256x128xbf16>, vector<128x128xbf16>, vector<256x128xf32> -> vector<256x128xf32>
    %c0_27 = arith.constant 0 : index
    %c0_28 = arith.constant 0 : index
    %41 = vector.load %arg12[%c0_27, %c0_28] : memref<1x128xf32, #tpu.memory_space<vmem>>, vector<1x128xf32>
    %42 = vector.broadcast %41 : vector<1x128xf32> to vector<256x128xf32>
    %43 = arith.addf %40, %42 : vector<256x128xf32>
    %44 = arith.negf %43 : vector<256x128xf32>
    %45 = math.exp %44 : vector<256x128xf32>
    %cst_29 = arith.constant 1.000000e+00 : f32
    %46 = vector.broadcast %cst_29 : f32 to vector<256x128xf32>
    %47 = arith.addf %46, %45 : vector<256x128xf32>
    %48 = arith.divf %46, %47 : vector<256x128xf32>
    %49 = arith.mulf %43, %48 : vector<256x128xf32>
    %50 = arith.truncf %49 : vector<256x128xf32> to vector<256x128xbf16>
    %c0_30 = arith.constant 0 : index
    %c0_31 = arith.constant 0 : index
    %51 = vector.load %arg13[%c0_30, %c0_31] : memref<128x128xbf16, #tpu.memory_space<vmem>>, vector<128x128xbf16>
    %cst_32 = arith.constant dense<0.000000e+00> : vector<256x128xf32>
    %52 = tpu.matmul %50, %51, %cst_32 {dimension_numbers = #tpu.dot_dimension_numbers<[1], [0], [0], [1], [0, 0, 1, 1], [], []>} : vector<256x128xbf16>, vector<128x128xbf16>, vector<256x128xf32> -> vector<256x128xf32>
    %c0_33 = arith.constant 0 : index
    %c0_34 = arith.constant 0 : index
    %53 = vector.load %arg14[%c0_33, %c0_34] : memref<1x128xf32, #tpu.memory_space<vmem>>, vector<1x128xf32>
    %54 = vector.broadcast %53 : vector<1x128xf32> to vector<256x128xf32>
    %55 = arith.addf %52, %54 : vector<256x128xf32>
    %56 = arith.subf %0, %55 : vector<256x128xf32>
    %c0_35 = arith.constant 0 : index
    %c0_36 = arith.constant 0 : index
    %57 = vector.load %arg15[%c0_35, %c0_36] : memref<256x128xf32, #tpu.memory_space<vmem>>, vector<256x128xf32>
    tpu.vector_store %arg15[%c0_35, %c0_36], %56 {strides = array<i32>} : memref<256x128xf32, #tpu.memory_space<vmem>>, vector<256x128xf32>,
    return
  }
  func.func @transform_0(%arg0: i32) -> (i32, i32) {
    %c0_i32 = arith.constant 0 : i32
    %c0_i32_0 = arith.constant 0 : i32
    return %arg0, %c0_i32 : i32, i32
  }
  func.func @transform_1(%arg0: i32) -> (i32, i32) {
    %c0_i32 = arith.constant 0 : i32
    %c0_i32_0 = arith.constant 0 : i32
    return %arg0, %c0_i32 : i32, i32
  }
  func.func @transform_2(%arg0: i32) -> (i32, i32) {
    %c0_i32 = arith.constant 0 : i32
    %c0_i32_0 = arith.constant 0 : i32
    %c0_i32_1 = arith.constant 0 : i32
    return %c0_i32, %c0_i32_0 : i32, i32
  }
  func.func @transform_3(%arg0: i32) -> (i32, i32) {
    %c0_i32 = arith.constant 0 : i32
    %c0_i32_0 = arith.constant 0 : i32
    %c0_i32_1 = arith.constant 0 : i32
    return %c0_i32, %c0_i32_0 : i32, i32
  }
  func.func @transform_4(%arg0: i32) -> (i32, i32) {
    %c0_i32 = arith.constant 0 : i32
    %c0_i32_0 = arith.constant 0 : i32
    %c0_i32_1 = arith.constant 0 : i32
    return %c0_i32, %c0_i32_0 : i32, i32
  }
  func.func @transform_5(%arg0: i32) -> (i32, i32) {
    %c0_i32 = arith.constant 0 : i32
    %c0_i32_0 = arith.constant 0 : i32
    %c0_i32_1 = arith.constant 0 : i32
    return %c0_i32, %c0_i32_0 : i32, i32
  }
  func.func @transform_6(%arg0: i32) -> (i32, i32) {
    %c0_i32 = arith.constant 0 : i32
    %c0_i32_0 = arith.constant 0 : i32
    %c0_i32_1 = arith.constant 0 : i32
    return %c0_i32, %c0_i32_0 : i32, i32
  }
  func.func @transform_7(%arg0: i32) -> (i32, i32) {
    %c0_i32 = arith.constant 0 : i32
    %c0_i32_0 = arith.constant 0 : i32
    %c0_i32_1 = arith.constant 0 : i32
    return %c0_i32, %c0_i32_0 : i32, i32
  }
  func.func @transform_8(%arg0: i32) -> (i32, i32) {
    %c0_i32 = arith.constant 0 : i32
    %c0_i32_0 = arith.constant 0 : i32
    %c0_i32_1 = arith.constant 0 : i32
    return %c0_i32, %c0_i32_0 : i32, i32
  }
  func.func @transform_9(%arg0: i32) -> (i32, i32) {
    %c0_i32 = arith.constant 0 : i32
    %c0_i32_0 = arith.constant 0 : i32
    %c0_i32_1 = arith.constant 0 : i32
    return %c0_i32, %c0_i32_0 : i32, i32
  }
  func.func @transform_10(%arg0: i32) -> (i32, i32) {
    %c0_i32 = arith.constant 0 : i32
    %c0_i32_0 = arith.constant 0 : i32
    %c0_i32_1 = arith.constant 0 : i32
    return %c0_i32, %c0_i32_0 : i32, i32
  }
  func.func @transform_11(%arg0: i32) -> (i32, i32) {
    %c0_i32 = arith.constant 0 : i32
    %c0_i32_0 = arith.constant 0 : i32
    %c0_i32_1 = arith.constant 0 : i32
    return %c0_i32, %c0_i32_0 : i32, i32
  }
  func.func @transform_12(%arg0: i32) -> (i32, i32) {
    %c0_i32 = arith.constant 0 : i32
    %c0_i32_0 = arith.constant 0 : i32
    %c0_i32_1 = arith.constant 0 : i32
    return %c0_i32, %c0_i32_0 : i32, i32
  }
  func.func @transform_13(%arg0: i32) -> (i32, i32) {
    %c0_i32 = arith.constant 0 : i32
    %c0_i32_0 = arith.constant 0 : i32
    %c0_i32_1 = arith.constant 0 : i32
    return %c0_i32, %c0_i32_0 : i32, i32
  }
  func.func @transform_14(%arg0: i32) -> (i32, i32) {
    %c0_i32 = arith.constant 0 : i32
    %c0_i32_0 = arith.constant 0 : i32
    return %arg0, %c0_i32 : i32, i32
  }
}

</mosaic_0001>

<llo_original>
// kernel: tpu_custom_call.1
$region0: #{tpu_custom_call.1}
  #allocation0 [shape = 'u32[]', space=smem, size = 0x4, offset = 0x4, fixed_abs, tag = 'smem constant byte address 0x4 - core index']
  #allocation1 [shape = 'u32[72,128]{1,0:T(1,128)}', space=vmem, size = 0x9000, scoped, tag = 'internal scratch']
  %s0 = inlined_call_operand.hbm [shape: f32[1024,128], index: 0, kind: input, shape index: {}]
  %s1 = inlined_call_operand.hbm [shape: bf16[1024,128], index: 1, kind: input, shape index: {}]
  %s2 = inlined_call_operand.hbm [shape: bf16[128,128], index: 2, kind: input, shape index: {}]
  %s3 = inlined_call_operand.vmem [shape: f32[1,128], index: 3, kind: input, shape index: {}]
  %s4 = inlined_call_operand.hbm [shape: bf16[128,128], index: 4, kind: input, shape index: {}]
  %s5 = inlined_call_operand.vmem [shape: f32[1,128], index: 5, kind: input, shape index: {}]
  %s6 = inlined_call_operand.hbm [shape: bf16[128,128], index: 6, kind: input, shape index: {}]
  %s7 = inlined_call_operand.vmem [shape: f32[1,128], index: 7, kind: input, shape index: {}]
  %s8 = inlined_call_operand.hbm [shape: bf16[128,128], index: 8, kind: input, shape index: {}]
  %s9 = inlined_call_operand.vmem [shape: f32[1,128], index: 9, kind: input, shape index: {}]
  %s10 = inlined_call_operand.hbm [shape: bf16[128,128], index: 10, kind: input, shape index: {}]
  %s11 = inlined_call_operand.vmem [shape: f32[1,128], index: 11, kind: input, shape index: {}]
  %s12 = inlined_call_operand.hbm [shape: bf16[128,128], index: 12, kind: input, shape index: {}]
  %s13 = inlined_call_operand.vmem [shape: f32[1,128], index: 13, kind: input, shape index: {}]
  %s14 = inlined_call_operand.hbm [shape: f32[1024,128], index: 14, kind: output, shape index: {}]
  %s15 = sld [smem:[#allocation0]]
  $region121: #{tpu_custom_call.1} parent=0
    _
  %s17 = ssub.s32 1, %s15
  %s18 = scalar_select 0, %s17, %s15
  $region1: #{tpu_custom_call.1} parent=0
    #allocation2 [shape = 'u8[262144]{0}', space=vmem, size = 0x40000, scoped, tag = 'input window, operand 0']
    #allocation3 [shape = 's32[2]{0}', space=sflag, size = 0x8, scoped, tag = 'scoped memory for tpu_custom_call.1']
    #allocation4 [shape = 's32[2]{0}', space=sflag, size = 0x8, scoped, tag = 'scoped memory for tpu_custom_call.1']
    #allocation5 [shape = 'u8[131072]{0}', space=vmem, size = 0x20000, scoped, tag = 'input window, operand 1']
    #allocation6 [shape = 's32[2]{0}', space=sflag, size = 0x8, scoped, tag = 'scoped memory for tpu_custom_call.1']
    #allocation7 [shape = 'u8[32768]{0}', space=vmem, size = 0x8000, scoped, tag = 'input window, operand 2, single buffered']
    #allocation8 [shape = 'u8[32768]{0}', space=vmem, size = 0x8000, scoped, tag = 'input window, operand 4, single buffered']
    #allocation9 [shape = 's32[1]{0}', space=sflag, size = 0x4, scoped, tag = 'scoped memory for tpu_custom_call.1']
    #allocation10 [shape = 'u8[32768]{0}', space=vmem, size = 0x8000, scoped, tag = 'input window, operand 6, single buffered']
    #allocation11 [shape = 'u8[32768]{0}', space=vmem, size = 0x8000, scoped, tag = 'input window, operand 8, single buffered']
    #allocation12 [shape = 's32[1]{0}', space=sflag, size = 0x4, scoped, tag = 'scoped memory for tpu_custom_call.1']
    #allocation13 [shape = 'u8[32768]{0}', space=vmem, size = 0x8000, scoped, tag = 'input window, operand 10, single buffered']
    #allocation14 [shape = 'u8[32768]{0}', space=vmem, size = 0x8000, scoped, tag = 'input window, operand 12, single buffered']
    #allocation15 [shape = 's32[1]{0}', space=sflag, size = 0x4, scoped, tag = 'scoped memory for tpu_custom_call.1']
    #allocation16 [shape = 'u8[262144]{0}', space=vmem, size = 0x40000, scoped, tag = 'output window, operand 0']
    %19 = vsyncpa [#allocation3], 0
    %s20 = scalar_lea.sflag [#allocation3], 1
    %21 = vsyncpa %s20, 0
    %22 = vsyncpa [#allocation6], 0
    %s23 = scalar_lea.sflag [#allocation6], 1
    %24 = vsyncpa %s23, 0
    %25 = vsyncpa [#allocation9], 0
    %26 = vsyncpa [#allocation12], 0
    %27 = vsyncpa [#allocation15], 0
    %28 = vsyncpa [#allocation4], 0
    %s29 = scalar_lea.sflag [#allocation4], 1
    %30 = vsyncpa %s29, 0
    loop: start=0, step=1, limit=6
    $region2: #{tpu_custom_call.1} parent=1 // loop_pre_header
      _
    $region3: #{tpu_custom_call.1} parent=1 // loop_header
      %s32 = sphi 0, %s36
      %p33 = scmp.ge.s32.totalorder %s32, 6
      %s42 = sphi 0, %s44
      %s45 = sphi 0, %s42
      %s46 = sphi 0, %s45
      %s62 = sphi 0, %s46
      %s68 = sphi 0, %s70
      %s71 = sphi 0, %s68
      %s72 = sphi 0, %s71
      %s88 = sphi 0, %s72
      %s92 = sphi 0, %s92
      %s94 = sphi 0, %s92
      %s95 = sphi 0, %s94
      %s109 = sphi 0, %s95
      %s113 = sphi 0, %s113
      %s115 = sphi 0, %s113
      %s116 = sphi 0, %s115
      %s130 = sphi 0, %s116
      %s134 = sphi 0, %s134
      %s136 = sphi 0, %s134
      %s137 = sphi 0, %s136
      %s151 = sphi 0, %s137
      %s155 = sphi 0, %s155
      %s157 = sphi 0, %s155
      %s158 = sphi 0, %s157
      %s172 = sphi 0, %s158
      %s176 = sphi 0, %s176
      %s178 = sphi 0, %s176
      %s179 = sphi 0, %s178
      %s193 = sphi 0, %s179
      %s197 = sphi 0, %s197
      %s199 = sphi 0, %s197
      %s200 = sphi 0, %s199
      %s214 = sphi 0, %s200
      %s218 = sphi 0, %s218
      %s220 = sphi 0, %s218
      %s221 = sphi 0, %s220
      %s235 = sphi 0, %s221
      %s239 = sphi 0, %s239
      %s241 = sphi 0, %s239
      %s242 = sphi 0, %s241
      %s256 = sphi 0, %s242
      %s260 = sphi 0, %s260
      %s262 = sphi 0, %s260
      %s263 = sphi 0, %s262
      %s277 = sphi 0, %s263
      %s281 = sphi 0, %s281
      %s283 = sphi 0, %s281
      %s284 = sphi 0, %s283
      %s298 = sphi 0, %s284
      %s302 = sphi 0, %s302
      %s304 = sphi 0, %s302
      %s305 = sphi 0, %s304
      %s319 = sphi 0, %s305
      %s323 = sphi 0, %s323
      %s325 = sphi 0, %s323
      %s326 = sphi 0, %s325
      %s340 = sphi 0, %s326
      %s346 = sphi 0, %s348
      %s349 = sphi 0, %s346
      %s350 = sphi 0, %s349
      %s366 = sphi 0, %s350
    $region4: #{tpu_custom_call.1} parent=1 // loop_header_branch
      %35 = sbr.rel (%p33) target = $region8
    $region5: #{tpu_custom_call.1} parent=1 // loop_body
      %s37 = ssub.s32 %s32, 1
      %s38 = ssub.s32 %s32, 2
      %s39 = sadd.s32 %s32, 1
      %s40 = ssub.s32 %s32, %s39
      %p41 = scmp.eq.s32.totalorder %s40, 0
      %s43 = sadd.s32 %s42, 1
      %s44 = scalar_select %p41, %s42, %s43
      %p47 = pneg %p41
      %p48 = scmp.eq.s32.totalorder %s32, 3
      %p49 = por %p47, %p48
      %p50 = scmp.ne.s32.totalorder %s42, %s45
      %p51 = scmp.eq.s32.totalorder %s32, 0
      %p52 = por %p50, %p51
      %p53 = scmp.ne.s32.totalorder %s42, %s45
      %p54 = scmp.eq.s32.totalorder %s37, 3
      %p55 = por %p53, %p54
      %p56 = scmp.ne.s32.totalorder %s45, %s46
      %p57 = scmp.eq.s32.totalorder %s37, 0
      %p58 = por %p56, %p57
      %p59 = scmp.ne.s32.totalorder %s45, %s46
      %p60 = scmp.eq.s32.totalorder %s38, 3
      %p61 = por %p59, %p60
      %p63 = scmp.ne.s32.totalorder %s46, %s62
      %p64 = scmp.eq.s32.totalorder %s38, 0
      %p65 = por %p63, %p64
      %s66 = ssub.s32 %s32, %s39
      %p67 = scmp.eq.s32.totalorder %s66, 0
      %s69 = sadd.s32 %s68, 1
      %s70 = scalar_select %p67, %s68, %s69
      %p73 = pneg %p67
      %p74 = scmp.eq.s32.totalorder %s32, 3
      %p75 = por %p73, %p74
      %p76 = scmp.ne.s32.totalorder %s68, %s71
      %p77 = scmp.eq.s32.totalorder %s32, 0
      %p78 = por %p76, %p77
      %p79 = scmp.ne.s32.totalorder %s68, %s71
      %p80 = scmp.eq.s32.totalorder %s37, 3
      %p81 = por %p79, %p80
      %p82 = scmp.ne.s32.totalorder %s71, %s72
      %p83 = scmp.eq.s32.totalorder %s37, 0
      %p84 = por %p82, %p83
      %p85 = scmp.ne.s32.totalorder %s71, %s72
      %p86 = scmp.eq.s32.totalorder %s38, 3
      %p87 = por %p85, %p86
      %p89 = scmp.ne.s32.totalorder %s72, %s88
      %p90 = scmp.eq.s32.totalorder %s38, 0
      %p91 = por %p89, %p90
      %s93 = sadd.s32 %s92, 1
      %p96 = scmp.eq.s32.totalorder %s32, 3
      %p97 = scmp.ne.s32.totalorder %s92, %s94
      %p98 = scmp.eq.s32.totalorder %s32, 0
      %p99 = por %p97, %p98
      %p100 = scmp.ne.s32.totalorder %s92, %s94
      %p101 = scmp.eq.s32.totalorder %s37, 3
      %p102 = por %p100, %p101
      %p103 = scmp.ne.s32.totalorder %s94, %s95
      %p104 = scmp.eq.s32.totalorder %s37, 0
      %p105 = por %p103, %p104
      %p106 = scmp.ne.s32.totalorder %s94, %s95
      %p107 = scmp.eq.s32.totalorder %s38, 3
      %p108 = por %p106, %p107
      %p110 = scmp.ne.s32.totalorder %s95, %s109
      %p111 = scmp.eq.s32.totalorder %s38, 0
      %p112 = por %p110, %p111
      %s114 = sadd.s32 %s113, 1
      %p117 = scmp.eq.s32.totalorder %s32, 3
      %p118 = scmp.ne.s32.totalorder %s113, %s115
      %p119 = scmp.eq.s32.totalorder %s32, 0
      %p120 = por %p118, %p119
      %p121 = scmp.ne.s32.totalorder %s113, %s115
      %p122 = scmp.eq.s32.totalorder %s37, 3
      %p123 = por %p121, %p122
      %p124 = scmp.ne.s32.totalorder %s115, %s116
      %p125 = scmp.eq.s32.totalorder %s37, 0
      %p126 = por %p124, %p125
      %p127 = scmp.ne.s32.totalorder %s115, %s116
      %p128 = scmp.eq.s32.totalorder %s38, 3
      %p129 = por %p127, %p128
      %p131 = scmp.ne.s32.totalorder %s116, %s130
      %p132 = scmp.eq.s32.totalorder %s38, 0
      %p133 = por %p131, %p132
      %s135 = sadd.s32 %s134, 1
      %p138 = scmp.eq.s32.totalorder %s32, 3
      %p139 = scmp.ne.s32.totalorder %s134, %s136
      %p140 = scmp.eq.s32.totalorder %s32, 0
      %p141 = por %p139, %p140
      %p142 = scmp.ne.s32.totalorder %s134, %s136
      %p143 = scmp.eq.s32.totalorder %s37, 3
      %p144 = por %p142, %p143
      %p145 = scmp.ne.s32.totalorder %s136, %s137
      %p146 = scmp.eq.s32.totalorder %s37, 0
      %p147 = por %p145, %p146
      %p148 = scmp.ne.s32.totalorder %s136, %s137
      %p149 = scmp.eq.s32.totalorder %s38, 3
      %p150 = por %p148, %p149
      %p152 = scmp.ne.s32.totalorder %s137, %s151
      %p153 = scmp.eq.s32.totalorder %s38, 0
      %p154 = por %p152, %p153
      %s156 = sadd.s32 %s155, 1
      %p159 = scmp.eq.s32.totalorder %s32, 3
      %p160 = scmp.ne.s32.totalorder %s155, %s157
      %p161 = scmp.eq.s32.totalorder %s32, 0
      %p162 = por %p160, %p161
      %p163 = scmp.ne.s32.totalorder %s155, %s157
      %p164 = scmp.eq.s32.totalorder %s37, 3
      %p165 = por %p163, %p164
      %p166 = scmp.ne.s32.totalorder %s157, %s158
      %p167 = scmp.eq.s32.totalorder %s37, 0
      %p168 = por %p166, %p167
      %p169 = scmp.ne.s32.totalorder %s157, %s158
      %p170 = scmp.eq.s32.totalorder %s38, 3
      %p171 = por %p169, %p170
      %p173 = scmp.ne.s32.totalorder %s158, %s172
      %p174 = scmp.eq.s32.totalorder %s38, 0
      %p175 = por %p173, %p174
      %s177 = sadd.s32 %s176, 1
      %p180 = scmp.eq.s32.totalorder %s32, 3
      %p181 = scmp.ne.s32.totalorder %s176, %s178
      %p182 = scmp.eq.s32.totalorder %s32, 0
      %p183 = por %p181, %p182
      %p184 = scmp.ne.s32.totalorder %s176, %s178
      %p185 = scmp.eq.s32.totalorder %s37, 3
      %p186 = por %p184, %p185
      %p187 = scmp.ne.s32.totalorder %s178, %s179
      %p188 = scmp.eq.s32.totalorder %s37, 0
      %p189 = por %p187, %p188
      %p190 = scmp.ne.s32.totalorder %s178, %s179
      %p191 = scmp.eq.s32.totalorder %s38, 3
      %p192 = por %p190, %p191
      %p194 = scmp.ne.s32.totalorder %s179, %s193
      %p195 = scmp.eq.s32.totalorder %s38, 0
      %p196 = por %p194, %p195
      %s198 = sadd.s32 %s197, 1
      %p201 = scmp.eq.s32.totalorder %s32, 3
      %p202 = scmp.ne.s32.totalorder %s197, %s199
      %p203 = scmp.eq.s32.totalorder %s32, 0
      %p204 = por %p202, %p203
      %p205 = scmp.ne.s32.totalorder %s197, %s199
      %p206 = scmp.eq.s32.totalorder %s37, 3
      %p207 = por %p205, %p206
      %p208 = scmp.ne.s32.totalorder %s199, %s200
      %p209 = scmp.eq.s32.totalorder %s37, 0
      %p210 = por %p208, %p209
      %p211 = scmp.ne.s32.totalorder %s199, %s200
      %p212 = scmp.eq.s32.totalorder %s38, 3
      %p213 = por %p211, %p212
      %p215 = scmp.ne.s32.totalorder %s200, %s214
      %p216 = scmp.eq.s32.totalorder %s38, 0
      %p217 = por %p215, %p216
      %s219 = sadd.s32 %s218, 1
      %p222 = scmp.eq.s32.totalorder %s32, 3
      %p223 = scmp.ne.s32.totalorder %s218, %s220
      %p224 = scmp.eq.s32.totalorder %s32, 0
      %p225 = por %p223, %p224
      %p226 = scmp.ne.s32.totalorder %s218, %s220
      %p227 = scmp.eq.s32.totalorder %s37, 3
      %p228 = por %p226, %p227
      %p229 = scmp.ne.s32.totalorder %s220, %s221
      %p230 = scmp.eq.s32.totalorder %s37, 0
      %p231 = por %p229, %p230
      %p232 = scmp.ne.s32.totalorder %s220, %s221
      %p233 = scmp.eq.s32.totalorder %s38, 3
      %p234 = por %p232, %p233
      %p236 = scmp.ne.s32.totalorder %s221, %s235
      %p237 = scmp.eq.s32.totalorder %s38, 0
      %p238 = por %p236, %p237
      %s240 = sadd.s32 %s239, 1
      %p243 = scmp.eq.s32.totalorder %s32, 3
      %p244 = scmp.ne.s32.totalorder %s239, %s241
      %p245 = scmp.eq.s32.totalorder %s32, 0
      %p246 = por %p244, %p245
      %p247 = scmp.ne.s32.totalorder %s239, %s241
      %p248 = scmp.eq.s32.totalorder %s37, 3
      %p249 = por %p247, %p248
      %p250 = scmp.ne.s32.totalorder %s241, %s242
      %p251 = scmp.eq.s32.totalorder %s37, 0
      %p252 = por %p250, %p251
      %p253 = scmp.ne.s32.totalorder %s241, %s242
      %p254 = scmp.eq.s32.totalorder %s38, 3
      %p255 = por %p253, %p254
      %p257 = scmp.ne.s32.totalorder %s242, %s256
      %p258 = scmp.eq.s32.totalorder %s38, 0
      %p259 = por %p257, %p258
      %s261 = sadd.s32 %s260, 1
      %p264 = scmp.eq.s32.totalorder %s32, 3
      %p265 = scmp.ne.s32.totalorder %s260, %s262
      %p266 = scmp.eq.s32.totalorder %s32, 0
      %p267 = por %p265, %p266
      %p268 = scmp.ne.s32.totalorder %s260, %s262
      %p269 = scmp.eq.s32.totalorder %s37, 3
      %p270 = por %p268, %p269
      %p271 = scmp.ne.s32.totalorder %s262, %s263
      %p272 = scmp.eq.s32.totalorder %s37, 0
      %p273 = por %p271, %p272
      %p274 = scmp.ne.s32.totalorder %s262, %s263
      %p275 = scmp.eq.s32.totalorder %s38, 3
      %p276 = por %p274, %p275
      %p278 = scmp.ne.s32.totalorder %s263, %s277
      %p279 = scmp.eq.s32.totalorder %s38, 0
      %p280 = por %p278, %p279
      %s282 = sadd.s32 %s281, 1
      %p285 = scmp.eq.s32.totalorder %s32, 3
      %p286 = scmp.ne.s32.totalorder %s281, %s283
      %p287 = scmp.eq.s32.totalorder %s32, 0
      %p288 = por %p286, %p287
      %p289 = scmp.ne.s32.totalorder %s281, %s283
      %p290 = scmp.eq.s32.totalorder %s37, 3
      %p291 = por %p289, %p290
      %p292 = scmp.ne.s32.totalorder %s283, %s284
      %p293 = scmp.eq.s32.totalorder %s37, 0
      %p294 = por %p292, %p293
      %p295 = scmp.ne.s32.totalorder %s283, %s284
      %p296 = scmp.eq.s32.totalorder %s38, 3
      %p297 = por %p295, %p296
      %p299 = scmp.ne.s32.totalorder %s284, %s298
      %p300 = scmp.eq.s32.totalorder %s38, 0
      %p301 = por %p299, %p300
      %s303 = sadd.s32 %s302, 1
      %p306 = scmp.eq.s32.totalorder %s32, 3
      %p307 = scmp.ne.s32.totalorder %s302, %s304
      %p308 = scmp.eq.s32.totalorder %s32, 0
      %p309 = por %p307, %p308
      %p310 = scmp.ne.s32.totalorder %s302, %s304
      %p311 = scmp.eq.s32.totalorder %s37, 3
      %p312 = por %p310, %p311
      %p313 = scmp.ne.s32.totalorder %s304, %s305
      %p314 = scmp.eq.s32.totalorder %s37, 0
      %p315 = por %p313, %p314
      %p316 = scmp.ne.s32.totalorder %s304, %s305
      %p317 = scmp.eq.s32.totalorder %s38, 3
      %p318 = por %p316, %p317
      %p320 = scmp.ne.s32.totalorder %s305, %s319
      %p321 = scmp.eq.s32.totalorder %s38, 0
      %p322 = por %p320, %p321
      %s324 = sadd.s32 %s323, 1
      %p327 = scmp.eq.s32.totalorder %s32, 3
      %p328 = scmp.ne.s32.totalorder %s323, %s325
      %p329 = scmp.eq.s32.totalorder %s32, 0
      %p330 = por %p328, %p329
      %p331 = scmp.ne.s32.totalorder %s323, %s325
      %p332 = scmp.eq.s32.totalorder %s37, 3
      %p333 = por %p331, %p332
      %p334 = scmp.ne.s32.totalorder %s325, %s326
      %p335 = scmp.eq.s32.totalorder %s37, 0
      %p336 = por %p334, %p335
      %p337 = scmp.ne.s32.totalorder %s325, %s326
      %p338 = scmp.eq.s32.totalorder %s38, 3
      %p339 = por %p337, %p338
      %p341 = scmp.ne.s32.totalorder %s326, %s340
      %p342 = scmp.eq.s32.totalorder %s38, 0
      %p343 = por %p341, %p342
      %s344 = ssub.s32 %s32, %s39
      %p345 = scmp.eq.s32.totalorder %s344, 0
      %s347 = sadd.s32 %s346, 1
      %s348 = scalar_select %p345, %s346, %s347
      %p351 = pneg %p345
      %p352 = scmp.eq.s32.totalorder %s32, 3
      %p353 = por %p351, %p352
      %p354 = scmp.ne.s32.totalorder %s346, %s349
      %p355 = scmp.eq.s32.totalorder %s32, 0
      %p356 = por %p354, %p355
      %p357 = scmp.ne.s32.totalorder %s346, %s349
      %p358 = scmp.eq.s32.totalorder %s37, 3
      %p359 = por %p357, %p358
      %p360 = scmp.ne.s32.totalorder %s349, %s350
      %p361 = scmp.eq.s32.totalorder %s37, 0
      %p362 = por %p360, %p361
      %p363 = scmp.ne.s32.totalorder %s349, %s350
      %p364 = scmp.eq.s32.totalorder %s38, 3
      %p365 = por %p363, %p364
      %p367 = scmp.ne.s32.totalorder %s350, %s366
      %p368 = scmp.eq.s32.totalorder %s38, 0
      %p369 = por %p367, %p368
      %p370 = scmp.le.s32.totalorder 1, %s32
      %p371 = scmp.lt.s32.totalorder %s32, 5
      %p372 = pnand %p370, %p371
      %p373 = pneg %p372
      // Predicated region
      $region9: #{tpu_custom_call.1} parent=5 // pred_check
        _
      $region10: #{tpu_custom_call.1} parent=5 // pred_check_branch
        %375 = sbr.rel (%p372) target = $region12
      $region11: #{tpu_custom_call.1} parent=5 // pred_region
        %s376 = ssub.s32 %s32, 1
        // Predicated region
        $region13: #{tpu_custom_call.1} parent=11 // pred_check
          %p377 = pneg %p105
        $region14: #{tpu_custom_call.1} parent=11 // pred_check_branch
          %379 = sbr.rel (%p377) target = $region16
        $region15: #{tpu_custom_call.1} parent=11 // pred_region
          %381 = vsyncadd [#allocation6], 0
          %s382 = sshll.u32 %s2, 4
          %s383 = int_to_ptr.hbm [resolvable:$true] %s382
          %s384 = sshll.u32 [#allocation7], 4
          %s385 = int_to_ptr.vmem [resolvable:$true] %s384
          %390 = dma.hbm_to_vmem [thread:$0]  %s383, 1024, %s385, [#allocation6], 64, 64, 4
        $region16: #{tpu_custom_call.1} parent=11 // pred_fallthru
          _
        // Predicated region
        $region17: #{tpu_custom_call.1} parent=11 // pred_check
          %p391 = pneg %p126
        $region18: #{tpu_custom_call.1} parent=11 // pred_check_branch
          %393 = sbr.rel (%p391) target = $region20
        $region19: #{tpu_custom_call.1} parent=11 // pred_region
          _
        $region20: #{tpu_custom_call.1} parent=11 // pred_fallthru
          _
        // Predicated region
        $region21: #{tpu_custom_call.1} parent=11 // pred_check
          %p394 = pneg %p147
        $region22: #{tpu_custom_call.1} parent=11 // pred_check_branch
          %396 = sbr.rel (%p394) target = $region24
        $region23: #{tpu_custom_call.1} parent=11 // pred_region
          %398 = vsyncadd [#allocation9], 0
          %s399 = sshll.u32 %s4, 4
          %s400 = int_to_ptr.hbm [resolvable:$true] %s399
          %s401 = sshll.u32 [#allocation8], 4
          %s402 = int_to_ptr.vmem [resolvable:$true] %s401
          %407 = dma.hbm_to_vmem [thread:$0]  %s400, 1024, %s402, [#allocation9], 64, 64, 4
        $region24: #{tpu_custom_call.1} parent=11 // pred_fallthru
          _
        // Predicated region
        $region25: #{tpu_custom_call.1} parent=11 // pred_check
          %p408 = pneg %p168
        $region26: #{tpu_custom_call.1} parent=11 // pred_check_branch
          %410 = sbr.rel (%p408) target = $region28
        $region27: #{tpu_custom_call.1} parent=11 // pred_region
          _
        $region28: #{tpu_custom_call.1} parent=11 // pred_fallthru
          _
        // Predicated region
        $region29: #{tpu_custom_call.1} parent=11 // pred_check
          %p411 = pneg %p189
        $region30: #{tpu_custom_call.1} parent=11 // pred_check_branch
          %413 = sbr.rel (%p411) target = $region32
        $region31: #{tpu_custom_call.1} parent=11 // pred_region
          %415 = vsyncadd [#allocation9], 0
          %s416 = sshll.u32 %s6, 4
          %s417 = int_to_ptr.hbm [resolvable:$true] %s416
          %s418 = sshll.u32 [#allocation10], 4
          %s419 = int_to_ptr.vmem [resolvable:$true] %s418
          %424 = dma.hbm_to_vmem [thread:$0]  %s417, 1024, %s419, [#allocation9], 64, 64, 4
        $region32: #{tpu_custom_call.1} parent=11 // pred_fallthru
          _
        // Predicated region
        $region33: #{tpu_custom_call.1} parent=11 // pred_check
          %p425 = pneg %p210
        $region34: #{tpu_custom_call.1} parent=11 // pred_check_branch
          %427 = sbr.rel (%p425) target = $region36
        $region35: #{tpu_custom_call.1} parent=11 // pred_region
          _
        $region36: #{tpu_custom_call.1} parent=11 // pred_fallthru
          _
        // Predicated region
        $region37: #{tpu_custom_call.1} parent=11 // pred_check
          %p428 = pneg %p231
        $region38: #{tpu_custom_call.1} parent=11 // pred_check_branch
          %430 = sbr.rel (%p428) target = $region40
        $region39: #{tpu_custom_call.1} parent=11 // pred_region
          %432 = vsyncadd [#allocation12], 0
          %s433 = sshll.u32 %s8, 4
          %s434 = int_to_ptr.hbm [resolvable:$true] %s433
          %s435 = sshll.u32 [#allocation11], 4
          %s436 = int_to_ptr.vmem [resolvable:$true] %s435
          %441 = dma.hbm_to_vmem [thread:$0]  %s434, 1024, %s436, [#allocation12], 64, 64, 4
        $region40: #{tpu_custom_call.1} parent=11 // pred_fallthru
          _
        // Predicated region
        $region41: #{tpu_custom_call.1} parent=11 // pred_check
          %p442 = pneg %p252
        $region42: #{tpu_custom_call.1} parent=11 // pred_check_branch
          %444 = sbr.rel (%p442) target = $region44
        $region43: #{tpu_custom_call.1} parent=11 // pred_region
          _
        $region44: #{tpu_custom_call.1} parent=11 // pred_fallthru
          _
        // Predicated region
        $region45: #{tpu_custom_call.1} parent=11 // pred_check
          %p445 = pneg %p273
        $region46: #{tpu_custom_call.1} parent=11 // pred_check_branch
          %447 = sbr.rel (%p445) target = $region48
        $region47: #{tpu_custom_call.1} parent=11 // pred_region
          %449 = vsyncadd [#allocation12], 0
          %s450 = sshll.u32 %s10, 4
          %s451 = int_to_ptr.hbm [resolvable:$true] %s450
          %s452 = sshll.u32 [#allocation13], 4
          %s453 = int_to_ptr.vmem [resolvable:$true] %s452
          %458 = dma.hbm_to_vmem [thread:$0]  %s451, 1024, %s453, [#allocation12], 64, 64, 4
        $region48: #{tpu_custom_call.1} parent=11 // pred_fallthru
          _
        // Predicated region
        $region49: #{tpu_custom_call.1} parent=11 // pred_check
          %p459 = pneg %p294
        $region50: #{tpu_custom_call.1} parent=11 // pred_check_branch
          %461 = sbr.rel (%p459) target = $region52
        $region51: #{tpu_custom_call.1} parent=11 // pred_region
          _
        $region52: #{tpu_custom_call.1} parent=11 // pred_fallthru
          _
        // Predicated region
        $region53: #{tpu_custom_call.1} parent=11 // pred_check
          %p462 = pneg %p315
        $region54: #{tpu_custom_call.1} parent=11 // pred_check_branch
          %464 = sbr.rel (%p462) target = $region56
        $region55: #{tpu_custom_call.1} parent=11 // pred_region
          %466 = vsyncadd [#allocation15], 0
          %s467 = sshll.u32 %s12, 4
          %s468 = int_to_ptr.hbm [resolvable:$true] %s467
          %s469 = sshll.u32 [#allocation14], 4
          %s470 = int_to_ptr.vmem [resolvable:$true] %s469
          %475 = dma.hbm_to_vmem [thread:$0]  %s468, 1024, %s470, [#allocation15], 64, 64, 4
        $region56: #{tpu_custom_call.1} parent=11 // pred_fallthru
          _
        // Predicated region
        $region57: #{tpu_custom_call.1} parent=11 // pred_check
          %p476 = pneg %p336
        $region58: #{tpu_custom_call.1} parent=11 // pred_check_branch
          %478 = sbr.rel (%p476) target = $region60
        $region59: #{tpu_custom_call.1} parent=11 // pred_region
          _
        $region60: #{tpu_custom_call.1} parent=11 // pred_fallthru
          _
      $region12: #{tpu_custom_call.1} parent=5 // pred_fallthru
        _
      %p479 = scmp.lt.s32.totalorder %s32, 4
      // Predicated region
      $region61: #{tpu_custom_call.1} parent=5 // pred_check
        %p480 = pneg %p479
      $region62: #{tpu_custom_call.1} parent=5 // pred_check_branch
        %482 = sbr.rel (%p480) target = $region64
      $region63: #{tpu_custom_call.1} parent=5 // pred_region
        // Predicated region
        $region65: #{tpu_custom_call.1} parent=63 // pred_check
          %p483 = pneg %p52
        $region66: #{tpu_custom_call.1} parent=63 // pred_check_branch
          %485 = sbr.rel (%p483) target = $region68
        $region67: #{tpu_custom_call.1} parent=63 // pred_region
          %s486 = sand.u32 %s42, 1
          %s487 = scalar_lea.sflag [#allocation3], %s486
          %s488 = sand.u32 %s42, 1
          %s489 = smul.addr %s488, 256
          %s490 = scalar_lea.vmem [#allocation2], %s489
          %s491 = smul.u32 32, %s32
          %493 = vsyncadd %s487, 0
          %s494 = smul.addr %s491, 8
          %s495 = scalar_lea.hbm %s0, %s494
          %s496 = sshll.u32 %s495, 4
          %s497 = int_to_ptr.hbm [resolvable:$true] %s496
          %s498 = sshll.u32 %s490, 4
          %s499 = int_to_ptr.vmem [resolvable:$true] %s498
          %504 = dma.hbm_to_vmem [thread:$0]  %s497, 4096, %s499, %s487, 128, 128, 8
        $region68: #{tpu_custom_call.1} parent=63 // pred_fallthru
          _
        // Predicated region
        $region69: #{tpu_custom_call.1} parent=63 // pred_check
          %p505 = pneg %p78
        $region70: #{tpu_custom_call.1} parent=63 // pred_check_branch
          %507 = sbr.rel (%p505) target = $region72
        $region71: #{tpu_custom_call.1} parent=63 // pred_region
          %s508 = sand.u32 %s32, 1
          %s509 = scalar_lea.sflag [#allocation6], %s508
          %s510 = sand.u32 %s68, 1
          %s511 = smul.addr %s510, 128
          %s512 = scalar_lea.vmem [#allocation5], %s511
          %s513 = smul.u32 32, %s32
          %515 = vsyncadd %s509, 0
          %s516 = smul.addr %s513, 4
          %s517 = scalar_lea.hbm %s1, %s516
          %s518 = sshll.u32 %s517, 4
          %s519 = int_to_ptr.hbm [resolvable:$true] %s518
          %s520 = sshll.u32 %s512, 4
          %s521 = int_to_ptr.vmem [resolvable:$true] %s520
          %526 = dma.hbm_to_vmem [thread:$0]  %s519, 2048, %s521, %s509, 64, 64, 4
        $region72: #{tpu_custom_call.1} parent=63 // pred_fallthru
          _
      $region64: #{tpu_custom_call.1} parent=5 // pred_fallthru
        _
      %p527 = scmp.le.s32.totalorder 1, %s32
      %p528 = scmp.lt.s32.totalorder %s32, 5
      %p529 = pnand %p527, %p528
      %p530 = pneg %p529
      // Predicated region
      $region73: #{tpu_custom_call.1} parent=5 // pred_check
        _
      $region74: #{tpu_custom_call.1} parent=5 // pred_check_branch
        %532 = sbr.rel (%p529) target = $region76
      $region75: #{tpu_custom_call.1} parent=5 // pred_region
        %s533 = ssub.s32 %s32, 1
        %s534 = sand.u32 %s45, 1
        %s535 = scalar_lea.sflag [#allocation3], %s534
        %s536 = sand.u32 %s45, 1
        %s537 = smul.addr %s536, 256
        %s538 = scalar_lea.vmem [#allocation2], %s537
        // Predicated region
        $region77: #{tpu_custom_call.1} parent=75 // pred_check
          %p539 = pneg %p58
        $region78: #{tpu_custom_call.1} parent=75 // pred_check_branch
          %541 = sbr.rel (%p539) target = $region80
        $region79: #{tpu_custom_call.1} parent=75 // pred_region
          %543 = dma.done %s535, 4096
        $region80: #{tpu_custom_call.1} parent=75 // pred_fallthru
          _
        %s544 = sand.u32 %s37, 1
        %s545 = scalar_lea.sflag [#allocation6], %s544
        %s546 = sand.u32 %s71, 1
        %s547 = smul.addr %s546, 128
        %s548 = scalar_lea.vmem [#allocation5], %s547
        // Predicated region
        $region81: #{tpu_custom_call.1} parent=75 // pred_check
          %p549 = pneg %p84
        $region82: #{tpu_custom_call.1} parent=75 // pred_check_branch
          %551 = sbr.rel (%p549) target = $region84
        $region83: #{tpu_custom_call.1} parent=75 // pred_region
          %553 = dma.done %s545, 2048
        $region84: #{tpu_custom_call.1} parent=75 // pred_fallthru
          _
        // Predicated region
        $region85: #{tpu_custom_call.1} parent=75 // pred_check
          %p554 = pneg %p105
        $region86: #{tpu_custom_call.1} parent=75 // pred_check_branch
          %556 = sbr.rel (%p554) target = $region88
        $region87: #{tpu_custom_call.1} parent=75 // pred_region
          %558 = dma.done [#allocation6], 1024
        $region88: #{tpu_custom_call.1} parent=75 // pred_fallthru
          _
        // Predicated region
        $region89: #{tpu_custom_call.1} parent=75 // pred_check
          %p559 = pneg %p147
        $region90: #{tpu_custom_call.1} parent=75 // pred_check_branch
          %561 = sbr.rel (%p559) target = $region92
        $region91: #{tpu_custom_call.1} parent=75 // pred_region
          %563 = dma.done [#allocation9], 1024
        $region92: #{tpu_custom_call.1} parent=75 // pred_fallthru
          _
        // Predicated region
        $region93: #{tpu_custom_call.1} parent=75 // pred_check
          %p564 = pneg %p189
        $region94: #{tpu_custom_call.1} parent=75 // pred_check_branch
          %566 = sbr.rel (%p564) target = $region96
        $region95: #{tpu_custom_call.1} parent=75 // pred_region
          %568 = dma.done [#allocation9], 1024
        $region96: #{tpu_custom_call.1} parent=75 // pred_fallthru
          _
        // Predicated region
        $region97: #{tpu_custom_call.1} parent=75 // pred_check
          %p569 = pneg %p231
        $region98: #{tpu_custom_call.1} parent=75 // pred_check_branch
          %571 = sbr.rel (%p569) target = $region100
        $region99: #{tpu_custom_call.1} parent=75 // pred_region
          %573 = dma.done [#allocation12], 1024
        $region100: #{tpu_custom_call.1} parent=75 // pred_fallthru
          _
        // Predicated region
        $region101: #{tpu_custom_call.1} parent=75 // pred_check
          %p574 = pneg %p273
        $region102: #{tpu_custom_call.1} parent=75 // pred_check_branch
          %576 = sbr.rel (%p574) target = $region104
        $region103: #{tpu_custom_call.1} parent=75 // pred_region
          %578 = dma.done [#allocation12], 1024
        $region104: #{tpu_custom_call.1} parent=75 // pred_fallthru
          _
        // Predicated region
        $region105: #{tpu_custom_call.1} parent=75 // pred_check
          %p579 = pneg %p315
        $region106: #{tpu_custom_call.1} parent=75 // pred_check_branch
          %581 = sbr.rel (%p579) target = $region108
        $region107: #{tpu_custom_call.1} parent=75 // pred_region
          %583 = dma.done [#allocation15], 1024
        $region108: #{tpu_custom_call.1} parent=75 // pred_fallthru
          _
        %s584 = sand.u32 %s45, 1
        %s585 = scalar_lea.sflag [#allocation3], %s584
        %s586 = sand.u32 %s45, 1
        %s587 = smul.addr %s586, 256
        %s588 = scalar_lea.vmem [#allocation2], %s587
        %p589 = pneg %p58
        %p590 = pneg %p55
        %s591 = sand.u32 %s37, 1
        %s592 = scalar_lea.sflag [#allocation6], %s591
        %s593 = sand.u32 %s71, 1
        %s594 = smul.addr %s593, 128
        %s595 = scalar_lea.vmem [#allocation5], %s594
        %p596 = pneg %p84
        %p597 = pneg %p81
        %p598 = pneg %p105
        %p599 = pneg %p102
        %p600 = pneg %p126
        %p601 = pneg %p123
        %p602 = pneg %p147
        %p603 = pneg %p144
        %p604 = pneg %p168
        %p605 = pneg %p165
        %p606 = pneg %p189
        %p607 = pneg %p186
        %p608 = pneg %p210
        %p609 = pneg %p207
        %p610 = pneg %p231
        %p611 = pneg %p228
        %p612 = pneg %p252
        %p613 = pneg %p249
        %p614 = pneg %p273
        %p615 = pneg %p270
        %p616 = pneg %p294
        %p617 = pneg %p291
        %p618 = pneg %p315
        %p619 = pneg %p312
        %p620 = pneg %p336
        %p621 = pneg %p333
        %p622 = pneg %p362
        %p623 = pneg %p359
        %s624 = sand.u32 %s349, 1
        %s625 = scalar_lea.sflag [#allocation4], %s624
        %s626 = sand.u32 %s349, 1
        %s627 = smul.addr %s626, 256
        %s628 = scalar_lea.vmem [#allocation16], %s627
        %s629 = smul.u32 32, %s37
        %s630 = smul.u32 32, %s37
        %s631 = smul.u32 32, %s37
        %v632 = vld [vmem:[%s538] sm:$0xff]
        %v633 = vld [vmem:[%s538 + $0x8] sm:$0xff]
        %v634 = vld [vmem:[%s538 + $0x10] sm:$0xff]
        %v635 = vld [vmem:[%s538 + $0x18] sm:$0xff]
        %v636 = vld [vmem:[%s538 + $0x20] sm:$0xff]
        %v637 = vld [vmem:[%s538 + $0x28] sm:$0xff]
        %v638 = vld [vmem:[%s538 + $0x30] sm:$0xff]
        %v639 = vld [vmem:[%s538 + $0x38] sm:$0xff]
        %v640 = vld [vmem:[%s538 + $0x40] sm:$0xff]
        %v641 = vld [vmem:[%s538 + $0x48] sm:$0xff]
        %v642 = vld [vmem:[%s538 + $0x50] sm:$0xff]
        %v643 = vld [vmem:[%s538 + $0x58] sm:$0xff]
        %v644 = vld [vmem:[%s538 + $0x60] sm:$0xff]
        %v645 = vld [vmem:[%s538 + $0x68] sm:$0xff]
        %v646 = vld [vmem:[%s538 + $0x70] sm:$0xff]
        %v647 = vld [vmem:[%s538 + $0x78] sm:$0xff]
        %v648 = vld [vmem:[%s538 + $0x80] sm:$0xff]
        %v649 = vld [vmem:[%s538 + $0x88] sm:$0xff]
        %v650 = vld [vmem:[%s538 + $0x90] sm:$0xff]
        %v651 = vld [vmem:[%s538 + $0x98] sm:$0xff]
        %v652 = vld [vmem:[%s538 + $0xa0] sm:$0xff]
        %v653 = vld [vmem:[%s538 + $0xa8] sm:$0xff]
        %v654 = vld [vmem:[%s538 + $0xb0] sm:$0xff]
        %v655 = vld [vmem:[%s538 + $0xb8] sm:$0xff]
        %v656 = vld [vmem:[%s538 + $0xc0] sm:$0xff]
        %v657 = vld [vmem:[%s538 + $0xc8] sm:$0xff]
        %v658 = vld [vmem:[%s538 + $0xd0] sm:$0xff]
        %v659 = vld [vmem:[%s538 + $0xd8] sm:$0xff]
        %v660 = vld [vmem:[%s538 + $0xe0] sm:$0xff]
        %v661 = vld [vmem:[%s538 + $0xe8] sm:$0xff]
        %v662 = vld [vmem:[%s538 + $0xf0] sm:$0xff]
        %v663 = vld [vmem:[%s538 + $0xf8] sm:$0xff]
        %v664 = vpack.c.bf16 %v633, %v632
        %v665 = vpack.c.bf16 %v635, %v634
        %v666 = vpack.c.bf16 %v637, %v636
        %v667 = vpack.c.bf16 %v639, %v638
        %v668 = vpack.c.bf16 %v641, %v640
        %v669 = vpack.c.bf16 %v643, %v642
        %v670 = vpack.c.bf16 %v645, %v644
        %v671 = vpack.c.bf16 %v647, %v646
        %v672 = vpack.c.bf16 %v649, %v648
        %v673 = vpack.c.bf16 %v651, %v650
        %v674 = vpack.c.bf16 %v653, %v652
        %v675 = vpack.c.bf16 %v655, %v654
        %v676 = vpack.c.bf16 %v657, %v656
        %v677 = vpack.c.bf16 %v659, %v658
        %v678 = vpack.c.bf16 %v661, %v660
        %v679 = vpack.c.bf16 %v663, %v662
        %v680 = vld [vmem:[#allocation7] sm:$0xf]
        %v681 = vld [vmem:[#allocation7 + $0x4] sm:$0xf]
        %v682 = vld [vmem:[#allocation7 + $0x8] sm:$0xf]
        %v683 = vld [vmem:[#allocation7 + $0xc] sm:$0xf]
        %v684 = vld [vmem:[#allocation7 + $0x10] sm:$0xf]
        %v685 = vld [vmem:[#allocation7 + $0x14] sm:$0xf]
        %v686 = vld [vmem:[#allocation7 + $0x18] sm:$0xf]
        %v687 = vld [vmem:[#allocation7 + $0x1c] sm:$0xf]
        %v688 = vld [vmem:[#allocation7 + $0x20] sm:$0xf]
        %v689 = vld [vmem:[#allocation7 + $0x24] sm:$0xf]
        %v690 = vld [vmem:[#allocation7 + $0x28] sm:$0xf]
        %v691 = vld [vmem:[#allocation7 + $0x2c] sm:$0xf]
        %v692 = vld [vmem:[#allocation7 + $0x30] sm:$0xf]
        %v693 = vld [vmem:[#allocation7 + $0x34] sm:$0xf]
        %v694 = vld [vmem:[#allocation7 + $0x38] sm:$0xf]
        %v695 = vld [vmem:[#allocation7 + $0x3c] sm:$0xf]
        %v696 = vld [vmem:[%s3] sm:$0x1]
        %v698 = vperm.slane %v696, 0
        %v716 = vunpack.c.l.b16 %v680
        %v717 = vunpack.c.l.b16 %v681
        %v718 = vunpack.c.l.b16 %v682
        %v719 = vunpack.c.l.b16 %v683
        %v720 = vunpack.c.l.b16 %v684
        %v721 = vunpack.c.l.b16 %v685
        %v722 = vunpack.c.l.b16 %v686
        %v723 = vunpack.c.l.b16 %v687
        %v724 = vunpack.c.l.b16 %v688
        %v725 = vunpack.c.l.b16 %v689
        %v726 = vunpack.c.l.b16 %v690
        %v727 = vunpack.c.l.b16 %v691
        %v728 = vunpack.c.l.b16 %v692
        %v729 = vunpack.c.l.b16 %v693
        %v730 = vunpack.c.l.b16 %v694
        %v731 = vunpack.c.l.b16 %v695
        %v732 = vpack.c.b16 %v717, %v716
        %v733 = vpack.c.b16 %v719, %v718
        %v734 = vpack.c.b16 %v721, %v720
        %v735 = vpack.c.b16 %v723, %v722
        %v736 = vpack.c.b16 %v725, %v724
        %v737 = vpack.c.b16 %v727, %v726
        %v738 = vpack.c.b16 %v729, %v728
        %v739 = vpack.c.b16 %v731, %v730
        %748 = vmatpush.bf16.msra.mxu0 %v739
        %749 = vmatpush.bf16.msra.mxu0 %v738
        %750 = vmatpush.bf16.msra.mxu0 %v737
        %751 = vmatpush.bf16.msra.mxu0 %v736
        %752 = vmatpush.bf16.msra.mxu0 %v735
        %753 = vmatpush.bf16.msra.mxu0 %v734
        %754 = vmatpush.bf16.msra.mxu0 %v733
        %755 = vmatpush.bf16.msra.mxu0 %v732
        %756 = vmatmul.bf16.gmra.mxu0 %v664
        %v757 = vpop.f32.mrf.mxu0
        %v758 = vadd.f32 %v698, %v757
        %v759 = vpop.f32.mrf.mxu0
        %v760 = vadd.f32 %v698, %v759
        %761 = vmatmul.bf16.gmra.mxu0 %v665
        %v762 = vpop.f32.mrf.mxu0
        %v763 = vadd.f32 %v698, %v762
        %v764 = vpop.f32.mrf.mxu0
        %v765 = vadd.f32 %v698, %v764
        %766 = vmatmul.bf16.gmra.mxu0 %v666
        %v767 = vpop.f32.mrf.mxu0
        %v768 = vadd.f32 %v698, %v767
        %v769 = vpop.f32.mrf.mxu0
        %v770 = vadd.f32 %v698, %v769
        %771 = vmatmul.bf16.gmra.mxu0 %v667
        %v772 = vpop.f32.mrf.mxu0
        %v773 = vadd.f32 %v698, %v772
        %v774 = vpop.f32.mrf.mxu0
        %v775 = vadd.f32 %v698, %v774
        %776 = vmatmul.bf16.gmra.mxu0 %v668
        %v777 = vpop.f32.mrf.mxu0
        %v778 = vadd.f32 %v698, %v777
        %v779 = vpop.f32.mrf.mxu0
        %v780 = vadd.f32 %v698, %v779
        %781 = vmatmul.bf16.gmra.mxu0 %v669
        %v782 = vpop.f32.mrf.mxu0
        %v783 = vadd.f32 %v698, %v782
        %v784 = vpop.f32.mrf.mxu0
        %v785 = vadd.f32 %v698, %v784
        %786 = vmatmul.bf16.gmra.mxu0 %v670
        %v787 = vpop.f32.mrf.mxu0
        %v788 = vadd.f32 %v698, %v787
        %v789 = vpop.f32.mrf.mxu0
        %v790 = vadd.f32 %v698, %v789
        %791 = vmatmul.bf16.gmra.mxu0 %v671
        %v792 = vpop.f32.mrf.mxu0
        %v793 = vadd.f32 %v698, %v792
        %v794 = vpop.f32.mrf.mxu0
        %v795 = vadd.f32 %v698, %v794
        %796 = vmatmul.bf16.gmra.mxu0 %v672
        %v797 = vpop.f32.mrf.mxu0
        %v798 = vadd.f32 %v698, %v797
        %v799 = vpop.f32.mrf.mxu0
        %v800 = vadd.f32 %v698, %v799
        %801 = vmatmul.bf16.gmra.mxu0 %v673
        %v802 = vpop.f32.mrf.mxu0
        %v803 = vadd.f32 %v698, %v802
        %v804 = vpop.f32.mrf.mxu0
        %v805 = vadd.f32 %v698, %v804
        %806 = vmatmul.bf16.gmra.mxu0 %v674
        %v807 = vpop.f32.mrf.mxu0
        %v808 = vadd.f32 %v698, %v807
        %v809 = vpop.f32.mrf.mxu0
        %v810 = vadd.f32 %v698, %v809
        %811 = vmatmul.bf16.gmra.mxu0 %v675
        %v812 = vpop.f32.mrf.mxu0
        %v813 = vadd.f32 %v698, %v812
        %v814 = vpop.f32.mrf.mxu0
        %v815 = vadd.f32 %v698, %v814
        %816 = vmatmul.bf16.gmra.mxu0 %v676
        %v817 = vpop.f32.mrf.mxu0
        %v818 = vadd.f32 %v698, %v817
        %v819 = vpop.f32.mrf.mxu0
        %v820 = vadd.f32 %v698, %v819
        %821 = vmatmul.bf16.gmra.mxu0 %v677
        %v822 = vpop.f32.mrf.mxu0
        %v823 = vadd.f32 %v698, %v822
        %v824 = vpop.f32.mrf.mxu0
        %v825 = vadd.f32 %v698, %v824
        %826 = vmatmul.bf16.gmra.mxu0 %v678
        %v827 = vpop.f32.mrf.mxu0
        %v828 = vadd.f32 %v698, %v827
        %v829 = vpop.f32.mrf.mxu0
        %v830 = vadd.f32 %v698, %v829
        %831 = vmatmul.bf16.gmra.mxu0 %v679
        %v832 = vpop.f32.mrf.mxu0
        %v833 = vadd.f32 %v698, %v832
        %v834 = vpop.f32.mrf.mxu0
        %v835 = vadd.f32 %v698, %v834
        %836 = vdwg.mxu0
        %v837 = vxor.u32 %v758, 2147483648
        %v838 = vxor.u32 %v760, 2147483648
        %v839 = vxor.u32 %v763, 2147483648
        %v840 = vxor.u32 %v765, 2147483648
        %v841 = vxor.u32 %v768, 2147483648
        %v842 = vxor.u32 %v770, 2147483648
        %v843 = vxor.u32 %v773, 2147483648
        %v844 = vxor.u32 %v775, 2147483648
        %v845 = vxor.u32 %v778, 2147483648
        %v846 = vxor.u32 %v780, 2147483648
        %v847 = vxor.u32 %v783, 2147483648
        %v848 = vxor.u32 %v785, 2147483648
        %v849 = vxor.u32 %v788, 2147483648
        %v850 = vxor.u32 %v790, 2147483648
        %v851 = vxor.u32 %v793, 2147483648
        %v852 = vxor.u32 %v795, 2147483648
        %v853 = vxor.u32 %v798, 2147483648
        %v854 = vxor.u32 %v800, 2147483648
        %v855 = vxor.u32 %v803, 2147483648
        %v856 = vxor.u32 %v805, 2147483648
        %v857 = vxor.u32 %v808, 2147483648
        %v858 = vxor.u32 %v810, 2147483648
        %v859 = vxor.u32 %v813, 2147483648
        %v860 = vxor.u32 %v815, 2147483648
        %v861 = vxor.u32 %v818, 2147483648
        %v862 = vxor.u32 %v820, 2147483648
        %v863 = vxor.u32 %v823, 2147483648
        %v864 = vxor.u32 %v825, 2147483648
        %v865 = vxor.u32 %v828, 2147483648
        %v866 = vxor.u32 %v830, 2147483648
        %v867 = vxor.u32 %v833, 2147483648
        %v868 = vxor.u32 %v835, 2147483648
        %v869 = vmul.f32 %v837, 1.442695
        %v870 = vpow.pop %v869
        %v871 = vmul.f32 %v838, 1.442695
        %v872 = vpow.pop %v871
        %v873 = vmul.f32 %v839, 1.442695
        %v874 = vpow.pop %v873
        %v875 = vmul.f32 %v840, 1.442695
        %v876 = vpow.pop %v875
        %v877 = vmul.f32 %v841, 1.442695
        %v878 = vpow.pop %v877
        %v879 = vmul.f32 %v842, 1.442695
        %v880 = vpow.pop %v879
        %v881 = vmul.f32 %v843, 1.442695
        %v882 = vpow.pop %v881
        %v883 = vmul.f32 %v844, 1.442695
        %v884 = vpow.pop %v883
        %v885 = vmul.f32 %v845, 1.442695
        %v886 = vpow.pop %v885
        %v887 = vmul.f32 %v846, 1.442695
        %v888 = vpow.pop %v887
        %v889 = vmul.f32 %v847, 1.442695
        %v890 = vpow.pop %v889
        %v891 = vmul.f32 %v848, 1.442695
        %v892 = vpow.pop %v891
        %v893 = vmul.f32 %v849, 1.442695
        %v894 = vpow.pop %v893
        %v895 = vmul.f32 %v850, 1.442695
        %v896 = vpow.pop %v895
        %v897 = vmul.f32 %v851, 1.442695
        %v898 = vpow.pop %v897
        %v899 = vmul.f32 %v852, 1.442695
        %v900 = vpow.pop %v899
        %v901 = vmul.f32 %v853, 1.442695
        %v902 = vpow.pop %v901
        %v903 = vmul.f32 %v854, 1.442695
        %v904 = vpow.pop %v903
        %v905 = vmul.f32 %v855, 1.442695
        %v906 = vpow.pop %v905
        %v907 = vmul.f32 %v856, 1.442695
        %v908 = vpow.pop %v907
        %v909 = vmul.f32 %v857, 1.442695
        %v910 = vpow.pop %v909
        %v911 = vmul.f32 %v858, 1.442695
        %v912 = vpow.pop %v911
        %v913 = vmul.f32 %v859, 1.442695
        %v914 = vpow.pop %v913
        %v915 = vmul.f32 %v860, 1.442695
        %v916 = vpow.pop %v915
        %v917 = vmul.f32 %v861, 1.442695
        %v918 = vpow.pop %v917
        %v919 = vmul.f32 %v862, 1.442695
        %v920 = vpow.pop %v919
        %v921 = vmul.f32 %v863, 1.442695
        %v922 = vpow.pop %v921
        %v923 = vmul.f32 %v864, 1.442695
        %v924 = vpow.pop %v923
        %v925 = vmul.f32 %v865, 1.442695
        %v926 = vpow.pop %v925
        %v927 = vmul.f32 %v866, 1.442695
        %v928 = vpow.pop %v927
        %v929 = vmul.f32 %v867, 1.442695
        %v930 = vpow.pop %v929
        %v931 = vmul.f32 %v868, 1.442695
        %v932 = vpow.pop %v931
        %v933 = vadd.f32 %v870, 1.0
        %v934 = vadd.f32 %v872, 1.0
        %v935 = vadd.f32 %v874, 1.0
        %v936 = vadd.f32 %v876, 1.0
        %v937 = vadd.f32 %v878, 1.0
        %v938 = vadd.f32 %v880, 1.0
        %v939 = vadd.f32 %v882, 1.0
        %v940 = vadd.f32 %v884, 1.0
        %v941 = vadd.f32 %v886, 1.0
        %v942 = vadd.f32 %v888, 1.0
        %v943 = vadd.f32 %v890, 1.0
        %v944 = vadd.f32 %v892, 1.0
        %v945 = vadd.f32 %v894, 1.0
        %v946 = vadd.f32 %v896, 1.0
        %v947 = vadd.f32 %v898, 1.0
        %v948 = vadd.f32 %v900, 1.0
        %v949 = vadd.f32 %v902, 1.0
        %v950 = vadd.f32 %v904, 1.0
        %v951 = vadd.f32 %v906, 1.0
        %v952 = vadd.f32 %v908, 1.0
        %v953 = vadd.f32 %v910, 1.0
        %v954 = vadd.f32 %v912, 1.0
        %v955 = vadd.f32 %v914, 1.0
        %v956 = vadd.f32 %v916, 1.0
        %v957 = vadd.f32 %v918, 1.0
        %v958 = vadd.f32 %v920, 1.0
        %v959 = vadd.f32 %v922, 1.0
        %v960 = vadd.f32 %v924, 1.0
        %v961 = vadd.f32 %v926, 1.0
        %v962 = vadd.f32 %v928, 1.0
        %v963 = vadd.f32 %v930, 1.0
        %v964 = vadd.f32 %v932, 1.0
        %v965 = vrcp.pop %v933
        %v966 = vmul.f32 %v933, %v965
        %v967 = vsub.f32 1.0, %v966
        %v968 = vmul.f32 %v965, %v967
        %v969 = vadd.f32 %v965, %v968
        %vm970 = vweird.f32 %v933
        %vm971 = vweird.f32 %v965
        %vm972 = vmor %vm970, %vm971
        %v973 = vsel %vm972, %v965, %v969
        %v974 = vand.u32 2147483647, %v933
        %vm975 = vcmp.eq.f32.partialorder %v974, 8.507059e+37
        %v976 = vand.u32 %v933, 2147483648
        %v977 = vor.u32 1.1754944e-38, %v976
        %v978 = vsel %vm975, %v977, %v973
        %v979 = vmul.f32 1.0, %v978
        %v980 = vrcp.pop %v934
        %v981 = vmul.f32 %v934, %v980
        %v982 = vsub.f32 1.0, %v981
        %v983 = vmul.f32 %v980, %v982
        %v984 = vadd.f32 %v980, %v983
        %vm985 = vweird.f32 %v934
        %vm986 = vweird.f32 %v980
        %vm987 = vmor %vm985, %vm986
        %v988 = vsel %vm987, %v980, %v984
        %v989 = vand.u32 2147483647, %v934
        %vm990 = vcmp.eq.f32.partialorder %v989, 8.507059e+37
        %v991 = vand.u32 %v934, 2147483648
        %v992 = vor.u32 1.1754944e-38, %v991
        %v993 = vsel %vm990, %v992, %v988
        %v994 = vmul.f32 1.0, %v993
        %v995 = vrcp.pop %v935
        %v996 = vmul.f32 %v935, %v995
        %v997 = vsub.f32 1.0, %v996
        %v998 = vmul.f32 %v995, %v997
        %v999 = vadd.f32 %v995, %v998
        %vm1000 = vweird.f32 %v935
        %vm1001 = vweird.f32 %v995
        %vm1002 = vmor %vm1000, %vm1001
        %v1003 = vsel %vm1002, %v995, %v999
        %v1004 = vand.u32 2147483647, %v935
        %vm1005 = vcmp.eq.f32.partialorder %v1004, 8.507059e+37
        %v1006 = vand.u32 %v935, 2147483648
        %v1007 = vor.u32 1.1754944e-38, %v1006
        %v1008 = vsel %vm1005, %v1007, %v1003
        %v1009 = vmul.f32 1.0, %v1008
        %v1010 = vrcp.pop %v936
        %v1011 = vmul.f32 %v936, %v1010
        %v1012 = vsub.f32 1.0, %v1011
        %v1013 = vmul.f32 %v1010, %v1012
        %v1014 = vadd.f32 %v1010, %v1013
        %vm1015 = vweird.f32 %v936
        %vm1016 = vweird.f32 %v1010
        %vm1017 = vmor %vm1015, %vm1016
        %v1018 = vsel %vm1017, %v1010, %v1014
        %v1019 = vand.u32 2147483647, %v936
        %vm1020 = vcmp.eq.f32.partialorder %v1019, 8.507059e+37
        %v1021 = vand.u32 %v936, 2147483648
        %v1022 = vor.u32 1.1754944e-38, %v1021
        %v1023 = vsel %vm1020, %v1022, %v1018
        %v1024 = vmul.f32 1.0, %v1023
        %v1025 = vrcp.pop %v937
        %v1026 = vmul.f32 %v937, %v1025
        %v1027 = vsub.f32 1.0, %v1026
        %v1028 = vmul.f32 %v1025, %v1027
        %v1029 = vadd.f32 %v1025, %v1028
        %vm1030 = vweird.f32 %v937
        %vm1031 = vweird.f32 %v1025
        %vm1032 = vmor %vm1030, %vm1031
        %v1033 = vsel %vm1032, %v1025, %v1029
        %v1034 = vand.u32 2147483647, %v937
        %vm1035 = vcmp.eq.f32.partialorder %v1034, 8.507059e+37
        %v1036 = vand.u32 %v937, 2147483648
        %v1037 = vor.u32 1.1754944e-38, %v1036
        %v1038 = vsel %vm1035, %v1037, %v1033
        %v1039 = vmul.f32 1.0, %v1038
        %v1040 = vrcp.pop %v938
        %v1041 = vmul.f32 %v938, %v1040
        %v1042 = vsub.f32 1.0, %v1041
        %v1043 = vmul.f32 %v1040, %v1042
        %v1044 = vadd.f32 %v1040, %v1043
        %vm1045 = vweird.f32 %v938
        %vm1046 = vweird.f32 %v1040
        %vm1047 = vmor %vm1045, %vm1046
        %v1048 = vsel %vm1047, %v1040, %v1044
        %v1049 = vand.u32 2147483647, %v938
        %vm1050 = vcmp.eq.f32.partialorder %v1049, 8.507059e+37
        %v1051 = vand.u32 %v938, 2147483648
        %v1052 = vor.u32 1.1754944e-38, %v1051
        %v1053 = vsel %vm1050, %v1052, %v1048
        %v1054 = vmul.f32 1.0, %v1053
        %v1055 = vrcp.pop %v939
        %v1056 = vmul.f32 %v939, %v1055
        %v1057 = vsub.f32 1.0, %v1056
        %v1058 = vmul.f32 %v1055, %v1057
        %v1059 = vadd.f32 %v1055, %v1058
        %vm1060 = vweird.f32 %v939
        %vm1061 = vweird.f32 %v1055
        %vm1062 = vmor %vm1060, %vm1061
        %v1063 = vsel %vm1062, %v1055, %v1059
        %v1064 = vand.u32 2147483647, %v939
        %vm1065 = vcmp.eq.f32.partialorder %v1064, 8.507059e+37
        %v1066 = vand.u32 %v939, 2147483648
        %v1067 = vor.u32 1.1754944e-38, %v1066
        %v1068 = vsel %vm1065, %v1067, %v1063
        %v1069 = vmul.f32 1.0, %v1068
        %v1070 = vrcp.pop %v940
        %v1071 = vmul.f32 %v940, %v1070
        %v1072 = vsub.f32 1.0, %v1071
        %v1073 = vmul.f32 %v1070, %v1072
        %v1074 = vadd.f32 %v1070, %v1073
        %vm1075 = vweird.f32 %v940
        %vm1076 = vweird.f32 %v1070
        %vm1077 = vmor %vm1075, %vm1076
        %v1078 = vsel %vm1077, %v1070, %v1074
        %v1079 = vand.u32 2147483647, %v940
        %vm1080 = vcmp.eq.f32.partialorder %v1079, 8.507059e+37
        %v1081 = vand.u32 %v940, 2147483648
        %v1082 = vor.u32 1.1754944e-38, %v1081
        %v1083 = vsel %vm1080, %v1082, %v1078
        %v1084 = vmul.f32 1.0, %v1083
        %v1085 = vrcp.pop %v941
        %v1086 = vmul.f32 %v941, %v1085
        %v1087 = vsub.f32 1.0, %v1086
        %v1088 = vmul.f32 %v1085, %v1087
        %v1089 = vadd.f32 %v1085, %v1088
        %vm1090 = vweird.f32 %v941
        %vm1091 = vweird.f32 %v1085
        %vm1092 = vmor %vm1090, %vm1091
        %v1093 = vsel %vm1092, %v1085, %v1089
        %v1094 = vand.u32 2147483647, %v941
        %vm1095 = vcmp.eq.f32.partialorder %v1094, 8.507059e+37
        %v1096 = vand.u32 %v941, 2147483648
        %v1097 = vor.u32 1.1754944e-38, %v1096
        %v1098 = vsel %vm1095, %v1097, %v1093
        %v1099 = vmul.f32 1.0, %v1098
        %v1100 = vrcp.pop %v942
        %v1101 = vmul.f32 %v942, %v1100
        %v1102 = vsub.f32 1.0, %v1101
        %v1103 = vmul.f32 %v1100, %v1102
        %v1104 = vadd.f32 %v1100, %v1103
        %vm1105 = vweird.f32 %v942
        %vm1106 = vweird.f32 %v1100
        %vm1107 = vmor %vm1105, %vm1106
        %v1108 = vsel %vm1107, %v1100, %v1104
        %v1109 = vand.u32 2147483647, %v942
        %vm1110 = vcmp.eq.f32.partialorder %v1109, 8.507059e+37
        %v1111 = vand.u32 %v942, 2147483648
        %v1112 = vor.u32 1.1754944e-38, %v1111
        %v1113 = vsel %vm1110, %v1112, %v1108
        %v1114 = vmul.f32 1.0, %v1113
        %v1115 = vrcp.pop %v943
        %v1116 = vmul.f32 %v943, %v1115
        %v1117 = vsub.f32 1.0, %v1116
        %v1118 = vmul.f32 %v1115, %v1117
        %v1119 = vadd.f32 %v1115, %v1118
        %vm1120 = vweird.f32 %v943
        %vm1121 = vweird.f32 %v1115
        %vm1122 = vmor %vm1120, %vm1121
        %v1123 = vsel %vm1122, %v1115, %v1119
        %v1124 = vand.u32 2147483647, %v943
        %vm1125 = vcmp.eq.f32.partialorder %v1124, 8.507059e+37
        %v1126 = vand.u32 %v943, 2147483648
        %v1127 = vor.u32 1.1754944e-38, %v1126
        %v1128 = vsel %vm1125, %v1127, %v1123
        %v1129 = vmul.f32 1.0, %v1128
        %v1130 = vrcp.pop %v944
        %v1131 = vmul.f32 %v944, %v1130
        %v1132 = vsub.f32 1.0, %v1131
        %v1133 = vmul.f32 %v1130, %v1132
        %v1134 = vadd.f32 %v1130, %v1133
        %vm1135 = vweird.f32 %v944
        %vm1136 = vweird.f32 %v1130
        %vm1137 = vmor %vm1135, %vm1136
        %v1138 = vsel %vm1137, %v1130, %v1134
        %v1139 = vand.u32 2147483647, %v944
        %vm1140 = vcmp.eq.f32.partialorder %v1139, 8.507059e+37
        %v1141 = vand.u32 %v944, 2147483648
        %v1142 = vor.u32 1.1754944e-38, %v1141
        %v1143 = vsel %vm1140, %v1142, %v1138
        %v1144 = vmul.f32 1.0, %v1143
        %v1145 = vrcp.pop %v945
        %v1146 = vmul.f32 %v945, %v1145
        %v1147 = vsub.f32 1.0, %v1146
        %v1148 = vmul.f32 %v1145, %v1147
        %v1149 = vadd.f32 %v1145, %v1148
        %vm1150 = vweird.f32 %v945
        %vm1151 = vweird.f32 %v1145
        %vm1152 = vmor %vm1150, %vm1151
        %v1153 = vsel %vm1152, %v1145, %v1149
        %v1154 = vand.u32 2147483647, %v945
        %vm1155 = vcmp.eq.f32.partialorder %v1154, 8.507059e+37
        %v1156 = vand.u32 %v945, 2147483648
        %v1157 = vor.u32 1.1754944e-38, %v1156
        %v1158 = vsel %vm1155, %v1157, %v1153
        %v1159 = vmul.f32 1.0, %v1158
        %v1160 = vrcp.pop %v946
        %v1161 = vmul.f32 %v946, %v1160
        %v1162 = vsub.f32 1.0, %v1161
        %v1163 = vmul.f32 %v1160, %v1162
        %v1164 = vadd.f32 %v1160, %v1163
        %vm1165 = vweird.f32 %v946
        %vm1166 = vweird.f32 %v1160
        %vm1167 = vmor %vm1165, %vm1166
        %v1168 = vsel %vm1167, %v1160, %v1164
        %v1169 = vand.u32 2147483647, %v946
        %vm1170 = vcmp.eq.f32.partialorder %v1169, 8.507059e+37
        %v1171 = vand.u32 %v946, 2147483648
        %v1172 = vor.u32 1.1754944e-38, %v1171
        %v1173 = vsel %vm1170, %v1172, %v1168
        %v1174 = vmul.f32 1.0, %v1173
        %v1175 = vrcp.pop %v947
        %v1176 = vmul.f32 %v947, %v1175
        %v1177 = vsub.f32 1.0, %v1176
        %v1178 = vmul.f32 %v1175, %v1177
        %v1179 = vadd.f32 %v1175, %v1178
        %vm1180 = vweird.f32 %v947
        %vm1181 = vweird.f32 %v1175
        %vm1182 = vmor %vm1180, %vm1181
        %v1183 = vsel %vm1182, %v1175, %v1179
        %v1184 = vand.u32 2147483647, %v947
        %vm1185 = vcmp.eq.f32.partialorder %v1184, 8.507059e+37
        %v1186 = vand.u32 %v947, 2147483648
        %v1187 = vor.u32 1.1754944e-38, %v1186
        %v1188 = vsel %vm1185, %v1187, %v1183
        %v1189 = vmul.f32 1.0, %v1188
        %v1190 = vrcp.pop %v948
        %v1191 = vmul.f32 %v948, %v1190
        %v1192 = vsub.f32 1.0, %v1191
        %v1193 = vmul.f32 %v1190, %v1192
        %v1194 = vadd.f32 %v1190, %v1193
        %vm1195 = vweird.f32 %v948
        %vm1196 = vweird.f32 %v1190
        %vm1197 = vmor %vm1195, %vm1196
        %v1198 = vsel %vm1197, %v1190, %v1194
        %v1199 = vand.u32 2147483647, %v948
        %vm1200 = vcmp.eq.f32.partialorder %v1199, 8.507059e+37
        %v1201 = vand.u32 %v948, 2147483648
        %v1202 = vor.u32 1.1754944e-38, %v1201
        %v1203 = vsel %vm1200, %v1202, %v1198
        %v1204 = vmul.f32 1.0, %v1203
        %v1205 = vrcp.pop %v949
        %v1206 = vmul.f32 %v949, %v1205
        %v1207 = vsub.f32 1.0, %v1206
        %v1208 = vmul.f32 %v1205, %v1207
        %v1209 = vadd.f32 %v1205, %v1208
        %vm1210 = vweird.f32 %v949
        %vm1211 = vweird.f32 %v1205
        %vm1212 = vmor %vm1210, %vm1211
        %v1213 = vsel %vm1212, %v1205, %v1209
        %v1214 = vand.u32 2147483647, %v949
        %vm1215 = vcmp.eq.f32.partialorder %v1214, 8.507059e+37
        %v1216 = vand.u32 %v949, 2147483648
        %v1217 = vor.u32 1.1754944e-38, %v1216
        %v1218 = vsel %vm1215, %v1217, %v1213
        %v1219 = vmul.f32 1.0, %v1218
        %v1220 = vrcp.pop %v950
        %v1221 = vmul.f32 %v950, %v1220
        %v1222 = vsub.f32 1.0, %v1221
        %v1223 = vmul.f32 %v1220, %v1222
        %v1224 = vadd.f32 %v1220, %v1223
        %vm1225 = vweird.f32 %v950
        %vm1226 = vweird.f32 %v1220
        %vm1227 = vmor %vm1225, %vm1226
        %v1228 = vsel %vm1227, %v1220, %v1224
        %v1229 = vand.u32 2147483647, %v950
        %vm1230 = vcmp.eq.f32.partialorder %v1229, 8.507059e+37
        %v1231 = vand.u32 %v950, 2147483648
        %v1232 = vor.u32 1.1754944e-38, %v1231
        %v1233 = vsel %vm1230, %v1232, %v1228
        %v1234 = vmul.f32 1.0, %v1233
        %v1235 = vrcp.pop %v951
        %v1236 = vmul.f32 %v951, %v1235
        %v1237 = vsub.f32 1.0, %v1236
        %v1238 = vmul.f32 %v1235, %v1237
        %v1239 = vadd.f32 %v1235, %v1238
        %vm1240 = vweird.f32 %v951
        %vm1241 = vweird.f32 %v1235
        %vm1242 = vmor %vm1240, %vm1241
        %v1243 = vsel %vm1242, %v1235, %v1239
        %v1244 = vand.u32 2147483647, %v951
        %vm1245 = vcmp.eq.f32.partialorder %v1244, 8.507059e+37
        %v1246 = vand.u32 %v951, 2147483648
        %v1247 = vor.u32 1.1754944e-38, %v1246
        %v1248 = vsel %vm1245, %v1247, %v1243
        %v1249 = vmul.f32 1.0, %v1248
        %v1250 = vrcp.pop %v952
        %v1251 = vmul.f32 %v952, %v1250
        %v1252 = vsub.f32 1.0, %v1251
        %v1253 = vmul.f32 %v1250, %v1252
        %v1254 = vadd.f32 %v1250, %v1253
        %vm1255 = vweird.f32 %v952
        %vm1256 = vweird.f32 %v1250
        %vm1257 = vmor %vm1255, %vm1256
        %v1258 = vsel %vm1257, %v1250, %v1254
        %v1259 = vand.u32 2147483647, %v952
        %vm1260 = vcmp.eq.f32.partialorder %v1259, 8.507059e+37
        %v1261 = vand.u32 %v952, 2147483648
        %v1262 = vor.u32 1.1754944e-38, %v1261
        %v1263 = vsel %vm1260, %v1262, %v1258
        %v1264 = vmul.f32 1.0, %v1263
        %v1265 = vrcp.pop %v953
        %v1266 = vmul.f32 %v953, %v1265
        %v1267 = vsub.f32 1.0, %v1266
        %v1268 = vmul.f32 %v1265, %v1267
        %v1269 = vadd.f32 %v1265, %v1268
        %vm1270 = vweird.f32 %v953
        %vm1271 = vweird.f32 %v1265
        %vm1272 = vmor %vm1270, %vm1271
        %v1273 = vsel %vm1272, %v1265, %v1269
        %v1274 = vand.u32 2147483647, %v953
        %vm1275 = vcmp.eq.f32.partialorder %v1274, 8.507059e+37
        %v1276 = vand.u32 %v953, 2147483648
        %v1277 = vor.u32 1.1754944e-38, %v1276
        %v1278 = vsel %vm1275, %v1277, %v1273
        %v1279 = vmul.f32 1.0, %v1278
        %v1280 = vrcp.pop %v954
        %v1281 = vmul.f32 %v954, %v1280
        %v1282 = vsub.f32 1.0, %v1281
        %v1283 = vmul.f32 %v1280, %v1282
        %v1284 = vadd.f32 %v1280, %v1283
        %vm1285 = vweird.f32 %v954
        %vm1286 = vweird.f32 %v1280
        %vm1287 = vmor %vm1285, %vm1286
        %v1288 = vsel %vm1287, %v1280, %v1284
        %v1289 = vand.u32 2147483647, %v954
        %vm1290 = vcmp.eq.f32.partialorder %v1289, 8.507059e+37
        %v1291 = vand.u32 %v954, 2147483648
        %v1292 = vor.u32 1.1754944e-38, %v1291
        %v1293 = vsel %vm1290, %v1292, %v1288
        %v1294 = vmul.f32 1.0, %v1293
        %v1295 = vrcp.pop %v955
        %v1296 = vmul.f32 %v955, %v1295
        %v1297 = vsub.f32 1.0, %v1296
        %v1298 = vmul.f32 %v1295, %v1297
        %v1299 = vadd.f32 %v1295, %v1298
        %vm1300 = vweird.f32 %v955
        %vm1301 = vweird.f32 %v1295
        %vm1302 = vmor %vm1300, %vm1301
        %v1303 = vsel %vm1302, %v1295, %v1299
        %v1304 = vand.u32 2147483647, %v955
        %vm1305 = vcmp.eq.f32.partialorder %v1304, 8.507059e+37
        %v1306 = vand.u32 %v955, 2147483648
        %v1307 = vor.u32 1.1754944e-38, %v1306
        %v1308 = vsel %vm1305, %v1307, %v1303
        %v1309 = vmul.f32 1.0, %v1308
        %v1310 = vrcp.pop %v956
        %v1311 = vmul.f32 %v956, %v1310
        %v1312 = vsub.f32 1.0, %v1311
        %v1313 = vmul.f32 %v1310, %v1312
        %v1314 = vadd.f32 %v1310, %v1313
        %vm1315 = vweird.f32 %v956
        %vm1316 = vweird.f32 %v1310
        %vm1317 = vmor %vm1315, %vm1316
        %v1318 = vsel %vm1317, %v1310, %v1314
        %v1319 = vand.u32 2147483647, %v956
        %vm1320 = vcmp.eq.f32.partialorder %v1319, 8.507059e+37
        %v1321 = vand.u32 %v956, 2147483648
        %v1322 = vor.u32 1.1754944e-38, %v1321
        %v1323 = vsel %vm1320, %v1322, %v1318
        %v1324 = vmul.f32 1.0, %v1323
        %v1325 = vrcp.pop %v957
        %v1326 = vmul.f32 %v957, %v1325
        %v1327 = vsub.f32 1.0, %v1326
        %v1328 = vmul.f32 %v1325, %v1327
        %v1329 = vadd.f32 %v1325, %v1328
        %vm1330 = vweird.f32 %v957
        %vm1331 = vweird.f32 %v1325
        %vm1332 = vmor %vm1330, %vm1331
        %v1333 = vsel %vm1332, %v1325, %v1329
        %v1334 = vand.u32 2147483647, %v957
        %vm1335 = vcmp.eq.f32.partialorder %v1334, 8.507059e+37
        %v1336 = vand.u32 %v957, 2147483648
        %v1337 = vor.u32 1.1754944e-38, %v1336
        %v1338 = vsel %vm1335, %v1337, %v1333
        %v1339 = vmul.f32 1.0, %v1338
        %v1340 = vrcp.pop %v958
        %v1341 = vmul.f32 %v958, %v1340
        %v1342 = vsub.f32 1.0, %v1341
        %v1343 = vmul.f32 %v1340, %v1342
        %v1344 = vadd.f32 %v1340, %v1343
        %vm1345 = vweird.f32 %v958
        %vm1346 = vweird.f32 %v1340
        %vm1347 = vmor %vm1345, %vm1346
        %v1348 = vsel %vm1347, %v1340, %v1344
        %v1349 = vand.u32 2147483647, %v958
        %vm1350 = vcmp.eq.f32.partialorder %v1349, 8.507059e+37
        %v1351 = vand.u32 %v958, 2147483648
        %v1352 = vor.u32 1.1754944e-38, %v1351
        %v1353 = vsel %vm1350, %v1352, %v1348
        %v1354 = vmul.f32 1.0, %v1353
        %v1355 = vrcp.pop %v959
        %v1356 = vmul.f32 %v959, %v1355
        %v1357 = vsub.f32 1.0, %v1356
        %v1358 = vmul.f32 %v1355, %v1357
        %v1359 = vadd.f32 %v1355, %v1358
        %vm1360 = vweird.f32 %v959
        %vm1361 = vweird.f32 %v1355
        %vm1362 = vmor %vm1360, %vm1361
        %v1363 = vsel %vm1362, %v1355, %v1359
        %v1364 = vand.u32 2147483647, %v959
        %vm1365 = vcmp.eq.f32.partialorder %v1364, 8.507059e+37
        %v1366 = vand.u32 %v959, 2147483648
        %v1367 = vor.u32 1.1754944e-38, %v1366
        %v1368 = vsel %vm1365, %v1367, %v1363
        %v1369 = vmul.f32 1.0, %v1368
        %v1370 = vrcp.pop %v960
        %v1371 = vmul.f32 %v960, %v1370
        %v1372 = vsub.f32 1.0, %v1371
        %v1373 = vmul.f32 %v1370, %v1372
        %v1374 = vadd.f32 %v1370, %v1373
        %vm1375 = vweird.f32 %v960
        %vm1376 = vweird.f32 %v1370
        %vm1377 = vmor %vm1375, %vm1376
        %v1378 = vsel %vm1377, %v1370, %v1374
        %v1379 = vand.u32 2147483647, %v960
        %vm1380 = vcmp.eq.f32.partialorder %v1379, 8.507059e+37
        %v1381 = vand.u32 %v960, 2147483648
        %v1382 = vor.u32 1.1754944e-38, %v1381
        %v1383 = vsel %vm1380, %v1382, %v1378
        %v1384 = vmul.f32 1.0, %v1383
        %v1385 = vrcp.pop %v961
        %v1386 = vmul.f32 %v961, %v1385
        %v1387 = vsub.f32 1.0, %v1386
        %v1388 = vmul.f32 %v1385, %v1387
        %v1389 = vadd.f32 %v1385, %v1388
        %vm1390 = vweird.f32 %v961
        %vm1391 = vweird.f32 %v1385
        %vm1392 = vmor %vm1390, %vm1391
        %v1393 = vsel %vm1392, %v1385, %v1389
        %v1394 = vand.u32 2147483647, %v961
        %vm1395 = vcmp.eq.f32.partialorder %v1394, 8.507059e+37
        %v1396 = vand.u32 %v961, 2147483648
        %v1397 = vor.u32 1.1754944e-38, %v1396
        %v1398 = vsel %vm1395, %v1397, %v1393
        %v1399 = vmul.f32 1.0, %v1398
        %v1400 = vrcp.pop %v962
        %v1401 = vmul.f32 %v962, %v1400
        %v1402 = vsub.f32 1.0, %v1401
        %v1403 = vmul.f32 %v1400, %v1402
        %v1404 = vadd.f32 %v1400, %v1403
        %vm1405 = vweird.f32 %v962
        %vm1406 = vweird.f32 %v1400
        %vm1407 = vmor %vm1405, %vm1406
        %v1408 = vsel %vm1407, %v1400, %v1404
        %v1409 = vand.u32 2147483647, %v962
        %vm1410 = vcmp.eq.f32.partialorder %v1409, 8.507059e+37
        %v1411 = vand.u32 %v962, 2147483648
        %v1412 = vor.u32 1.1754944e-38, %v1411
        %v1413 = vsel %vm1410, %v1412, %v1408
        %v1414 = vmul.f32 1.0, %v1413
        %v1415 = vrcp.pop %v963
        %v1416 = vmul.f32 %v963, %v1415
        %v1417 = vsub.f32 1.0, %v1416
        %v1418 = vmul.f32 %v1415, %v1417
        %v1419 = vadd.f32 %v1415, %v1418
        %vm1420 = vweird.f32 %v963
        %vm1421 = vweird.f32 %v1415
        %vm1422 = vmor %vm1420, %vm1421
        %v1423 = vsel %vm1422, %v1415, %v1419
        %v1424 = vand.u32 2147483647, %v963
        %vm1425 = vcmp.eq.f32.partialorder %v1424, 8.507059e+37
        %v1426 = vand.u32 %v963, 2147483648
        %v1427 = vor.u32 1.1754944e-38, %v1426
        %v1428 = vsel %vm1425, %v1427, %v1423
        %v1429 = vmul.f32 1.0, %v1428
        %v1430 = vrcp.pop %v964
        %v1431 = vmul.f32 %v964, %v1430
        %v1432 = vsub.f32 1.0, %v1431
        %v1433 = vmul.f32 %v1430, %v1432
        %v1434 = vadd.f32 %v1430, %v1433
        %vm1435 = vweird.f32 %v964
        %vm1436 = vweird.f32 %v1430
        %vm1437 = vmor %vm1435, %vm1436
        %v1438 = vsel %vm1437, %v1430, %v1434
        %v1439 = vand.u32 2147483647, %v964
        %vm1440 = vcmp.eq.f32.partialorder %v1439, 8.507059e+37
        %v1441 = vand.u32 %v964, 2147483648
        %v1442 = vor.u32 1.1754944e-38, %v1441
        %v1443 = vsel %vm1440, %v1442, %v1438
        %v1444 = vmul.f32 1.0, %v1443
        %v1445 = vmul.f32 %v758, %v979
        %v1446 = vmul.f32 %v760, %v994
        %v1447 = vmul.f32 %v763, %v1009
        %v1448 = vmul.f32 %v765, %v1024
        %v1449 = vmul.f32 %v768, %v1039
        %v1450 = vmul.f32 %v770, %v1054
        %v1451 = vmul.f32 %v773, %v1069
        %v1452 = vmul.f32 %v775, %v1084
        %v1453 = vmul.f32 %v778, %v1099
        %v1454 = vmul.f32 %v780, %v1114
        %v1455 = vmul.f32 %v783, %v1129
        %v1456 = vmul.f32 %v785, %v1144
        %v1457 = vmul.f32 %v788, %v1159
        %v1458 = vmul.f32 %v790, %v1174
        %v1459 = vmul.f32 %v793, %v1189
        %v1460 = vmul.f32 %v795, %v1204
        %v1461 = vmul.f32 %v798, %v1219
        %v1462 = vmul.f32 %v800, %v1234
        %v1463 = vmul.f32 %v803, %v1249
        %v1464 = vmul.f32 %v805, %v1264
        %v1465 = vmul.f32 %v808, %v1279
        %v1466 = vmul.f32 %v810, %v1294
        %v1467 = vmul.f32 %v813, %v1309
        %v1468 = vmul.f32 %v815, %v1324
        %v1469 = vmul.f32 %v818, %v1339
        %v1470 = vmul.f32 %v820, %v1354
        %v1471 = vmul.f32 %v823, %v1369
        %v1472 = vmul.f32 %v825, %v1384
        %v1473 = vmul.f32 %v828, %v1399
        %v1474 = vmul.f32 %v830, %v1414
        %v1475 = vmul.f32 %v833, %v1429
        %v1476 = vmul.f32 %v835, %v1444
        %v1477 = vpack.c.bf16 %v1446, %v1445
        %v1478 = vpack.c.bf16 %v1448, %v1447
        %v1479 = vpack.c.bf16 %v1450, %v1449
        %v1480 = vpack.c.bf16 %v1452, %v1451
        %v1481 = vpack.c.bf16 %v1454, %v1453
        %v1482 = vpack.c.bf16 %v1456, %v1455
        %v1483 = vpack.c.bf16 %v1458, %v1457
        %v1484 = vpack.c.bf16 %v1460, %v1459
        %v1485 = vpack.c.bf16 %v1462, %v1461
        %v1486 = vpack.c.bf16 %v1464, %v1463
        %v1487 = vpack.c.bf16 %v1466, %v1465
        %v1488 = vpack.c.bf16 %v1468, %v1467
        %v1489 = vpack.c.bf16 %v1470, %v1469
        %v1490 = vpack.c.bf16 %v1472, %v1471
        %v1491 = vpack.c.bf16 %v1474, %v1473
        %v1492 = vpack.c.bf16 %v1476, %v1475
        %v1493 = vld [vmem:[#allocation8] sm:$0xf]
        %v1494 = vld [vmem:[#allocation8 + $0x4] sm:$0xf]
        %v1495 = vld [vmem:[#allocation8 + $0x8] sm:$0xf]
        %v1496 = vld [vmem:[#allocation8 + $0xc] sm:$0xf]
        %v1497 = vld [vmem:[#allocation8 + $0x10] sm:$0xf]
        %v1498 = vld [vmem:[#allocation8 + $0x14] sm:$0xf]
        %v1499 = vld [vmem:[#allocation8 + $0x18] sm:$0xf]
        %v1500 = vld [vmem:[#allocation8 + $0x1c] sm:$0xf]
        %v1501 = vld [vmem:[#allocation8 + $0x20] sm:$0xf]
        %v1502 = vld [vmem:[#allocation8 + $0x24] sm:$0xf]
        %v1503 = vld [vmem:[#allocation8 + $0x28] sm:$0xf]
        %v1504 = vld [vmem:[#allocation8 + $0x2c] sm:$0xf]
        %v1505 = vld [vmem:[#allocation8 + $0x30] sm:$0xf]
        %v1506 = vld [vmem:[#allocation8 + $0x34] sm:$0xf]
        %v1507 = vld [vmem:[#allocation8 + $0x38] sm:$0xf]
        %v1508 = vld [vmem:[#allocation8 + $0x3c] sm:$0xf]
        %v1509 = vld [vmem:[%s5] sm:$0x1]
        %v1511 = vperm.slane %v1509, 0
        %v1529 = vunpack.c.l.b16 %v1493
        %v1530 = vunpack.c.l.b16 %v1494
        %v1531 = vunpack.c.l.b16 %v1495
        %v1532 = vunpack.c.l.b16 %v1496
        %v1533 = vunpack.c.l.b16 %v1497
        %v1534 = vunpack.c.l.b16 %v1498
        %v1535 = vunpack.c.l.b16 %v1499
        %v1536 = vunpack.c.l.b16 %v1500
        %v1537 = vunpack.c.l.b16 %v1501
        %v1538 = vunpack.c.l.b16 %v1502
        %v1539 = vunpack.c.l.b16 %v1503
        %v1540 = vunpack.c.l.b16 %v1504
        %v1541 = vunpack.c.l.b16 %v1505
        %v1542 = vunpack.c.l.b16 %v1506
        %v1543 = vunpack.c.l.b16 %v1507
        %v1544 = vunpack.c.l.b16 %v1508
        %v1545 = vpack.c.b16 %v1530, %v1529
        %v1546 = vpack.c.b16 %v1532, %v1531
        %v1547 = vpack.c.b16 %v1534, %v1533
        %v1548 = vpack.c.b16 %v1536, %v1535
        %v1549 = vpack.c.b16 %v1538, %v1537
        %v1550 = vpack.c.b16 %v1540, %v1539
        %v1551 = vpack.c.b16 %v1542, %v1541
        %v1552 = vpack.c.b16 %v1544, %v1543
        %1561 = vmatpush.bf16.msra.mxu0 %v1552
        %1562 = vmatpush.bf16.msra.mxu0 %v1551
        %1563 = vmatpush.bf16.msra.mxu0 %v1550
        %1564 = vmatpush.bf16.msra.mxu0 %v1549
        %1565 = vmatpush.bf16.msra.mxu0 %v1548
        %1566 = vmatpush.bf16.msra.mxu0 %v1547
        %1567 = vmatpush.bf16.msra.mxu0 %v1546
        %1568 = vmatpush.bf16.msra.mxu0 %v1545
        %1569 = vmatmul.bf16.gmra.mxu0 %v1477
        %v1570 = vpop.f32.mrf.mxu0
        %v1571 = vadd.f32 %v1511, %v1570
        %v1572 = vpop.f32.mrf.mxu0
        %v1573 = vadd.f32 %v1511, %v1572
        %1574 = vmatmul.bf16.gmra.mxu0 %v1478
        %v1575 = vpop.f32.mrf.mxu0
        %v1576 = vadd.f32 %v1511, %v1575
        %v1577 = vpop.f32.mrf.mxu0
        %v1578 = vadd.f32 %v1511, %v1577
        %1579 = vmatmul.bf16.gmra.mxu0 %v1479
        %v1580 = vpop.f32.mrf.mxu0
        %v1581 = vadd.f32 %v1511, %v1580
        %v1582 = vpop.f32.mrf.mxu0
        %v1583 = vadd.f32 %v1511, %v1582
        %1584 = vmatmul.bf16.gmra.mxu0 %v1480
        %v1585 = vpop.f32.mrf.mxu0
        %v1586 = vadd.f32 %v1511, %v1585
        %v1587 = vpop.f32.mrf.mxu0
        %v1588 = vadd.f32 %v1511, %v1587
        %1589 = vmatmul.bf16.gmra.mxu0 %v1481
        %v1590 = vpop.f32.mrf.mxu0
        %v1591 = vadd.f32 %v1511, %v1590
        %v1592 = vpop.f32.mrf.mxu0
        %v1593 = vadd.f32 %v1511, %v1592
        %1594 = vmatmul.bf16.gmra.mxu0 %v1482
        %v1595 = vpop.f32.mrf.mxu0
        %v1596 = vadd.f32 %v1511, %v1595
        %v1597 = vpop.f32.mrf.mxu0
        %v1598 = vadd.f32 %v1511, %v1597
        %1599 = vmatmul.bf16.gmra.mxu0 %v1483
        %v1600 = vpop.f32.mrf.mxu0
        %v1601 = vadd.f32 %v1511, %v1600
        %v1602 = vpop.f32.mrf.mxu0
        %v1603 = vadd.f32 %v1511, %v1602
        %1604 = vmatmul.bf16.gmra.mxu0 %v1484
        %v1605 = vpop.f32.mrf.mxu0
        %v1606 = vadd.f32 %v1511, %v1605
        %v1607 = vpop.f32.mrf.mxu0
        %v1608 = vadd.f32 %v1511, %v1607
        %1609 = vmatmul.bf16.gmra.mxu0 %v1485
        %v1610 = vpop.f32.mrf.mxu0
        %v1611 = vadd.f32 %v1511, %v1610
        %v1612 = vpop.f32.mrf.mxu0
        %v1613 = vadd.f32 %v1511, %v1612
        %1614 = vmatmul.bf16.gmra.mxu0 %v1486
        %v1615 = vpop.f32.mrf.mxu0
        %v1616 = vadd.f32 %v1511, %v1615
        %v1617 = vpop.f32.mrf.mxu0
        %v1618 = vadd.f32 %v1511, %v1617
        %1619 = vmatmul.bf16.gmra.mxu0 %v1487
        %v1620 = vpop.f32.mrf.mxu0
        %v1621 = vadd.f32 %v1511, %v1620
        %v1622 = vpop.f32.mrf.mxu0
        %v1623 = vadd.f32 %v1511, %v1622
        %1624 = vmatmul.bf16.gmra.mxu0 %v1488
        %v1625 = vpop.f32.mrf.mxu0
        %v1626 = vadd.f32 %v1511, %v1625
        %v1627 = vpop.f32.mrf.mxu0
        %v1628 = vadd.f32 %v1511, %v1627
        %1629 = vmatmul.bf16.gmra.mxu0 %v1489
        %v1630 = vpop.f32.mrf.mxu0
        %v1631 = vadd.f32 %v1511, %v1630
        %v1632 = vpop.f32.mrf.mxu0
        %v1633 = vadd.f32 %v1511, %v1632
        %1634 = vmatmul.bf16.gmra.mxu0 %v1490
        %v1635 = vpop.f32.mrf.mxu0
        %v1636 = vadd.f32 %v1511, %v1635
        %v1637 = vpop.f32.mrf.mxu0
        %v1638 = vadd.f32 %v1511, %v1637
        %1639 = vmatmul.bf16.gmra.mxu0 %v1491
        %v1640 = vpop.f32.mrf.mxu0
        %v1641 = vadd.f32 %v1511, %v1640
        %v1642 = vpop.f32.mrf.mxu0
        %v1643 = vadd.f32 %v1511, %v1642
        %1644 = vmatmul.bf16.gmra.mxu0 %v1492
        %v1645 = vpop.f32.mrf.mxu0
        %v1646 = vadd.f32 %v1511, %v1645
        %v1647 = vpop.f32.mrf.mxu0
        %v1648 = vadd.f32 %v1511, %v1647
        %1649 = vdwg.mxu0
        %v1650 = vld [vmem:[%s548] sm:$0xf]
        %v1651 = vld [vmem:[%s548 + $0x4] sm:$0xf]
        %v1652 = vld [vmem:[%s548 + $0x8] sm:$0xf]
        %v1653 = vld [vmem:[%s548 + $0xc] sm:$0xf]
        %v1654 = vld [vmem:[%s548 + $0x10] sm:$0xf]
        %v1655 = vld [vmem:[%s548 + $0x14] sm:$0xf]
        %v1656 = vld [vmem:[%s548 + $0x18] sm:$0xf]
        %v1657 = vld [vmem:[%s548 + $0x1c] sm:$0xf]
        %v1658 = vld [vmem:[%s548 + $0x20] sm:$0xf]
        %v1659 = vld [vmem:[%s548 + $0x24] sm:$0xf]
        %v1660 = vld [vmem:[%s548 + $0x28] sm:$0xf]
        %v1661 = vld [vmem:[%s548 + $0x2c] sm:$0xf]
        %v1662 = vld [vmem:[%s548 + $0x30] sm:$0xf]
        %v1663 = vld [vmem:[%s548 + $0x34] sm:$0xf]
        %v1664 = vld [vmem:[%s548 + $0x38] sm:$0xf]
        %v1665 = vld [vmem:[%s548 + $0x3c] sm:$0xf]
        %v1666 = vld [vmem:[%s548 + $0x40] sm:$0xf]
        %v1667 = vld [vmem:[%s548 + $0x44] sm:$0xf]
        %v1668 = vld [vmem:[%s548 + $0x48] sm:$0xf]
        %v1669 = vld [vmem:[%s548 + $0x4c] sm:$0xf]
        %v1670 = vld [vmem:[%s548 + $0x50] sm:$0xf]
        %v1671 = vld [vmem:[%s548 + $0x54] sm:$0xf]
        %v1672 = vld [vmem:[%s548 + $0x58] sm:$0xf]
        %v1673 = vld [vmem:[%s548 + $0x5c] sm:$0xf]
        %v1674 = vld [vmem:[%s548 + $0x60] sm:$0xf]
        %v1675 = vld [vmem:[%s548 + $0x64] sm:$0xf]
        %v1676 = vld [vmem:[%s548 + $0x68] sm:$0xf]
        %v1677 = vld [vmem:[%s548 + $0x6c] sm:$0xf]
        %v1678 = vld [vmem:[%s548 + $0x70] sm:$0xf]
        %v1679 = vld [vmem:[%s548 + $0x74] sm:$0xf]
        %v1680 = vld [vmem:[%s548 + $0x78] sm:$0xf]
        %v1681 = vld [vmem:[%s548 + $0x7c] sm:$0xf]
        %v1682 = vld [vmem:[#allocation10] sm:$0xf]
        %v1683 = vld [vmem:[#allocation10 + $0x4] sm:$0xf]
        %v1684 = vld [vmem:[#allocation10 + $0x8] sm:$0xf]
        %v1685 = vld [vmem:[#allocation10 + $0xc] sm:$0xf]
        %v1686 = vld [vmem:[#allocation10 + $0x10] sm:$0xf]
        %v1687 = vld [vmem:[#allocation10 + $0x14] sm:$0xf]
        %v1688 = vld [vmem:[#allocation10 + $0x18] sm:$0xf]
        %v1689 = vld [vmem:[#allocation10 + $0x1c] sm:$0xf]
        %v1690 = vld [vmem:[#allocation10 + $0x20] sm:$0xf]
        %v1691 = vld [vmem:[#allocation10 + $0x24] sm:$0xf]
        %v1692 = vld [vmem:[#allocation10 + $0x28] sm:$0xf]
        %v1693 = vld [vmem:[#allocation10 + $0x2c] sm:$0xf]
        %v1694 = vld [vmem:[#allocation10 + $0x30] sm:$0xf]
        %v1695 = vld [vmem:[#allocation10 + $0x34] sm:$0xf]
        %v1696 = vld [vmem:[#allocation10 + $0x38] sm:$0xf]
        %v1697 = vld [vmem:[#allocation10 + $0x3c] sm:$0xf]
        %v1698 = vld [vmem:[%s7] sm:$0x1]
        %v1700 = vperm.slane %v1698, 0
        %v1734 = vunpack.c.l.b16 %v1650
        %v1735 = vunpack.c.l.b16 %v1651
        %v1736 = vunpack.c.l.b16 %v1652
        %v1737 = vunpack.c.l.b16 %v1653
        %v1738 = vunpack.c.l.b16 %v1654
        %v1739 = vunpack.c.l.b16 %v1655
        %v1740 = vunpack.c.l.b16 %v1656
        %v1741 = vunpack.c.l.b16 %v1657
        %v1742 = vunpack.c.l.b16 %v1658
        %v1743 = vunpack.c.l.b16 %v1659
        %v1744 = vunpack.c.l.b16 %v1660
        %v1745 = vunpack.c.l.b16 %v1661
        %v1746 = vunpack.c.l.b16 %v1662
        %v1747 = vunpack.c.l.b16 %v1663
        %v1748 = vunpack.c.l.b16 %v1664
        %v1749 = vunpack.c.l.b16 %v1665
        %v1750 = vunpack.c.l.b16 %v1666
        %v1751 = vunpack.c.l.b16 %v1667
        %v1752 = vunpack.c.l.b16 %v1668
        %v1753 = vunpack.c.l.b16 %v1669
        %v1754 = vunpack.c.l.b16 %v1670
        %v1755 = vunpack.c.l.b16 %v1671
        %v1756 = vunpack.c.l.b16 %v1672
        %v1757 = vunpack.c.l.b16 %v1673
        %v1758 = vunpack.c.l.b16 %v1674
        %v1759 = vunpack.c.l.b16 %v1675
        %v1760 = vunpack.c.l.b16 %v1676
        %v1761 = vunpack.c.l.b16 %v1677
        %v1762 = vunpack.c.l.b16 %v1678
        %v1763 = vunpack.c.l.b16 %v1679
        %v1764 = vunpack.c.l.b16 %v1680
        %v1765 = vunpack.c.l.b16 %v1681
        %v1766 = vpack.c.b16 %v1735, %v1734
        %v1767 = vpack.c.b16 %v1737, %v1736
        %v1768 = vpack.c.b16 %v1739, %v1738
        %v1769 = vpack.c.b16 %v1741, %v1740
        %v1770 = vpack.c.b16 %v1743, %v1742
        %v1771 = vpack.c.b16 %v1745, %v1744
        %v1772 = vpack.c.b16 %v1747, %v1746
        %v1773 = vpack.c.b16 %v1749, %v1748
        %v1774 = vpack.c.b16 %v1751, %v1750
        %v1775 = vpack.c.b16 %v1753, %v1752
        %v1776 = vpack.c.b16 %v1755, %v1754
        %v1777 = vpack.c.b16 %v1757, %v1756
        %v1778 = vpack.c.b16 %v1759, %v1758
        %v1779 = vpack.c.b16 %v1761, %v1760
        %v1780 = vpack.c.b16 %v1763, %v1762
        %v1781 = vpack.c.b16 %v1765, %v1764
        %v1814 = vunpack.c.l.b16 %v1682
        %v1815 = vunpack.c.l.b16 %v1683
        %v1816 = vunpack.c.l.b16 %v1684
        %v1817 = vunpack.c.l.b16 %v1685
        %v1818 = vunpack.c.l.b16 %v1686
        %v1819 = vunpack.c.l.b16 %v1687
        %v1820 = vunpack.c.l.b16 %v1688
        %v1821 = vunpack.c.l.b16 %v1689
        %v1822 = vunpack.c.l.b16 %v1690
        %v1823 = vunpack.c.l.b16 %v1691
        %v1824 = vunpack.c.l.b16 %v1692
        %v1825 = vunpack.c.l.b16 %v1693
        %v1826 = vunpack.c.l.b16 %v1694
        %v1827 = vunpack.c.l.b16 %v1695
        %v1828 = vunpack.c.l.b16 %v1696
        %v1829 = vunpack.c.l.b16 %v1697
        %v1830 = vpack.c.b16 %v1815, %v1814
        %v1831 = vpack.c.b16 %v1817, %v1816
        %v1832 = vpack.c.b16 %v1819, %v1818
        %v1833 = vpack.c.b16 %v1821, %v1820
        %v1834 = vpack.c.b16 %v1823, %v1822
        %v1835 = vpack.c.b16 %v1825, %v1824
        %v1836 = vpack.c.b16 %v1827, %v1826
        %v1837 = vpack.c.b16 %v1829, %v1828
        %1846 = vmatpush.bf16.msra.mxu0 %v1837
        %1847 = vmatpush.bf16.msra.mxu0 %v1836
        %1848 = vmatpush.bf16.msra.mxu0 %v1835
        %1849 = vmatpush.bf16.msra.mxu0 %v1834
        %1850 = vmatpush.bf16.msra.mxu0 %v1833
        %1851 = vmatpush.bf16.msra.mxu0 %v1832
        %1852 = vmatpush.bf16.msra.mxu0 %v1831
        %1853 = vmatpush.bf16.msra.mxu0 %v1830
        %1854 = vmatmul.bf16.gmra.mxu0 %v1766
        %v1855 = vpop.f32.mrf.mxu0
        %v1856 = vadd.f32 %v1700, %v1855
        %v1857 = vpop.f32.mrf.mxu0
        %v1858 = vadd.f32 %v1700, %v1857
        %1859 = vmatmul.bf16.gmra.mxu0 %v1767
        %v1860 = vpop.f32.mrf.mxu0
        %v1861 = vadd.f32 %v1700, %v1860
        %v1862 = vpop.f32.mrf.mxu0
        %v1863 = vadd.f32 %v1700, %v1862
        %1864 = vmatmul.bf16.gmra.mxu0 %v1768
        %v1865 = vpop.f32.mrf.mxu0
        %v1866 = vadd.f32 %v1700, %v1865
        %v1867 = vpop.f32.mrf.mxu0
        %v1868 = vadd.f32 %v1700, %v1867
        %1869 = vmatmul.bf16.gmra.mxu0 %v1769
        %v1870 = vpop.f32.mrf.mxu0
        %v1871 = vadd.f32 %v1700, %v1870
        %v1872 = vpop.f32.mrf.mxu0
        %v1873 = vadd.f32 %v1700, %v1872
        %1874 = vmatmul.bf16.gmra.mxu0 %v1770
        %v1875 = vpop.f32.mrf.mxu0
        %v1876 = vadd.f32 %v1700, %v1875
        %v1877 = vpop.f32.mrf.mxu0
        %v1878 = vadd.f32 %v1700, %v1877
        %1879 = vmatmul.bf16.gmra.mxu0 %v1771
        %v1880 = vpop.f32.mrf.mxu0
        %v1881 = vadd.f32 %v1700, %v1880
        %v1882 = vpop.f32.mrf.mxu0
        %v1883 = vadd.f32 %v1700, %v1882
        %1884 = vmatmul.bf16.gmra.mxu0 %v1772
        %v1885 = vpop.f32.mrf.mxu0
        %v1886 = vadd.f32 %v1700, %v1885
        %v1887 = vpop.f32.mrf.mxu0
        %v1888 = vadd.f32 %v1700, %v1887
        %1889 = vmatmul.bf16.gmra.mxu0 %v1773
        %v1890 = vpop.f32.mrf.mxu0
        %v1891 = vadd.f32 %v1700, %v1890
        %v1892 = vpop.f32.mrf.mxu0
        %v1893 = vadd.f32 %v1700, %v1892
        %1894 = vmatmul.bf16.gmra.mxu0 %v1774
        %v1895 = vpop.f32.mrf.mxu0
        %v1896 = vadd.f32 %v1700, %v1895
        %v1897 = vpop.f32.mrf.mxu0
        %v1898 = vadd.f32 %v1700, %v1897
        %1899 = vmatmul.bf16.gmra.mxu0 %v1775
        %v1900 = vpop.f32.mrf.mxu0
        %v1901 = vadd.f32 %v1700, %v1900
        %v1902 = vpop.f32.mrf.mxu0
        %v1903 = vadd.f32 %v1700, %v1902
        %1904 = vmatmul.bf16.gmra.mxu0 %v1776
        %v1905 = vpop.f32.mrf.mxu0
        %v1906 = vadd.f32 %v1700, %v1905
        %v1907 = vpop.f32.mrf.mxu0
        %v1908 = vadd.f32 %v1700, %v1907
        %1909 = vmatmul.bf16.gmra.mxu0 %v1777
        %v1910 = vpop.f32.mrf.mxu0
        %v1911 = vadd.f32 %v1700, %v1910
        %v1912 = vpop.f32.mrf.mxu0
        %v1913 = vadd.f32 %v1700, %v1912
        %1914 = vmatmul.bf16.gmra.mxu0 %v1778
        %v1915 = vpop.f32.mrf.mxu0
        %v1916 = vadd.f32 %v1700, %v1915
        %v1917 = vpop.f32.mrf.mxu0
        %v1918 = vadd.f32 %v1700, %v1917
        %1919 = vmatmul.bf16.gmra.mxu0 %v1779
        %v1920 = vpop.f32.mrf.mxu0
        %v1921 = vadd.f32 %v1700, %v1920
        %v1922 = vpop.f32.mrf.mxu0
        %v1923 = vadd.f32 %v1700, %v1922
        %1924 = vmatmul.bf16.gmra.mxu0 %v1780
        %v1925 = vpop.f32.mrf.mxu0
        %v1926 = vadd.f32 %v1700, %v1925
        %v1927 = vpop.f32.mrf.mxu0
        %v1928 = vadd.f32 %v1700, %v1927
        %1929 = vmatmul.bf16.gmra.mxu0 %v1781
        %v1930 = vpop.f32.mrf.mxu0
        %v1931 = vadd.f32 %v1700, %v1930
        %v1932 = vpop.f32.mrf.mxu0
        %v1933 = vadd.f32 %v1700, %v1932
        %1934 = vdwg.mxu0
        %v1935 = vxor.u32 %v1856, 2147483648
        %v1936 = vxor.u32 %v1858, 2147483648
        %v1937 = vxor.u32 %v1861, 2147483648
        %v1938 = vxor.u32 %v1863, 2147483648
        %v1939 = vxor.u32 %v1866, 2147483648
        %v1940 = vxor.u32 %v1868, 2147483648
        %v1941 = vxor.u32 %v1871, 2147483648
        %v1942 = vxor.u32 %v1873, 2147483648
        %v1943 = vxor.u32 %v1876, 2147483648
        %v1944 = vxor.u32 %v1878, 2147483648
        %v1945 = vxor.u32 %v1881, 2147483648
        %v1946 = vxor.u32 %v1883, 2147483648
        %v1947 = vxor.u32 %v1886, 2147483648
        %v1948 = vxor.u32 %v1888, 2147483648
        %v1949 = vxor.u32 %v1891, 2147483648
        %v1950 = vxor.u32 %v1893, 2147483648
        %v1951 = vxor.u32 %v1896, 2147483648
        %v1952 = vxor.u32 %v1898, 2147483648
        %v1953 = vxor.u32 %v1901, 2147483648
        %v1954 = vxor.u32 %v1903, 2147483648
        %v1955 = vxor.u32 %v1906, 2147483648
        %v1956 = vxor.u32 %v1908, 2147483648
        %v1957 = vxor.u32 %v1911, 2147483648
        %v1958 = vxor.u32 %v1913, 2147483648
        %v1959 = vxor.u32 %v1916, 2147483648
        %v1960 = vxor.u32 %v1918, 2147483648
        %v1961 = vxor.u32 %v1921, 2147483648
        %v1962 = vxor.u32 %v1923, 2147483648
        %v1963 = vxor.u32 %v1926, 2147483648
        %v1964 = vxor.u32 %v1928, 2147483648
        %v1965 = vxor.u32 %v1931, 2147483648
        %v1966 = vxor.u32 %v1933, 2147483648
        %v1967 = vmul.f32 %v1935, 1.442695
        %v1968 = vpow.pop %v1967
        %v1969 = vmul.f32 %v1936, 1.442695
        %v1970 = vpow.pop %v1969
        %v1971 = vmul.f32 %v1937, 1.442695
        %v1972 = vpow.pop %v1971
        %v1973 = vmul.f32 %v1938, 1.442695
        %v1974 = vpow.pop %v1973
        %v1975 = vmul.f32 %v1939, 1.442695
        %v1976 = vpow.pop %v1975
        %v1977 = vmul.f32 %v1940, 1.442695
        %v1978 = vpow.pop %v1977
        %v1979 = vmul.f32 %v1941, 1.442695
        %v1980 = vpow.pop %v1979
        %v1981 = vmul.f32 %v1942, 1.442695
        %v1982 = vpow.pop %v1981
        %v1983 = vmul.f32 %v1943, 1.442695
        %v1984 = vpow.pop %v1983
        %v1985 = vmul.f32 %v1944, 1.442695
        %v1986 = vpow.pop %v1985
        %v1987 = vmul.f32 %v1945, 1.442695
        %v1988 = vpow.pop %v1987
        %v1989 = vmul.f32 %v1946, 1.442695
        %v1990 = vpow.pop %v1989
        %v1991 = vmul.f32 %v1947, 1.442695
        %v1992 = vpow.pop %v1991
        %v1993 = vmul.f32 %v1948, 1.442695
        %v1994 = vpow.pop %v1993
        %v1995 = vmul.f32 %v1949, 1.442695
        %v1996 = vpow.pop %v1995
        %v1997 = vmul.f32 %v1950, 1.442695
        %v1998 = vpow.pop %v1997
        %v1999 = vmul.f32 %v1951, 1.442695
        %v2000 = vpow.pop %v1999
        %v2001 = vmul.f32 %v1952, 1.442695
        %v2002 = vpow.pop %v2001
        %v2003 = vmul.f32 %v1953, 1.442695
        %v2004 = vpow.pop %v2003
        %v2005 = vmul.f32 %v1954, 1.442695
        %v2006 = vpow.pop %v2005
        %v2007 = vmul.f32 %v1955, 1.442695
        %v2008 = vpow.pop %v2007
        %v2009 = vmul.f32 %v1956, 1.442695
        %v2010 = vpow.pop %v2009
        %v2011 = vmul.f32 %v1957, 1.442695
        %v2012 = vpow.pop %v2011
        %v2013 = vmul.f32 %v1958, 1.442695
        %v2014 = vpow.pop %v2013
        %v2015 = vmul.f32 %v1959, 1.442695
        %v2016 = vpow.pop %v2015
        %v2017 = vmul.f32 %v1960, 1.442695
        %v2018 = vpow.pop %v2017
        %v2019 = vmul.f32 %v1961, 1.442695
        %v2020 = vpow.pop %v2019
        %v2021 = vmul.f32 %v1962, 1.442695
        %v2022 = vpow.pop %v2021
        %v2023 = vmul.f32 %v1963, 1.442695
        %v2024 = vpow.pop %v2023
        %v2025 = vmul.f32 %v1964, 1.442695
        %v2026 = vpow.pop %v2025
        %v2027 = vmul.f32 %v1965, 1.442695
        %v2028 = vpow.pop %v2027
        %v2029 = vmul.f32 %v1966, 1.442695
        %v2030 = vpow.pop %v2029
        %v2031 = vadd.f32 %v1968, 1.0
        %v2032 = vadd.f32 %v1970, 1.0
        %v2033 = vadd.f32 %v1972, 1.0
        %v2034 = vadd.f32 %v1974, 1.0
        %v2035 = vadd.f32 %v1976, 1.0
        %v2036 = vadd.f32 %v1978, 1.0
        %v2037 = vadd.f32 %v1980, 1.0
        %v2038 = vadd.f32 %v1982, 1.0
        %v2039 = vadd.f32 %v1984, 1.0
        %v2040 = vadd.f32 %v1986, 1.0
        %v2041 = vadd.f32 %v1988, 1.0
        %v2042 = vadd.f32 %v1990, 1.0
        %v2043 = vadd.f32 %v1992, 1.0
        %v2044 = vadd.f32 %v1994, 1.0
        %v2045 = vadd.f32 %v1996, 1.0
        %v2046 = vadd.f32 %v1998, 1.0
        %v2047 = vadd.f32 %v2000, 1.0
        %v2048 = vadd.f32 %v2002, 1.0
        %v2049 = vadd.f32 %v2004, 1.0
        %v2050 = vadd.f32 %v2006, 1.0
        %v2051 = vadd.f32 %v2008, 1.0
        %v2052 = vadd.f32 %v2010, 1.0
        %v2053 = vadd.f32 %v2012, 1.0
        %v2054 = vadd.f32 %v2014, 1.0
        %v2055 = vadd.f32 %v2016, 1.0
        %v2056 = vadd.f32 %v2018, 1.0
        %v2057 = vadd.f32 %v2020, 1.0
        %v2058 = vadd.f32 %v2022, 1.0
        %v2059 = vadd.f32 %v2024, 1.0
        %v2060 = vadd.f32 %v2026, 1.0
        %v2061 = vadd.f32 %v2028, 1.0
        %v2062 = vadd.f32 %v2030, 1.0
        %v2063 = vrcp.pop %v2031
        %v2064 = vmul.f32 %v2031, %v2063
        %v2065 = vsub.f32 1.0, %v2064
        %v2066 = vmul.f32 %v2063, %v2065
        %v2067 = vadd.f32 %v2063, %v2066
        %vm2068 = vweird.f32 %v2031
        %vm2069 = vweird.f32 %v2063
        %vm2070 = vmor %vm2068, %vm2069
        %v2071 = vsel %vm2070, %v2063, %v2067
        %v2072 = vand.u32 2147483647, %v2031
        %vm2073 = vcmp.eq.f32.partialorder %v2072, 8.507059e+37
        %v2074 = vand.u32 %v2031, 2147483648
        %v2075 = vor.u32 1.1754944e-38, %v2074
        %v2076 = vsel %vm2073, %v2075, %v2071
        %v2077 = vmul.f32 1.0, %v2076
        %v2078 = vrcp.pop %v2032
        %v2079 = vmul.f32 %v2032, %v2078
        %v2080 = vsub.f32 1.0, %v2079
        %v2081 = vmul.f32 %v2078, %v2080
        %v2082 = vadd.f32 %v2078, %v2081
        %vm2083 = vweird.f32 %v2032
        %vm2084 = vweird.f32 %v2078
        %vm2085 = vmor %vm2083, %vm2084
        %v2086 = vsel %vm2085, %v2078, %v2082
        %v2087 = vand.u32 2147483647, %v2032
        %vm2088 = vcmp.eq.f32.partialorder %v2087, 8.507059e+37
        %v2089 = vand.u32 %v2032, 2147483648
        %v2090 = vor.u32 1.1754944e-38, %v2089
        %v2091 = vsel %vm2088, %v2090, %v2086
        %v2092 = vmul.f32 1.0, %v2091
        %v2093 = vrcp.pop %v2033
        %v2094 = vmul.f32 %v2033, %v2093
        %v2095 = vsub.f32 1.0, %v2094
        %v2096 = vmul.f32 %v2093, %v2095
        %v2097 = vadd.f32 %v2093, %v2096
        %vm2098 = vweird.f32 %v2033
        %vm2099 = vweird.f32 %v2093
        %vm2100 = vmor %vm2098, %vm2099
        %v2101 = vsel %vm2100, %v2093, %v2097
        %v2102 = vand.u32 2147483647, %v2033
        %vm2103 = vcmp.eq.f32.partialorder %v2102, 8.507059e+37
        %v2104 = vand.u32 %v2033, 2147483648
        %v2105 = vor.u32 1.1754944e-38, %v2104
        %v2106 = vsel %vm2103, %v2105, %v2101
        %v2107 = vmul.f32 1.0, %v2106
        %v2108 = vrcp.pop %v2034
        %v2109 = vmul.f32 %v2034, %v2108
        %v2110 = vsub.f32 1.0, %v2109
        %v2111 = vmul.f32 %v2108, %v2110
        %v2112 = vadd.f32 %v2108, %v2111
        %vm2113 = vweird.f32 %v2034
        %vm2114 = vweird.f32 %v2108
        %vm2115 = vmor %vm2113, %vm2114
        %v2116 = vsel %vm2115, %v2108, %v2112
        %v2117 = vand.u32 2147483647, %v2034
        %vm2118 = vcmp.eq.f32.partialorder %v2117, 8.507059e+37
        %v2119 = vand.u32 %v2034, 2147483648
        %v2120 = vor.u32 1.1754944e-38, %v2119
        %v2121 = vsel %vm2118, %v2120, %v2116
        %v2122 = vmul.f32 1.0, %v2121
        %v2123 = vrcp.pop %v2035
        %v2124 = vmul.f32 %v2035, %v2123
        %v2125 = vsub.f32 1.0, %v2124
        %v2126 = vmul.f32 %v2123, %v2125
        %v2127 = vadd.f32 %v2123, %v2126
        %vm2128 = vweird.f32 %v2035
        %vm2129 = vweird.f32 %v2123
        %vm2130 = vmor %vm2128, %vm2129
        %v2131 = vsel %vm2130, %v2123, %v2127
        %v2132 = vand.u32 2147483647, %v2035
        %vm2133 = vcmp.eq.f32.partialorder %v2132, 8.507059e+37
        %v2134 = vand.u32 %v2035, 2147483648
        %v2135 = vor.u32 1.1754944e-38, %v2134
        %v2136 = vsel %vm2133, %v2135, %v2131
        %v2137 = vmul.f32 1.0, %v2136
        %v2138 = vrcp.pop %v2036
        %v2139 = vmul.f32 %v2036, %v2138
        %v2140 = vsub.f32 1.0, %v2139
        %v2141 = vmul.f32 %v2138, %v2140
        %v2142 = vadd.f32 %v2138, %v2141
        %vm2143 = vweird.f32 %v2036
        %vm2144 = vweird.f32 %v2138
        %vm2145 = vmor %vm2143, %vm2144
        %v2146 = vsel %vm2145, %v2138, %v2142
        %v2147 = vand.u32 2147483647, %v2036
        %vm2148 = vcmp.eq.f32.partialorder %v2147, 8.507059e+37
        %v2149 = vand.u32 %v2036, 2147483648
        %v2150 = vor.u32 1.1754944e-38, %v2149
        %v2151 = vsel %vm2148, %v2150, %v2146
        %v2152 = vmul.f32 1.0, %v2151
        %v2153 = vrcp.pop %v2037
        %v2154 = vmul.f32 %v2037, %v2153
        %v2155 = vsub.f32 1.0, %v2154
        %v2156 = vmul.f32 %v2153, %v2155
        %v2157 = vadd.f32 %v2153, %v2156
        %vm2158 = vweird.f32 %v2037
        %vm2159 = vweird.f32 %v2153
        %vm2160 = vmor %vm2158, %vm2159
        %v2161 = vsel %vm2160, %v2153, %v2157
        %v2162 = vand.u32 2147483647, %v2037
        %vm2163 = vcmp.eq.f32.partialorder %v2162, 8.507059e+37
        %v2164 = vand.u32 %v2037, 2147483648
        %v2165 = vor.u32 1.1754944e-38, %v2164
        %v2166 = vsel %vm2163, %v2165, %v2161
        %v2167 = vmul.f32 1.0, %v2166
        %v2168 = vrcp.pop %v2038
        %v2169 = vmul.f32 %v2038, %v2168
        %v2170 = vsub.f32 1.0, %v2169
        %v2171 = vmul.f32 %v2168, %v2170
        %v2172 = vadd.f32 %v2168, %v2171
        %vm2173 = vweird.f32 %v2038
        %vm2174 = vweird.f32 %v2168
        %vm2175 = vmor %vm2173, %vm2174
        %v2176 = vsel %vm2175, %v2168, %v2172
        %v2177 = vand.u32 2147483647, %v2038
        %vm2178 = vcmp.eq.f32.partialorder %v2177, 8.507059e+37
        %v2179 = vand.u32 %v2038, 2147483648
        %v2180 = vor.u32 1.1754944e-38, %v2179
        %v2181 = vsel %vm2178, %v2180, %v2176
        %v2182 = vmul.f32 1.0, %v2181
        %v2183 = vrcp.pop %v2039
        %v2184 = vmul.f32 %v2039, %v2183
        %v2185 = vsub.f32 1.0, %v2184
        %v2186 = vmul.f32 %v2183, %v2185
        %v2187 = vadd.f32 %v2183, %v2186
        %vm2188 = vweird.f32 %v2039
        %vm2189 = vweird.f32 %v2183
        %vm2190 = vmor %vm2188, %vm2189
        %v2191 = vsel %vm2190, %v2183, %v2187
        %v2192 = vand.u32 2147483647, %v2039
        %vm2193 = vcmp.eq.f32.partialorder %v2192, 8.507059e+37
        %v2194 = vand.u32 %v2039, 2147483648
        %v2195 = vor.u32 1.1754944e-38, %v2194
        %v2196 = vsel %vm2193, %v2195, %v2191
        %v2197 = vmul.f32 1.0, %v2196
        %v2198 = vrcp.pop %v2040
        %v2199 = vmul.f32 %v2040, %v2198
        %v2200 = vsub.f32 1.0, %v2199
        %v2201 = vmul.f32 %v2198, %v2200
        %v2202 = vadd.f32 %v2198, %v2201
        %vm2203 = vweird.f32 %v2040
        %vm2204 = vweird.f32 %v2198
        %vm2205 = vmor %vm2203, %vm2204
        %v2206 = vsel %vm2205, %v2198, %v2202
        %v2207 = vand.u32 2147483647, %v2040
        %vm2208 = vcmp.eq.f32.partialorder %v2207, 8.507059e+37
        %v2209 = vand.u32 %v2040, 2147483648
        %v2210 = vor.u32 1.1754944e-38, %v2209
        %v2211 = vsel %vm2208, %v2210, %v2206
        %v2212 = vmul.f32 1.0, %v2211
        %v2213 = vrcp.pop %v2041
        %v2214 = vmul.f32 %v2041, %v2213
        %v2215 = vsub.f32 1.0, %v2214
        %v2216 = vmul.f32 %v2213, %v2215
        %v2217 = vadd.f32 %v2213, %v2216
        %vm2218 = vweird.f32 %v2041
        %vm2219 = vweird.f32 %v2213
        %vm2220 = vmor %vm2218, %vm2219
        %v2221 = vsel %vm2220, %v2213, %v2217
        %v2222 = vand.u32 2147483647, %v2041
        %vm2223 = vcmp.eq.f32.partialorder %v2222, 8.507059e+37
        %v2224 = vand.u32 %v2041, 2147483648
        %v2225 = vor.u32 1.1754944e-38, %v2224
        %v2226 = vsel %vm2223, %v2225, %v2221
        %v2227 = vmul.f32 1.0, %v2226
        %v2228 = vrcp.pop %v2042
        %v2229 = vmul.f32 %v2042, %v2228
        %v2230 = vsub.f32 1.0, %v2229
        %v2231 = vmul.f32 %v2228, %v2230
        %v2232 = vadd.f32 %v2228, %v2231
        %vm2233 = vweird.f32 %v2042
        %vm2234 = vweird.f32 %v2228
        %vm2235 = vmor %vm2233, %vm2234
        %v2236 = vsel %vm2235, %v2228, %v2232
        %v2237 = vand.u32 2147483647, %v2042
        %vm2238 = vcmp.eq.f32.partialorder %v2237, 8.507059e+37
        %v2239 = vand.u32 %v2042, 2147483648
        %v2240 = vor.u32 1.1754944e-38, %v2239
        %v2241 = vsel %vm2238, %v2240, %v2236
        %v2242 = vmul.f32 1.0, %v2241
        %v2243 = vrcp.pop %v2043
        %v2244 = vmul.f32 %v2043, %v2243
        %v2245 = vsub.f32 1.0, %v2244
        %v2246 = vmul.f32 %v2243, %v2245
        %v2247 = vadd.f32 %v2243, %v2246
        %vm2248 = vweird.f32 %v2043
        %vm2249 = vweird.f32 %v2243
        %vm2250 = vmor %vm2248, %vm2249
        %v2251 = vsel %vm2250, %v2243, %v2247
        %v2252 = vand.u32 2147483647, %v2043
        %vm2253 = vcmp.eq.f32.partialorder %v2252, 8.507059e+37
        %v2254 = vand.u32 %v2043, 2147483648
        %v2255 = vor.u32 1.1754944e-38, %v2254
        %v2256 = vsel %vm2253, %v2255, %v2251
        %v2257 = vmul.f32 1.0, %v2256
        %v2258 = vrcp.pop %v2044
        %v2259 = vmul.f32 %v2044, %v2258
        %v2260 = vsub.f32 1.0, %v2259
        %v2261 = vmul.f32 %v2258, %v2260
        %v2262 = vadd.f32 %v2258, %v2261
        %vm2263 = vweird.f32 %v2044
        %vm2264 = vweird.f32 %v2258
        %vm2265 = vmor %vm2263, %vm2264
        %v2266 = vsel %vm2265, %v2258, %v2262
        %v2267 = vand.u32 2147483647, %v2044
        %vm2268 = vcmp.eq.f32.partialorder %v2267, 8.507059e+37
        %v2269 = vand.u32 %v2044, 2147483648
        %v2270 = vor.u32 1.1754944e-38, %v2269
        %v2271 = vsel %vm2268, %v2270, %v2266
        %v2272 = vmul.f32 1.0, %v2271
        %v2273 = vrcp.pop %v2045
        %v2274 = vmul.f32 %v2045, %v2273
        %v2275 = vsub.f32 1.0, %v2274
        %v2276 = vmul.f32 %v2273, %v2275
        %v2277 = vadd.f32 %v2273, %v2276
        %vm2278 = vweird.f32 %v2045
        %vm2279 = vweird.f32 %v2273
        %vm2280 = vmor %vm2278, %vm2279
        %v2281 = vsel %vm2280, %v2273, %v2277
        %v2282 = vand.u32 2147483647, %v2045
        %vm2283 = vcmp.eq.f32.partialorder %v2282, 8.507059e+37
        %v2284 = vand.u32 %v2045, 2147483648
        %v2285 = vor.u32 1.1754944e-38, %v2284
        %v2286 = vsel %vm2283, %v2285, %v2281
        %v2287 = vmul.f32 1.0, %v2286
        %v2288 = vrcp.pop %v2046
        %v2289 = vmul.f32 %v2046, %v2288
        %v2290 = vsub.f32 1.0, %v2289
        %v2291 = vmul.f32 %v2288, %v2290
        %v2292 = vadd.f32 %v2288, %v2291
        %vm2293 = vweird.f32 %v2046
        %vm2294 = vweird.f32 %v2288
        %vm2295 = vmor %vm2293, %vm2294
        %v2296 = vsel %vm2295, %v2288, %v2292
        %v2297 = vand.u32 2147483647, %v2046
        %vm2298 = vcmp.eq.f32.partialorder %v2297, 8.507059e+37
        %v2299 = vand.u32 %v2046, 2147483648
        %v2300 = vor.u32 1.1754944e-38, %v2299
        %v2301 = vsel %vm2298, %v2300, %v2296
        %v2302 = vmul.f32 1.0, %v2301
        %v2303 = vrcp.pop %v2047
        %v2304 = vmul.f32 %v2047, %v2303
        %v2305 = vsub.f32 1.0, %v2304
        %v2306 = vmul.f32 %v2303, %v2305
        %v2307 = vadd.f32 %v2303, %v2306
        %vm2308 = vweird.f32 %v2047
        %vm2309 = vweird.f32 %v2303
        %vm2310 = vmor %vm2308, %vm2309
        %v2311 = vsel %vm2310, %v2303, %v2307
        %v2312 = vand.u32 2147483647, %v2047
        %vm2313 = vcmp.eq.f32.partialorder %v2312, 8.507059e+37
        %v2314 = vand.u32 %v2047, 2147483648
        %v2315 = vor.u32 1.1754944e-38, %v2314
        %v2316 = vsel %vm2313, %v2315, %v2311
        %v2317 = vmul.f32 1.0, %v2316
        %v2318 = vrcp.pop %v2048
        %v2319 = vmul.f32 %v2048, %v2318
        %v2320 = vsub.f32 1.0, %v2319
        %v2321 = vmul.f32 %v2318, %v2320
        %v2322 = vadd.f32 %v2318, %v2321
        %vm2323 = vweird.f32 %v2048
        %vm2324 = vweird.f32 %v2318
        %vm2325 = vmor %vm2323, %vm2324
        %v2326 = vsel %vm2325, %v2318, %v2322
        %v2327 = vand.u32 2147483647, %v2048
        %vm2328 = vcmp.eq.f32.partialorder %v2327, 8.507059e+37
        %v2329 = vand.u32 %v2048, 2147483648
        %v2330 = vor.u32 1.1754944e-38, %v2329
        %v2331 = vsel %vm2328, %v2330, %v2326
        %v2332 = vmul.f32 1.0, %v2331
        %v2333 = vrcp.pop %v2049
        %v2334 = vmul.f32 %v2049, %v2333
        %v2335 = vsub.f32 1.0, %v2334
        %v2336 = vmul.f32 %v2333, %v2335
        %v2337 = vadd.f32 %v2333, %v2336
        %vm2338 = vweird.f32 %v2049
        %vm2339 = vweird.f32 %v2333
        %vm2340 = vmor %vm2338, %vm2339
        %v2341 = vsel %vm2340, %v2333, %v2337
        %v2342 = vand.u32 2147483647, %v2049
        %vm2343 = vcmp.eq.f32.partialorder %v2342, 8.507059e+37
        %v2344 = vand.u32 %v2049, 2147483648
        %v2345 = vor.u32 1.1754944e-38, %v2344
        %v2346 = vsel %vm2343, %v2345, %v2341
        %v2347 = vmul.f32 1.0, %v2346
        %v2348 = vrcp.pop %v2050
        %v2349 = vmul.f32 %v2050, %v2348
        %v2350 = vsub.f32 1.0, %v2349
        %v2351 = vmul.f32 %v2348, %v2350
        %v2352 = vadd.f32 %v2348, %v2351
        %vm2353 = vweird.f32 %v2050
        %vm2354 = vweird.f32 %v2348
        %vm2355 = vmor %vm2353, %vm2354
        %v2356 = vsel %vm2355, %v2348, %v2352
        %v2357 = vand.u32 2147483647, %v2050
        %vm2358 = vcmp.eq.f32.partialorder %v2357, 8.507059e+37
        %v2359 = vand.u32 %v2050, 2147483648
        %v2360 = vor.u32 1.1754944e-38, %v2359
        %v2361 = vsel %vm2358, %v2360, %v2356
        %v2362 = vmul.f32 1.0, %v2361
        %v2363 = vrcp.pop %v2051
        %v2364 = vmul.f32 %v2051, %v2363
        %v2365 = vsub.f32 1.0, %v2364
        %v2366 = vmul.f32 %v2363, %v2365
        %v2367 = vadd.f32 %v2363, %v2366
        %vm2368 = vweird.f32 %v2051
        %vm2369 = vweird.f32 %v2363
        %vm2370 = vmor %vm2368, %vm2369
        %v2371 = vsel %vm2370, %v2363, %v2367
        %v2372 = vand.u32 2147483647, %v2051
        %vm2373 = vcmp.eq.f32.partialorder %v2372, 8.507059e+37
        %v2374 = vand.u32 %v2051, 2147483648
        %v2375 = vor.u32 1.1754944e-38, %v2374
        %v2376 = vsel %vm2373, %v2375, %v2371
        %v2377 = vmul.f32 1.0, %v2376
        %v2378 = vrcp.pop %v2052
        %v2379 = vmul.f32 %v2052, %v2378
        %v2380 = vsub.f32 1.0, %v2379
        %v2381 = vmul.f32 %v2378, %v2380
        %v2382 = vadd.f32 %v2378, %v2381
        %vm2383 = vweird.f32 %v2052
        %vm2384 = vweird.f32 %v2378
        %vm2385 = vmor %vm2383, %vm2384
        %v2386 = vsel %vm2385, %v2378, %v2382
        %v2387 = vand.u32 2147483647, %v2052
        %vm2388 = vcmp.eq.f32.partialorder %v2387, 8.507059e+37
        %v2389 = vand.u32 %v2052, 2147483648
        %v2390 = vor.u32 1.1754944e-38, %v2389
        %v2391 = vsel %vm2388, %v2390, %v2386
        %v2392 = vmul.f32 1.0, %v2391
        %v2393 = vrcp.pop %v2053
        %v2394 = vmul.f32 %v2053, %v2393
        %v2395 = vsub.f32 1.0, %v2394
        %v2396 = vmul.f32 %v2393, %v2395
        %v2397 = vadd.f32 %v2393, %v2396
        %vm2398 = vweird.f32 %v2053
        %vm2399 = vweird.f32 %v2393
        %vm2400 = vmor %vm2398, %vm2399
        %v2401 = vsel %vm2400, %v2393, %v2397
        %v2402 = vand.u32 2147483647, %v2053
        %vm2403 = vcmp.eq.f32.partialorder %v2402, 8.507059e+37
        %v2404 = vand.u32 %v2053, 2147483648
        %v2405 = vor.u32 1.1754944e-38, %v2404
        %v2406 = vsel %vm2403, %v2405, %v2401
        %v2407 = vmul.f32 1.0, %v2406
        %v2408 = vrcp.pop %v2054
        %v2409 = vmul.f32 %v2054, %v2408
        %v2410 = vsub.f32 1.0, %v2409
        %v2411 = vmul.f32 %v2408, %v2410
        %v2412 = vadd.f32 %v2408, %v2411
        %vm2413 = vweird.f32 %v2054
        %vm2414 = vweird.f32 %v2408
        %vm2415 = vmor %vm2413, %vm2414
        %v2416 = vsel %vm2415, %v2408, %v2412
        %v2417 = vand.u32 2147483647, %v2054
        %vm2418 = vcmp.eq.f32.partialorder %v2417, 8.507059e+37
        %v2419 = vand.u32 %v2054, 2147483648
        %v2420 = vor.u32 1.1754944e-38, %v2419
        %v2421 = vsel %vm2418, %v2420, %v2416
        %v2422 = vmul.f32 1.0, %v2421
        %v2423 = vrcp.pop %v2055
        %v2424 = vmul.f32 %v2055, %v2423
        %v2425 = vsub.f32 1.0, %v2424
        %v2426 = vmul.f32 %v2423, %v2425
        %v2427 = vadd.f32 %v2423, %v2426
        %vm2428 = vweird.f32 %v2055
        %vm2429 = vweird.f32 %v2423
        %vm2430 = vmor %vm2428, %vm2429
        %v2431 = vsel %vm2430, %v2423, %v2427
        %v2432 = vand.u32 2147483647, %v2055
        %vm2433 = vcmp.eq.f32.partialorder %v2432, 8.507059e+37
        %v2434 = vand.u32 %v2055, 2147483648
        %v2435 = vor.u32 1.1754944e-38, %v2434
        %v2436 = vsel %vm2433, %v2435, %v2431
        %v2437 = vmul.f32 1.0, %v2436
        %v2438 = vrcp.pop %v2056
        %v2439 = vmul.f32 %v2056, %v2438
        %v2440 = vsub.f32 1.0, %v2439
        %v2441 = vmul.f32 %v2438, %v2440
        %v2442 = vadd.f32 %v2438, %v2441
        %vm2443 = vweird.f32 %v2056
        %vm2444 = vweird.f32 %v2438
        %vm2445 = vmor %vm2443, %vm2444
        %v2446 = vsel %vm2445, %v2438, %v2442
        %v2447 = vand.u32 2147483647, %v2056
        %vm2448 = vcmp.eq.f32.partialorder %v2447, 8.507059e+37
        %v2449 = vand.u32 %v2056, 2147483648
        %v2450 = vor.u32 1.1754944e-38, %v2449
        %v2451 = vsel %vm2448, %v2450, %v2446
        %v2452 = vmul.f32 1.0, %v2451
        %v2453 = vrcp.pop %v2057
        %v2454 = vmul.f32 %v2057, %v2453
        %v2455 = vsub.f32 1.0, %v2454
        %v2456 = vmul.f32 %v2453, %v2455
        %v2457 = vadd.f32 %v2453, %v2456
        %vm2458 = vweird.f32 %v2057
        %vm2459 = vweird.f32 %v2453
        %vm2460 = vmor %vm2458, %vm2459
        %v2461 = vsel %vm2460, %v2453, %v2457
        %v2462 = vand.u32 2147483647, %v2057
        %vm2463 = vcmp.eq.f32.partialorder %v2462, 8.507059e+37
        %v2464 = vand.u32 %v2057, 2147483648
        %v2465 = vor.u32 1.1754944e-38, %v2464
        %v2466 = vsel %vm2463, %v2465, %v2461
        %v2467 = vmul.f32 1.0, %v2466
        %v2468 = vrcp.pop %v2058
        %v2469 = vmul.f32 %v2058, %v2468
        %v2470 = vsub.f32 1.0, %v2469
        %v2471 = vmul.f32 %v2468, %v2470
        %v2472 = vadd.f32 %v2468, %v2471
        %vm2473 = vweird.f32 %v2058
        %vm2474 = vweird.f32 %v2468
        %vm2475 = vmor %vm2473, %vm2474
        %v2476 = vsel %vm2475, %v2468, %v2472
        %v2477 = vand.u32 2147483647, %v2058
        %vm2478 = vcmp.eq.f32.partialorder %v2477, 8.507059e+37
        %v2479 = vand.u32 %v2058, 2147483648
        %v2480 = vor.u32 1.1754944e-38, %v2479
        %v2481 = vsel %vm2478, %v2480, %v2476
        %v2482 = vmul.f32 1.0, %v2481
        %v2483 = vrcp.pop %v2059
        %v2484 = vmul.f32 %v2059, %v2483
        %v2485 = vsub.f32 1.0, %v2484
        %v2486 = vmul.f32 %v2483, %v2485
        %v2487 = vadd.f32 %v2483, %v2486
        %vm2488 = vweird.f32 %v2059
        %vm2489 = vweird.f32 %v2483
        %vm2490 = vmor %vm2488, %vm2489
        %v2491 = vsel %vm2490, %v2483, %v2487
        %v2492 = vand.u32 2147483647, %v2059
        %vm2493 = vcmp.eq.f32.partialorder %v2492, 8.507059e+37
        %v2494 = vand.u32 %v2059, 2147483648
        %v2495 = vor.u32 1.1754944e-38, %v2494
        %v2496 = vsel %vm2493, %v2495, %v2491
        %v2497 = vmul.f32 1.0, %v2496
        %v2498 = vrcp.pop %v2060
        %v2499 = vmul.f32 %v2060, %v2498
        %v2500 = vsub.f32 1.0, %v2499
        %v2501 = vmul.f32 %v2498, %v2500
        %v2502 = vadd.f32 %v2498, %v2501
        %vm2503 = vweird.f32 %v2060
        %vm2504 = vweird.f32 %v2498
        %vm2505 = vmor %vm2503, %vm2504
        %v2506 = vsel %vm2505, %v2498, %v2502
        %v2507 = vand.u32 2147483647, %v2060
        %vm2508 = vcmp.eq.f32.partialorder %v2507, 8.507059e+37
        %v2509 = vand.u32 %v2060, 2147483648
        %v2510 = vor.u32 1.1754944e-38, %v2509
        %v2511 = vsel %vm2508, %v2510, %v2506
        %v2512 = vmul.f32 1.0, %v2511
        %v2513 = vrcp.pop %v2061
        %v2514 = vmul.f32 %v2061, %v2513
        %v2515 = vsub.f32 1.0, %v2514
        %v2516 = vmul.f32 %v2513, %v2515
        %v2517 = vadd.f32 %v2513, %v2516
        %vm2518 = vweird.f32 %v2061
        %vm2519 = vweird.f32 %v2513
        %vm2520 = vmor %vm2518, %vm2519
        %v2521 = vsel %vm2520, %v2513, %v2517
        %v2522 = vand.u32 2147483647, %v2061
        %vm2523 = vcmp.eq.f32.partialorder %v2522, 8.507059e+37
        %v2524 = vand.u32 %v2061, 2147483648
        %v2525 = vor.u32 1.1754944e-38, %v2524
        %v2526 = vsel %vm2523, %v2525, %v2521
        %v2527 = vmul.f32 1.0, %v2526
        %v2528 = vrcp.pop %v2062
        %v2529 = vmul.f32 %v2062, %v2528
        %v2530 = vsub.f32 1.0, %v2529
        %v2531 = vmul.f32 %v2528, %v2530
        %v2532 = vadd.f32 %v2528, %v2531
        %vm2533 = vweird.f32 %v2062
        %vm2534 = vweird.f32 %v2528
        %vm2535 = vmor %vm2533, %vm2534
        %v2536 = vsel %vm2535, %v2528, %v2532
        %v2537 = vand.u32 2147483647, %v2062
        %vm2538 = vcmp.eq.f32.partialorder %v2537, 8.507059e+37
        %v2539 = vand.u32 %v2062, 2147483648
        %v2540 = vor.u32 1.1754944e-38, %v2539
        %v2541 = vsel %vm2538, %v2540, %v2536
        %v2542 = vmul.f32 1.0, %v2541
        %v2543 = vmul.f32 %v1856, %v2077
        %v2544 = vmul.f32 %v1858, %v2092
        %v2545 = vmul.f32 %v1861, %v2107
        %v2546 = vmul.f32 %v1863, %v2122
        %v2547 = vmul.f32 %v1866, %v2137
        %v2548 = vmul.f32 %v1868, %v2152
        %v2549 = vmul.f32 %v1871, %v2167
        %v2550 = vmul.f32 %v1873, %v2182
        %v2551 = vmul.f32 %v1876, %v2197
        %v2552 = vmul.f32 %v1878, %v2212
        %v2553 = vmul.f32 %v1881, %v2227
        %v2554 = vmul.f32 %v1883, %v2242
        %v2555 = vmul.f32 %v1886, %v2257
        %v2556 = vmul.f32 %v1888, %v2272
        %v2557 = vmul.f32 %v1891, %v2287
        %v2558 = vmul.f32 %v1893, %v2302
        %v2559 = vmul.f32 %v1896, %v2317
        %v2560 = vmul.f32 %v1898, %v2332
        %v2561 = vmul.f32 %v1901, %v2347
        %v2562 = vmul.f32 %v1903, %v2362
        %v2563 = vmul.f32 %v1906, %v2377
        %v2564 = vmul.f32 %v1908, %v2392
        %v2565 = vmul.f32 %v1911, %v2407
        %v2566 = vmul.f32 %v1913, %v2422
        %v2567 = vmul.f32 %v1916, %v2437
        %v2568 = vmul.f32 %v1918, %v2452
        %v2569 = vmul.f32 %v1921, %v2467
        %v2570 = vmul.f32 %v1923, %v2482
        %v2571 = vmul.f32 %v1926, %v2497
        %v2572 = vmul.f32 %v1928, %v2512
        %v2573 = vmul.f32 %v1931, %v2527
        %v2574 = vmul.f32 %v1933, %v2542
        %v2575 = vpack.c.bf16 %v2544, %v2543
        %v2576 = vpack.c.bf16 %v2546, %v2545
        %v2577 = vpack.c.bf16 %v2548, %v2547
        %v2578 = vpack.c.bf16 %v2550, %v2549
        %v2579 = vpack.c.bf16 %v2552, %v2551
        %v2580 = vpack.c.bf16 %v2554, %v2553
        %v2581 = vpack.c.bf16 %v2556, %v2555
        %v2582 = vpack.c.bf16 %v2558, %v2557
        %v2583 = vpack.c.bf16 %v2560, %v2559
        %v2584 = vpack.c.bf16 %v2562, %v2561
        %v2585 = vpack.c.bf16 %v2564, %v2563
        %v2586 = vpack.c.bf16 %v2566, %v2565
        %v2587 = vpack.c.bf16 %v2568, %v2567
        %v2588 = vpack.c.bf16 %v2570, %v2569
        %v2589 = vpack.c.bf16 %v2572, %v2571
        %v2590 = vpack.c.bf16 %v2574, %v2573
        %v2591 = vld [vmem:[#allocation11] sm:$0xf]
        %v2592 = vld [vmem:[#allocation11 + $0x4] sm:$0xf]
        %v2593 = vld [vmem:[#allocation11 + $0x8] sm:$0xf]
        %v2594 = vld [vmem:[#allocation11 + $0xc] sm:$0xf]
        %v2595 = vld [vmem:[#allocation11 + $0x10] sm:$0xf]
        %v2596 = vld [vmem:[#allocation11 + $0x14] sm:$0xf]
        %v2597 = vld [vmem:[#allocation11 + $0x18] sm:$0xf]
        %v2598 = vld [vmem:[#allocation11 + $0x1c] sm:$0xf]
        %v2599 = vld [vmem:[#allocation11 + $0x20] sm:$0xf]
        %v2600 = vld [vmem:[#allocation11 + $0x24] sm:$0xf]
        %v2601 = vld [vmem:[#allocation11 + $0x28] sm:$0xf]
        %v2602 = vld [vmem:[#allocation11 + $0x2c] sm:$0xf]
        %v2603 = vld [vmem:[#allocation11 + $0x30] sm:$0xf]
        %v2604 = vld [vmem:[#allocation11 + $0x34] sm:$0xf]
        %v2605 = vld [vmem:[#allocation11 + $0x38] sm:$0xf]
        %v2606 = vld [vmem:[#allocation11 + $0x3c] sm:$0xf]
        %v2607 = vld [vmem:[%s9] sm:$0x1]
        %v2609 = vperm.slane %v2607, 0
        %v2627 = vunpack.c.l.b16 %v2591
        %v2628 = vunpack.c.l.b16 %v2592
        %v2629 = vunpack.c.l.b16 %v2593
        %v2630 = vunpack.c.l.b16 %v2594
        %v2631 = vunpack.c.l.b16 %v2595
        %v2632 = vunpack.c.l.b16 %v2596
        %v2633 = vunpack.c.l.b16 %v2597
        %v2634 = vunpack.c.l.b16 %v2598
        %v2635 = vunpack.c.l.b16 %v2599
        %v2636 = vunpack.c.l.b16 %v2600
        %v2637 = vunpack.c.l.b16 %v2601
        %v2638 = vunpack.c.l.b16 %v2602
        %v2639 = vunpack.c.l.b16 %v2603
        %v2640 = vunpack.c.l.b16 %v2604
        %v2641 = vunpack.c.l.b16 %v2605
        %v2642 = vunpack.c.l.b16 %v2606
        %v2643 = vpack.c.b16 %v2628, %v2627
        %v2644 = vpack.c.b16 %v2630, %v2629
        %v2645 = vpack.c.b16 %v2632, %v2631
        %v2646 = vpack.c.b16 %v2634, %v2633
        %v2647 = vpack.c.b16 %v2636, %v2635
        %v2648 = vpack.c.b16 %v2638, %v2637
        %v2649 = vpack.c.b16 %v2640, %v2639
        %v2650 = vpack.c.b16 %v2642, %v2641
        %2659 = vmatpush.bf16.msra.mxu0 %v2650
        %2660 = vmatpush.bf16.msra.mxu0 %v2649
        %2661 = vmatpush.bf16.msra.mxu0 %v2648
        %2662 = vmatpush.bf16.msra.mxu0 %v2647
        %2663 = vmatpush.bf16.msra.mxu0 %v2646
        %2664 = vmatpush.bf16.msra.mxu0 %v2645
        %2665 = vmatpush.bf16.msra.mxu0 %v2644
        %2666 = vmatpush.bf16.msra.mxu0 %v2643
        %2667 = vmatmul.bf16.gmra.mxu0 %v2575
        %v2668 = vpop.f32.mrf.mxu0
        %v2669 = vadd.f32 %v2609, %v2668
        %v2670 = vpop.f32.mrf.mxu0
        %v2671 = vadd.f32 %v2609, %v2670
        %2672 = vmatmul.bf16.gmra.mxu0 %v2576
        %v2673 = vpop.f32.mrf.mxu0
        %v2674 = vadd.f32 %v2609, %v2673
        %v2675 = vpop.f32.mrf.mxu0
        %v2676 = vadd.f32 %v2609, %v2675
        %2677 = vmatmul.bf16.gmra.mxu0 %v2577
        %v2678 = vpop.f32.mrf.mxu0
        %v2679 = vadd.f32 %v2609, %v2678
        %v2680 = vpop.f32.mrf.mxu0
        %v2681 = vadd.f32 %v2609, %v2680
        %2682 = vmatmul.bf16.gmra.mxu0 %v2578
        %v2683 = vpop.f32.mrf.mxu0
        %v2684 = vadd.f32 %v2609, %v2683
        %v2685 = vpop.f32.mrf.mxu0
        %v2686 = vadd.f32 %v2609, %v2685
        %2687 = vmatmul.bf16.gmra.mxu0 %v2579
        %v2688 = vpop.f32.mrf.mxu0
        %v2689 = vadd.f32 %v2609, %v2688
        %v2690 = vpop.f32.mrf.mxu0
        %v2691 = vadd.f32 %v2609, %v2690
        %2692 = vmatmul.bf16.gmra.mxu0 %v2580
        %v2693 = vpop.f32.mrf.mxu0
        %v2694 = vadd.f32 %v2609, %v2693
        %v2695 = vpop.f32.mrf.mxu0
        %v2696 = vadd.f32 %v2609, %v2695
        %2697 = vmatmul.bf16.gmra.mxu0 %v2581
        %v2698 = vpop.f32.mrf.mxu0
        %v2699 = vadd.f32 %v2609, %v2698
        %v2700 = vpop.f32.mrf.mxu0
        %v2701 = vadd.f32 %v2609, %v2700
        %2702 = vmatmul.bf16.gmra.mxu0 %v2582
        %v2703 = vpop.f32.mrf.mxu0
        %v2704 = vadd.f32 %v2609, %v2703
        %v2705 = vpop.f32.mrf.mxu0
        %v2706 = vadd.f32 %v2609, %v2705
        %2707 = vmatmul.bf16.gmra.mxu0 %v2583
        %v2708 = vpop.f32.mrf.mxu0
        %v2709 = vadd.f32 %v2609, %v2708
        %v2710 = vpop.f32.mrf.mxu0
        %v2711 = vadd.f32 %v2609, %v2710
        %2712 = vmatmul.bf16.gmra.mxu0 %v2584
        %v2713 = vpop.f32.mrf.mxu0
        %v2714 = vadd.f32 %v2609, %v2713
        %v2715 = vpop.f32.mrf.mxu0
        %v2716 = vadd.f32 %v2609, %v2715
        %2717 = vmatmul.bf16.gmra.mxu0 %v2585
        %v2718 = vpop.f32.mrf.mxu0
        %v2719 = vadd.f32 %v2609, %v2718
        %v2720 = vpop.f32.mrf.mxu0
        %v2721 = vadd.f32 %v2609, %v2720
        %2722 = vmatmul.bf16.gmra.mxu0 %v2586
        %v2723 = vpop.f32.mrf.mxu0
        %v2724 = vadd.f32 %v2609, %v2723
        %v2725 = vpop.f32.mrf.mxu0
        %v2726 = vadd.f32 %v2609, %v2725
        %2727 = vmatmul.bf16.gmra.mxu0 %v2587
        %v2728 = vpop.f32.mrf.mxu0
        %v2729 = vadd.f32 %v2609, %v2728
        %v2730 = vpop.f32.mrf.mxu0
        %v2731 = vadd.f32 %v2609, %v2730
        %2732 = vmatmul.bf16.gmra.mxu0 %v2588
        %v2733 = vpop.f32.mrf.mxu0
        %v2734 = vadd.f32 %v2609, %v2733
        %v2735 = vpop.f32.mrf.mxu0
        %v2736 = vadd.f32 %v2609, %v2735
        %2737 = vmatmul.bf16.gmra.mxu0 %v2589
        %v2738 = vpop.f32.mrf.mxu0
        %v2739 = vadd.f32 %v2609, %v2738
        %v2740 = vpop.f32.mrf.mxu0
        %v2741 = vadd.f32 %v2609, %v2740
        %2742 = vmatmul.bf16.gmra.mxu0 %v2590
        %v2743 = vpop.f32.mrf.mxu0
        %v2744 = vadd.f32 %v2609, %v2743
        %v2745 = vpop.f32.mrf.mxu0
        %v2746 = vadd.f32 %v2609, %v2745
        %2747 = vdwg.mxu0
        %v2748 = vadd.f32 %v1571, %v2669
        %v2749 = vadd.f32 %v1573, %v2671
        %v2750 = vadd.f32 %v1576, %v2674
        %v2751 = vadd.f32 %v1578, %v2676
        %v2752 = vadd.f32 %v1581, %v2679
        %v2753 = vadd.f32 %v1583, %v2681
        %v2754 = vadd.f32 %v1586, %v2684
        %v2755 = vadd.f32 %v1588, %v2686
        %v2756 = vadd.f32 %v1591, %v2689
        %v2757 = vadd.f32 %v1593, %v2691
        %v2758 = vadd.f32 %v1596, %v2694
        %v2759 = vadd.f32 %v1598, %v2696
        %v2760 = vadd.f32 %v1601, %v2699
        %v2761 = vadd.f32 %v1603, %v2701
        %v2762 = vadd.f32 %v1606, %v2704
        %v2763 = vadd.f32 %v1608, %v2706
        %v2764 = vadd.f32 %v1611, %v2709
        %v2765 = vadd.f32 %v1613, %v2711
        %v2766 = vadd.f32 %v1616, %v2714
        %v2767 = vadd.f32 %v1618, %v2716
        %v2768 = vadd.f32 %v1621, %v2719
        %v2769 = vadd.f32 %v1623, %v2721
        %v2770 = vadd.f32 %v1626, %v2724
        %v2771 = vadd.f32 %v1628, %v2726
        %v2772 = vadd.f32 %v1631, %v2729
        %v2773 = vadd.f32 %v1633, %v2731
        %v2774 = vadd.f32 %v1636, %v2734
        %v2775 = vadd.f32 %v1638, %v2736
        %v2776 = vadd.f32 %v1641, %v2739
        %v2777 = vadd.f32 %v1643, %v2741
        %v2778 = vadd.f32 %v1646, %v2744
        %v2779 = vadd.f32 %v1648, %v2746
        %v2780 = vpack.c.bf16 %v2749, %v2748
        %v2781 = vpack.c.bf16 %v2751, %v2750
        %v2782 = vpack.c.bf16 %v2753, %v2752
        %v2783 = vpack.c.bf16 %v2755, %v2754
        %v2784 = vpack.c.bf16 %v2757, %v2756
        %v2785 = vpack.c.bf16 %v2759, %v2758
        %v2786 = vpack.c.bf16 %v2761, %v2760
        %v2787 = vpack.c.bf16 %v2763, %v2762
        %v2788 = vpack.c.bf16 %v2765, %v2764
        %v2789 = vpack.c.bf16 %v2767, %v2766
        %v2790 = vpack.c.bf16 %v2769, %v2768
        %v2791 = vpack.c.bf16 %v2771, %v2770
        %v2792 = vpack.c.bf16 %v2773, %v2772
        %v2793 = vpack.c.bf16 %v2775, %v2774
        %v2794 = vpack.c.bf16 %v2777, %v2776
        %v2795 = vpack.c.bf16 %v2779, %v2778
        %v2796 = vld [vmem:[#allocation13] sm:$0xf]
        %v2797 = vld [vmem:[#allocation13 + $0x4] sm:$0xf]
        %v2798 = vld [vmem:[#allocation13 + $0x8] sm:$0xf]
        %v2799 = vld [vmem:[#allocation13 + $0xc] sm:$0xf]
        %v2800 = vld [vmem:[#allocation13 + $0x10] sm:$0xf]
        %v2801 = vld [vmem:[#allocation13 + $0x14] sm:$0xf]
        %v2802 = vld [vmem:[#allocation13 + $0x18] sm:$0xf]
        %v2803 = vld [vmem:[#allocation13 + $0x1c] sm:$0xf]
        %v2804 = vld [vmem:[#allocation13 + $0x20] sm:$0xf]
        %v2805 = vld [vmem:[#allocation13 + $0x24] sm:$0xf]
        %v2806 = vld [vmem:[#allocation13 + $0x28] sm:$0xf]
        %v2807 = vld [vmem:[#allocation13 + $0x2c] sm:$0xf]
        %v2808 = vld [vmem:[#allocation13 + $0x30] sm:$0xf]
        %v2809 = vld [vmem:[#allocation13 + $0x34] sm:$0xf]
        %v2810 = vld [vmem:[#allocation13 + $0x38] sm:$0xf]
        %v2811 = vld [vmem:[#allocation13 + $0x3c] sm:$0xf]
        %v2812 = vld [vmem:[%s11] sm:$0x1]
        %v2814 = vperm.slane %v2812, 0
        %v2832 = vunpack.c.l.b16 %v2796
        %v2833 = vunpack.c.l.b16 %v2797
        %v2834 = vunpack.c.l.b16 %v2798
        %v2835 = vunpack.c.l.b16 %v2799
        %v2836 = vunpack.c.l.b16 %v2800
        %v2837 = vunpack.c.l.b16 %v2801
        %v2838 = vunpack.c.l.b16 %v2802
        %v2839 = vunpack.c.l.b16 %v2803
        %v2840 = vunpack.c.l.b16 %v2804
        %v2841 = vunpack.c.l.b16 %v2805
        %v2842 = vunpack.c.l.b16 %v2806
        %v2843 = vunpack.c.l.b16 %v2807
        %v2844 = vunpack.c.l.b16 %v2808
        %v2845 = vunpack.c.l.b16 %v2809
        %v2846 = vunpack.c.l.b16 %v2810
        %v2847 = vunpack.c.l.b16 %v2811
        %v2848 = vpack.c.b16 %v2833, %v2832
        %v2849 = vpack.c.b16 %v2835, %v2834
        %v2850 = vpack.c.b16 %v2837, %v2836
        %v2851 = vpack.c.b16 %v2839, %v2838
        %v2852 = vpack.c.b16 %v2841, %v2840
        %v2853 = vpack.c.b16 %v2843, %v2842
        %v2854 = vpack.c.b16 %v2845, %v2844
        %v2855 = vpack.c.b16 %v2847, %v2846
        %2864 = vmatpush.bf16.msra.mxu0 %v2855
        %2865 = vmatpush.bf16.msra.mxu0 %v2854
        %2866 = vmatpush.bf16.msra.mxu0 %v2853
        %2867 = vmatpush.bf16.msra.mxu0 %v2852
        %2868 = vmatpush.bf16.msra.mxu0 %v2851
        %2869 = vmatpush.bf16.msra.mxu0 %v2850
        %2870 = vmatpush.bf16.msra.mxu0 %v2849
        %2871 = vmatpush.bf16.msra.mxu0 %v2848
        %2872 = vmatmul.bf16.gmra.mxu0 %v2780
        %v2873 = vpop.f32.mrf.mxu0
        %v2874 = vadd.f32 %v2814, %v2873
        %v2875 = vpop.f32.mrf.mxu0
        %v2876 = vadd.f32 %v2814, %v2875
        %2877 = vmatmul.bf16.gmra.mxu0 %v2781
        %v2878 = vpop.f32.mrf.mxu0
        %v2879 = vadd.f32 %v2814, %v2878
        %v2880 = vpop.f32.mrf.mxu0
        %v2881 = vadd.f32 %v2814, %v2880
        %2882 = vmatmul.bf16.gmra.mxu0 %v2782
        %v2883 = vpop.f32.mrf.mxu0
        %v2884 = vadd.f32 %v2814, %v2883
        %v2885 = vpop.f32.mrf.mxu0
        %v2886 = vadd.f32 %v2814, %v2885
        %2887 = vmatmul.bf16.gmra.mxu0 %v2783
        %v2888 = vpop.f32.mrf.mxu0
        %v2889 = vadd.f32 %v2814, %v2888
        %v2890 = vpop.f32.mrf.mxu0
        %v2891 = vadd.f32 %v2814, %v2890
        %2892 = vmatmul.bf16.gmra.mxu0 %v2784
        %v2893 = vpop.f32.mrf.mxu0
        %v2894 = vadd.f32 %v2814, %v2893
        %v2895 = vpop.f32.mrf.mxu0
        %v2896 = vadd.f32 %v2814, %v2895
        %2897 = vmatmul.bf16.gmra.mxu0 %v2785
        %v2898 = vpop.f32.mrf.mxu0
        %v2899 = vadd.f32 %v2814, %v2898
        %v2900 = vpop.f32.mrf.mxu0
        %v2901 = vadd.f32 %v2814, %v2900
        %2902 = vmatmul.bf16.gmra.mxu0 %v2786
        %v2903 = vpop.f32.mrf.mxu0
        %v2904 = vadd.f32 %v2814, %v2903
        %v2905 = vpop.f32.mrf.mxu0
        %v2906 = vadd.f32 %v2814, %v2905
        %2907 = vmatmul.bf16.gmra.mxu0 %v2787
        %v2908 = vpop.f32.mrf.mxu0
        %v2909 = vadd.f32 %v2814, %v2908
        %v2910 = vpop.f32.mrf.mxu0
        %v2911 = vadd.f32 %v2814, %v2910
        %2912 = vmatmul.bf16.gmra.mxu0 %v2788
        %v2913 = vpop.f32.mrf.mxu0
        %v2914 = vadd.f32 %v2814, %v2913
        %v2915 = vpop.f32.mrf.mxu0
        %v2916 = vadd.f32 %v2814, %v2915
        %2917 = vmatmul.bf16.gmra.mxu0 %v2789
        %v2918 = vpop.f32.mrf.mxu0
        %v2919 = vadd.f32 %v2814, %v2918
        %v2920 = vpop.f32.mrf.mxu0
        %v2921 = vadd.f32 %v2814, %v2920
        %2922 = vmatmul.bf16.gmra.mxu0 %v2790
        %v2923 = vpop.f32.mrf.mxu0
        %v2924 = vadd.f32 %v2814, %v2923
        %v2925 = vpop.f32.mrf.mxu0
        %v2926 = vadd.f32 %v2814, %v2925
        %2927 = vmatmul.bf16.gmra.mxu0 %v2791
        %v2928 = vpop.f32.mrf.mxu0
        %v2929 = vadd.f32 %v2814, %v2928
        %v2930 = vpop.f32.mrf.mxu0
        %v2931 = vadd.f32 %v2814, %v2930
        %2932 = vmatmul.bf16.gmra.mxu0 %v2792
        %v2933 = vpop.f32.mrf.mxu0
        %v2934 = vadd.f32 %v2814, %v2933
        %v2935 = vpop.f32.mrf.mxu0
        %v2936 = vadd.f32 %v2814, %v2935
        %2937 = vmatmul.bf16.gmra.mxu0 %v2793
        %v2938 = vpop.f32.mrf.mxu0
        %v2939 = vadd.f32 %v2814, %v2938
        %v2940 = vpop.f32.mrf.mxu0
        %v2941 = vadd.f32 %v2814, %v2940
        %2942 = vmatmul.bf16.gmra.mxu0 %v2794
        %v2943 = vpop.f32.mrf.mxu0
        %v2944 = vadd.f32 %v2814, %v2943
        %v2945 = vpop.f32.mrf.mxu0
        %v2946 = vadd.f32 %v2814, %v2945
        %2947 = vmatmul.bf16.gmra.mxu0 %v2795
        %v2948 = vpop.f32.mrf.mxu0
        %v2949 = vadd.f32 %v2814, %v2948
        %v2950 = vpop.f32.mrf.mxu0
        %v2951 = vadd.f32 %v2814, %v2950
        %2952 = vdwg.mxu0
        %v2953 = vxor.u32 %v2874, 2147483648
        %v2954 = vxor.u32 %v2876, 2147483648
        %v2955 = vxor.u32 %v2879, 2147483648
        %v2956 = vxor.u32 %v2881, 2147483648
        %v2957 = vxor.u32 %v2884, 2147483648
        %v2958 = vxor.u32 %v2886, 2147483648
        %v2959 = vxor.u32 %v2889, 2147483648
        %v2960 = vxor.u32 %v2891, 2147483648
        %v2961 = vxor.u32 %v2894, 2147483648
        %v2962 = vxor.u32 %v2896, 2147483648
        %v2963 = vxor.u32 %v2899, 2147483648
        %v2964 = vxor.u32 %v2901, 2147483648
        %v2965 = vxor.u32 %v2904, 2147483648
        %v2966 = vxor.u32 %v2906, 2147483648
        %v2967 = vxor.u32 %v2909, 2147483648
        %v2968 = vxor.u32 %v2911, 2147483648
        %v2969 = vxor.u32 %v2914, 2147483648
        %v2970 = vxor.u32 %v2916, 2147483648
        %v2971 = vxor.u32 %v2919, 2147483648
        %v2972 = vxor.u32 %v2921, 2147483648
        %v2973 = vxor.u32 %v2924, 2147483648
        %v2974 = vxor.u32 %v2926, 2147483648
        %v2975 = vxor.u32 %v2929, 2147483648
        %v2976 = vxor.u32 %v2931, 2147483648
        %v2977 = vxor.u32 %v2934, 2147483648
        %v2978 = vxor.u32 %v2936, 2147483648
        %v2979 = vxor.u32 %v2939, 2147483648
        %v2980 = vxor.u32 %v2941, 2147483648
        %v2981 = vxor.u32 %v2944, 2147483648
        %v2982 = vxor.u32 %v2946, 2147483648
        %v2983 = vxor.u32 %v2949, 2147483648
        %v2984 = vxor.u32 %v2951, 2147483648
        %v2985 = vmul.f32 %v2953, 1.442695
        %v2986 = vpow.pop %v2985
        %v2987 = vmul.f32 %v2954, 1.442695
        %v2988 = vpow.pop %v2987
        %v2989 = vmul.f32 %v2955, 1.442695
        %v2990 = vpow.pop %v2989
        %v2991 = vmul.f32 %v2956, 1.442695
        %v2992 = vpow.pop %v2991
        %v2993 = vmul.f32 %v2957, 1.442695
        %v2994 = vpow.pop %v2993
        %v2995 = vmul.f32 %v2958, 1.442695
        %v2996 = vpow.pop %v2995
        %v2997 = vmul.f32 %v2959, 1.442695
        %v2998 = vpow.pop %v2997
        %v2999 = vmul.f32 %v2960, 1.442695
        %v3000 = vpow.pop %v2999
        %v3001 = vmul.f32 %v2961, 1.442695
        %v3002 = vpow.pop %v3001
        %v3003 = vmul.f32 %v2962, 1.442695
        %v3004 = vpow.pop %v3003
        %v3005 = vmul.f32 %v2963, 1.442695
        %v3006 = vpow.pop %v3005
        %v3007 = vmul.f32 %v2964, 1.442695
        %v3008 = vpow.pop %v3007
        %v3009 = vmul.f32 %v2965, 1.442695
        %v3010 = vpow.pop %v3009
        %v3011 = vmul.f32 %v2966, 1.442695
        %v3012 = vpow.pop %v3011
        %v3013 = vmul.f32 %v2967, 1.442695
        %v3014 = vpow.pop %v3013
        %v3015 = vmul.f32 %v2968, 1.442695
        %v3016 = vpow.pop %v3015
        %v3017 = vmul.f32 %v2969, 1.442695
        %v3018 = vpow.pop %v3017
        %v3019 = vmul.f32 %v2970, 1.442695
        %v3020 = vpow.pop %v3019
        %v3021 = vmul.f32 %v2971, 1.442695
        %v3022 = vpow.pop %v3021
        %v3023 = vmul.f32 %v2972, 1.442695
        %v3024 = vpow.pop %v3023
        %v3025 = vmul.f32 %v2973, 1.442695
        %v3026 = vpow.pop %v3025
        %v3027 = vmul.f32 %v2974, 1.442695
        %v3028 = vpow.pop %v3027
        %v3029 = vmul.f32 %v2975, 1.442695
        %v3030 = vpow.pop %v3029
        %v3031 = vmul.f32 %v2976, 1.442695
        %v3032 = vpow.pop %v3031
        %v3033 = vmul.f32 %v2977, 1.442695
        %v3034 = vpow.pop %v3033
        %v3035 = vmul.f32 %v2978, 1.442695
        %v3036 = vpow.pop %v3035
        %v3037 = vmul.f32 %v2979, 1.442695
        %v3038 = vpow.pop %v3037
        %v3039 = vmul.f32 %v2980, 1.442695
        %v3040 = vpow.pop %v3039
        %v3041 = vmul.f32 %v2981, 1.442695
        %v3042 = vpow.pop %v3041
        %v3043 = vmul.f32 %v2982, 1.442695
        %v3044 = vpow.pop %v3043
        %v3045 = vmul.f32 %v2983, 1.442695
        %v3046 = vpow.pop %v3045
        %v3047 = vmul.f32 %v2984, 1.442695
        %v3048 = vpow.pop %v3047
        %v3049 = vadd.f32 %v2986, 1.0
        %v3050 = vadd.f32 %v2988, 1.0
        %v3051 = vadd.f32 %v2990, 1.0
        %v3052 = vadd.f32 %v2992, 1.0
        %v3053 = vadd.f32 %v2994, 1.0
        %v3054 = vadd.f32 %v2996, 1.0
        %v3055 = vadd.f32 %v2998, 1.0
        %v3056 = vadd.f32 %v3000, 1.0
        %v3057 = vadd.f32 %v3002, 1.0
        %v3058 = vadd.f32 %v3004, 1.0
        %v3059 = vadd.f32 %v3006, 1.0
        %v3060 = vadd.f32 %v3008, 1.0
        %v3061 = vadd.f32 %v3010, 1.0
        %v3062 = vadd.f32 %v3012, 1.0
        %v3063 = vadd.f32 %v3014, 1.0
        %v3064 = vadd.f32 %v3016, 1.0
        %v3065 = vadd.f32 %v3018, 1.0
        %v3066 = vadd.f32 %v3020, 1.0
        %v3067 = vadd.f32 %v3022, 1.0
        %v3068 = vadd.f32 %v3024, 1.0
        %v3069 = vadd.f32 %v3026, 1.0
        %v3070 = vadd.f32 %v3028, 1.0
        %v3071 = vadd.f32 %v3030, 1.0
        %v3072 = vadd.f32 %v3032, 1.0
        %v3073 = vadd.f32 %v3034, 1.0
        %v3074 = vadd.f32 %v3036, 1.0
        %v3075 = vadd.f32 %v3038, 1.0
        %v3076 = vadd.f32 %v3040, 1.0
        %v3077 = vadd.f32 %v3042, 1.0
        %v3078 = vadd.f32 %v3044, 1.0
        %v3079 = vadd.f32 %v3046, 1.0
        %v3080 = vadd.f32 %v3048, 1.0
        %v3081 = vrcp.pop %v3049
        %v3082 = vmul.f32 %v3049, %v3081
        %v3083 = vsub.f32 1.0, %v3082
        %v3084 = vmul.f32 %v3081, %v3083
        %v3085 = vadd.f32 %v3081, %v3084
        %vm3086 = vweird.f32 %v3049
        %vm3087 = vweird.f32 %v3081
        %vm3088 = vmor %vm3086, %vm3087
        %v3089 = vsel %vm3088, %v3081, %v3085
        %v3090 = vand.u32 2147483647, %v3049
        %vm3091 = vcmp.eq.f32.partialorder %v3090, 8.507059e+37
        %v3092 = vand.u32 %v3049, 2147483648
        %v3093 = vor.u32 1.1754944e-38, %v3092
        %v3094 = vsel %vm3091, %v3093, %v3089
        %v3095 = vmul.f32 1.0, %v3094
        %v3096 = vrcp.pop %v3050
        %v3097 = vmul.f32 %v3050, %v3096
        %v3098 = vsub.f32 1.0, %v3097
        %v3099 = vmul.f32 %v3096, %v3098
        %v3100 = vadd.f32 %v3096, %v3099
        %vm3101 = vweird.f32 %v3050
        %vm3102 = vweird.f32 %v3096
        %vm3103 = vmor %vm3101, %vm3102
        %v3104 = vsel %vm3103, %v3096, %v3100
        %v3105 = vand.u32 2147483647, %v3050
        %vm3106 = vcmp.eq.f32.partialorder %v3105, 8.507059e+37
        %v3107 = vand.u32 %v3050, 2147483648
        %v3108 = vor.u32 1.1754944e-38, %v3107
        %v3109 = vsel %vm3106, %v3108, %v3104
        %v3110 = vmul.f32 1.0, %v3109
        %v3111 = vrcp.pop %v3051
        %v3112 = vmul.f32 %v3051, %v3111
        %v3113 = vsub.f32 1.0, %v3112
        %v3114 = vmul.f32 %v3111, %v3113
        %v3115 = vadd.f32 %v3111, %v3114
        %vm3116 = vweird.f32 %v3051
        %vm3117 = vweird.f32 %v3111
        %vm3118 = vmor %vm3116, %vm3117
        %v3119 = vsel %vm3118, %v3111, %v3115
        %v3120 = vand.u32 2147483647, %v3051
        %vm3121 = vcmp.eq.f32.partialorder %v3120, 8.507059e+37
        %v3122 = vand.u32 %v3051, 2147483648
        %v3123 = vor.u32 1.1754944e-38, %v3122
        %v3124 = vsel %vm3121, %v3123, %v3119
        %v3125 = vmul.f32 1.0, %v3124
        %v3126 = vrcp.pop %v3052
        %v3127 = vmul.f32 %v3052, %v3126
        %v3128 = vsub.f32 1.0, %v3127
        %v3129 = vmul.f32 %v3126, %v3128
        %v3130 = vadd.f32 %v3126, %v3129
        %vm3131 = vweird.f32 %v3052
        %vm3132 = vweird.f32 %v3126
        %vm3133 = vmor %vm3131, %vm3132
        %v3134 = vsel %vm3133, %v3126, %v3130
        %v3135 = vand.u32 2147483647, %v3052
        %vm3136 = vcmp.eq.f32.partialorder %v3135, 8.507059e+37
        %v3137 = vand.u32 %v3052, 2147483648
        %v3138 = vor.u32 1.1754944e-38, %v3137
        %v3139 = vsel %vm3136, %v3138, %v3134
        %v3140 = vmul.f32 1.0, %v3139
        %v3141 = vrcp.pop %v3053
        %v3142 = vmul.f32 %v3053, %v3141
        %v3143 = vsub.f32 1.0, %v3142
        %v3144 = vmul.f32 %v3141, %v3143
        %v3145 = vadd.f32 %v3141, %v3144
        %vm3146 = vweird.f32 %v3053
        %vm3147 = vweird.f32 %v3141
        %vm3148 = vmor %vm3146, %vm3147
        %v3149 = vsel %vm3148, %v3141, %v3145
        %v3150 = vand.u32 2147483647, %v3053
        %vm3151 = vcmp.eq.f32.partialorder %v3150, 8.507059e+37
        %v3152 = vand.u32 %v3053, 2147483648
        %v3153 = vor.u32 1.1754944e-38, %v3152
        %v3154 = vsel %vm3151, %v3153, %v3149
        %v3155 = vmul.f32 1.0, %v3154
        %v3156 = vrcp.pop %v3054
        %v3157 = vmul.f32 %v3054, %v3156
        %v3158 = vsub.f32 1.0, %v3157
        %v3159 = vmul.f32 %v3156, %v3158
        %v3160 = vadd.f32 %v3156, %v3159
        %vm3161 = vweird.f32 %v3054
        %vm3162 = vweird.f32 %v3156
        %vm3163 = vmor %vm3161, %vm3162
        %v3164 = vsel %vm3163, %v3156, %v3160
        %v3165 = vand.u32 2147483647, %v3054
        %vm3166 = vcmp.eq.f32.partialorder %v3165, 8.507059e+37
        %v3167 = vand.u32 %v3054, 2147483648
        %v3168 = vor.u32 1.1754944e-38, %v3167
        %v3169 = vsel %vm3166, %v3168, %v3164
        %v3170 = vmul.f32 1.0, %v3169
        %v3171 = vrcp.pop %v3055
        %v3172 = vmul.f32 %v3055, %v3171
        %v3173 = vsub.f32 1.0, %v3172
        %v3174 = vmul.f32 %v3171, %v3173
        %v3175 = vadd.f32 %v3171, %v3174
        %vm3176 = vweird.f32 %v3055
        %vm3177 = vweird.f32 %v3171
        %vm3178 = vmor %vm3176, %vm3177
        %v3179 = vsel %vm3178, %v3171, %v3175
        %v3180 = vand.u32 2147483647, %v3055
        %vm3181 = vcmp.eq.f32.partialorder %v3180, 8.507059e+37
        %v3182 = vand.u32 %v3055, 2147483648
        %v3183 = vor.u32 1.1754944e-38, %v3182
        %v3184 = vsel %vm3181, %v3183, %v3179
        %v3185 = vmul.f32 1.0, %v3184
        %v3186 = vrcp.pop %v3056
        %v3187 = vmul.f32 %v3056, %v3186
        %v3188 = vsub.f32 1.0, %v3187
        %v3189 = vmul.f32 %v3186, %v3188
        %v3190 = vadd.f32 %v3186, %v3189
        %vm3191 = vweird.f32 %v3056
        %vm3192 = vweird.f32 %v3186
        %vm3193 = vmor %vm3191, %vm3192
        %v3194 = vsel %vm3193, %v3186, %v3190
        %v3195 = vand.u32 2147483647, %v3056
        %vm3196 = vcmp.eq.f32.partialorder %v3195, 8.507059e+37
        %v3197 = vand.u32 %v3056, 2147483648
        %v3198 = vor.u32 1.1754944e-38, %v3197
        %v3199 = vsel %vm3196, %v3198, %v3194
        %v3200 = vmul.f32 1.0, %v3199
        %v3201 = vrcp.pop %v3057
        %v3202 = vmul.f32 %v3057, %v3201
        %v3203 = vsub.f32 1.0, %v3202
        %v3204 = vmul.f32 %v3201, %v3203
        %v3205 = vadd.f32 %v3201, %v3204
        %vm3206 = vweird.f32 %v3057
        %vm3207 = vweird.f32 %v3201
        %vm3208 = vmor %vm3206, %vm3207
        %v3209 = vsel %vm3208, %v3201, %v3205
        %v3210 = vand.u32 2147483647, %v3057
        %vm3211 = vcmp.eq.f32.partialorder %v3210, 8.507059e+37
        %v3212 = vand.u32 %v3057, 2147483648
        %v3213 = vor.u32 1.1754944e-38, %v3212
        %v3214 = vsel %vm3211, %v3213, %v3209
        %v3215 = vmul.f32 1.0, %v3214
        %v3216 = vrcp.pop %v3058
        %v3217 = vmul.f32 %v3058, %v3216
        %v3218 = vsub.f32 1.0, %v3217
        %v3219 = vmul.f32 %v3216, %v3218
        %v3220 = vadd.f32 %v3216, %v3219
        %vm3221 = vweird.f32 %v3058
        %vm3222 = vweird.f32 %v3216
        %vm3223 = vmor %vm3221, %vm3222
        %v3224 = vsel %vm3223, %v3216, %v3220
        %v3225 = vand.u32 2147483647, %v3058
        %vm3226 = vcmp.eq.f32.partialorder %v3225, 8.507059e+37
        %v3227 = vand.u32 %v3058, 2147483648
        %v3228 = vor.u32 1.1754944e-38, %v3227
        %v3229 = vsel %vm3226, %v3228, %v3224
        %v3230 = vmul.f32 1.0, %v3229
        %v3231 = vrcp.pop %v3059
        %v3232 = vmul.f32 %v3059, %v3231
        %v3233 = vsub.f32 1.0, %v3232
        %v3234 = vmul.f32 %v3231, %v3233
        %v3235 = vadd.f32 %v3231, %v3234
        %vm3236 = vweird.f32 %v3059
        %vm3237 = vweird.f32 %v3231
        %vm3238 = vmor %vm3236, %vm3237
        %v3239 = vsel %vm3238, %v3231, %v3235
        %v3240 = vand.u32 2147483647, %v3059
        %vm3241 = vcmp.eq.f32.partialorder %v3240, 8.507059e+37
        %v3242 = vand.u32 %v3059, 2147483648
        %v3243 = vor.u32 1.1754944e-38, %v3242
        %v3244 = vsel %vm3241, %v3243, %v3239
        %v3245 = vmul.f32 1.0, %v3244
        %v3246 = vrcp.pop %v3060
        %v3247 = vmul.f32 %v3060, %v3246
        %v3248 = vsub.f32 1.0, %v3247
        %v3249 = vmul.f32 %v3246, %v3248
        %v3250 = vadd.f32 %v3246, %v3249
        %vm3251 = vweird.f32 %v3060
        %vm3252 = vweird.f32 %v3246
        %vm3253 = vmor %vm3251, %vm3252
        %v3254 = vsel %vm3253, %v3246, %v3250
        %v3255 = vand.u32 2147483647, %v3060
        %vm3256 = vcmp.eq.f32.partialorder %v3255, 8.507059e+37
        %v3257 = vand.u32 %v3060, 2147483648
        %v3258 = vor.u32 1.1754944e-38, %v3257
        %v3259 = vsel %vm3256, %v3258, %v3254
        %v3260 = vmul.f32 1.0, %v3259
        %v3261 = vrcp.pop %v3061
        %v3262 = vmul.f32 %v3061, %v3261
        %v3263 = vsub.f32 1.0, %v3262
        %v3264 = vmul.f32 %v3261, %v3263
        %v3265 = vadd.f32 %v3261, %v3264
        %vm3266 = vweird.f32 %v3061
        %vm3267 = vweird.f32 %v3261
        %vm3268 = vmor %vm3266, %vm3267
        %v3269 = vsel %vm3268, %v3261, %v3265
        %v3270 = vand.u32 2147483647, %v3061
        %vm3271 = vcmp.eq.f32.partialorder %v3270, 8.507059e+37
        %v3272 = vand.u32 %v3061, 2147483648
        %v3273 = vor.u32 1.1754944e-38, %v3272
        %v3274 = vsel %vm3271, %v3273, %v3269
        %v3275 = vmul.f32 1.0, %v3274
        %v3276 = vrcp.pop %v3062
        %v3277 = vmul.f32 %v3062, %v3276
        %v3278 = vsub.f32 1.0, %v3277
        %v3279 = vmul.f32 %v3276, %v3278
        %v3280 = vadd.f32 %v3276, %v3279
        %vm3281 = vweird.f32 %v3062
        %vm3282 = vweird.f32 %v3276
        %vm3283 = vmor %vm3281, %vm3282
        %v3284 = vsel %vm3283, %v3276, %v3280
        %v3285 = vand.u32 2147483647, %v3062
        %vm3286 = vcmp.eq.f32.partialorder %v3285, 8.507059e+37
        %v3287 = vand.u32 %v3062, 2147483648
        %v3288 = vor.u32 1.1754944e-38, %v3287
        %v3289 = vsel %vm3286, %v3288, %v3284
        %v3290 = vmul.f32 1.0, %v3289
        %v3291 = vrcp.pop %v3063
        %v3292 = vmul.f32 %v3063, %v3291
        %v3293 = vsub.f32 1.0, %v3292
        %v3294 = vmul.f32 %v3291, %v3293
        %v3295 = vadd.f32 %v3291, %v3294
        %vm3296 = vweird.f32 %v3063
        %vm3297 = vweird.f32 %v3291
        %vm3298 = vmor %vm3296, %vm3297
        %v3299 = vsel %vm3298, %v3291, %v3295
        %v3300 = vand.u32 2147483647, %v3063
        %vm3301 = vcmp.eq.f32.partialorder %v3300, 8.507059e+37
        %v3302 = vand.u32 %v3063, 2147483648
        %v3303 = vor.u32 1.1754944e-38, %v3302
        %v3304 = vsel %vm3301, %v3303, %v3299
        %v3305 = vmul.f32 1.0, %v3304
        %v3306 = vrcp.pop %v3064
        %v3307 = vmul.f32 %v3064, %v3306
        %v3308 = vsub.f32 1.0, %v3307
        %v3309 = vmul.f32 %v3306, %v3308
        %v3310 = vadd.f32 %v3306, %v3309
        %vm3311 = vweird.f32 %v3064
        %vm3312 = vweird.f32 %v3306
        %vm3313 = vmor %vm3311, %vm3312
        %v3314 = vsel %vm3313, %v3306, %v3310
        %v3315 = vand.u32 2147483647, %v3064
        %vm3316 = vcmp.eq.f32.partialorder %v3315, 8.507059e+37
        %v3317 = vand.u32 %v3064, 2147483648
        %v3318 = vor.u32 1.1754944e-38, %v3317
        %v3319 = vsel %vm3316, %v3318, %v3314
        %v3320 = vmul.f32 1.0, %v3319
        %v3321 = vrcp.pop %v3065
        %v3322 = vmul.f32 %v3065, %v3321
        %v3323 = vsub.f32 1.0, %v3322
        %v3324 = vmul.f32 %v3321, %v3323
        %v3325 = vadd.f32 %v3321, %v3324
        %vm3326 = vweird.f32 %v3065
        %vm3327 = vweird.f32 %v3321
        %vm3328 = vmor %vm3326, %vm3327
        %v3329 = vsel %vm3328, %v3321, %v3325
        %v3330 = vand.u32 2147483647, %v3065
        %vm3331 = vcmp.eq.f32.partialorder %v3330, 8.507059e+37
        %v3332 = vand.u32 %v3065, 2147483648
        %v3333 = vor.u32 1.1754944e-38, %v3332
        %v3334 = vsel %vm3331, %v3333, %v3329
        %v3335 = vmul.f32 1.0, %v3334
        %v3336 = vrcp.pop %v3066
        %v3337 = vmul.f32 %v3066, %v3336
        %v3338 = vsub.f32 1.0, %v3337
        %v3339 = vmul.f32 %v3336, %v3338
        %v3340 = vadd.f32 %v3336, %v3339
        %vm3341 = vweird.f32 %v3066
        %vm3342 = vweird.f32 %v3336
        %vm3343 = vmor %vm3341, %vm3342
        %v3344 = vsel %vm3343, %v3336, %v3340
        %v3345 = vand.u32 2147483647, %v3066
        %vm3346 = vcmp.eq.f32.partialorder %v3345, 8.507059e+37
        %v3347 = vand.u32 %v3066, 2147483648
        %v3348 = vor.u32 1.1754944e-38, %v3347
        %v3349 = vsel %vm3346, %v3348, %v3344
        %v3350 = vmul.f32 1.0, %v3349
        %v3351 = vrcp.pop %v3067
        %v3352 = vmul.f32 %v3067, %v3351
        %v3353 = vsub.f32 1.0, %v3352
        %v3354 = vmul.f32 %v3351, %v3353
        %v3355 = vadd.f32 %v3351, %v3354
        %vm3356 = vweird.f32 %v3067
        %vm3357 = vweird.f32 %v3351
        %vm3358 = vmor %vm3356, %vm3357
        %v3359 = vsel %vm3358, %v3351, %v3355
        %v3360 = vand.u32 2147483647, %v3067
        %vm3361 = vcmp.eq.f32.partialorder %v3360, 8.507059e+37
        %v3362 = vand.u32 %v3067, 2147483648
        %v3363 = vor.u32 1.1754944e-38, %v3362
        %v3364 = vsel %vm3361, %v3363, %v3359
        %v3365 = vmul.f32 1.0, %v3364
        %v3366 = vrcp.pop %v3068
        %v3367 = vmul.f32 %v3068, %v3366
        %v3368 = vsub.f32 1.0, %v3367
        %v3369 = vmul.f32 %v3366, %v3368
        %v3370 = vadd.f32 %v3366, %v3369
        %vm3371 = vweird.f32 %v3068
        %vm3372 = vweird.f32 %v3366
        %vm3373 = vmor %vm3371, %vm3372
        %v3374 = vsel %vm3373, %v3366, %v3370
        %v3375 = vand.u32 2147483647, %v3068
        %vm3376 = vcmp.eq.f32.partialorder %v3375, 8.507059e+37
        %v3377 = vand.u32 %v3068, 2147483648
        %v3378 = vor.u32 1.1754944e-38, %v3377
        %v3379 = vsel %vm3376, %v3378, %v3374
        %v3380 = vmul.f32 1.0, %v3379
        %v3381 = vrcp.pop %v3069
        %v3382 = vmul.f32 %v3069, %v3381
        %v3383 = vsub.f32 1.0, %v3382
        %v3384 = vmul.f32 %v3381, %v3383
        %v3385 = vadd.f32 %v3381, %v3384
        %vm3386 = vweird.f32 %v3069
        %vm3387 = vweird.f32 %v3381
        %vm3388 = vmor %vm3386, %vm3387
        %v3389 = vsel %vm3388, %v3381, %v3385
        %v3390 = vand.u32 2147483647, %v3069
        %vm3391 = vcmp.eq.f32.partialorder %v3390, 8.507059e+37
        %v3392 = vand.u32 %v3069, 2147483648
        %v3393 = vor.u32 1.1754944e-38, %v3392
        %v3394 = vsel %vm3391, %v3393, %v3389
        %v3395 = vmul.f32 1.0, %v3394
        %v3396 = vrcp.pop %v3070
        %v3397 = vmul.f32 %v3070, %v3396
        %v3398 = vsub.f32 1.0, %v3397
        %v3399 = vmul.f32 %v3396, %v3398
        %v3400 = vadd.f32 %v3396, %v3399
        %vm3401 = vweird.f32 %v3070
        %vm3402 = vweird.f32 %v3396
        %vm3403 = vmor %vm3401, %vm3402
        %v3404 = vsel %vm3403, %v3396, %v3400
        %v3405 = vand.u32 2147483647, %v3070
        %vm3406 = vcmp.eq.f32.partialorder %v3405, 8.507059e+37
        %v3407 = vand.u32 %v3070, 2147483648
        %v3408 = vor.u32 1.1754944e-38, %v3407
        %v3409 = vsel %vm3406, %v3408, %v3404
        %v3410 = vmul.f32 1.0, %v3409
        %v3411 = vrcp.pop %v3071
        %v3412 = vmul.f32 %v3071, %v3411
        %v3413 = vsub.f32 1.0, %v3412
        %v3414 = vmul.f32 %v3411, %v3413
        %v3415 = vadd.f32 %v3411, %v3414
        %vm3416 = vweird.f32 %v3071
        %vm3417 = vweird.f32 %v3411
        %vm3418 = vmor %vm3416, %vm3417
        %v3419 = vsel %vm3418, %v3411, %v3415
        %v3420 = vand.u32 2147483647, %v3071
        %vm3421 = vcmp.eq.f32.partialorder %v3420, 8.507059e+37
        %v3422 = vand.u32 %v3071, 2147483648
        %v3423 = vor.u32 1.1754944e-38, %v3422
        %v3424 = vsel %vm3421, %v3423, %v3419
        %v3425 = vmul.f32 1.0, %v3424
        %v3426 = vrcp.pop %v3072
        %v3427 = vmul.f32 %v3072, %v3426
        %v3428 = vsub.f32 1.0, %v3427
        %v3429 = vmul.f32 %v3426, %v3428
        %v3430 = vadd.f32 %v3426, %v3429
        %vm3431 = vweird.f32 %v3072
        %vm3432 = vweird.f32 %v3426
        %vm3433 = vmor %vm3431, %vm3432
        %v3434 = vsel %vm3433, %v3426, %v3430
        %v3435 = vand.u32 2147483647, %v3072
        %vm3436 = vcmp.eq.f32.partialorder %v3435, 8.507059e+37
        %v3437 = vand.u32 %v3072, 2147483648
        %v3438 = vor.u32 1.1754944e-38, %v3437
        %v3439 = vsel %vm3436, %v3438, %v3434
        %v3440 = vmul.f32 1.0, %v3439
        %v3441 = vrcp.pop %v3073
        %v3442 = vmul.f32 %v3073, %v3441
        %v3443 = vsub.f32 1.0, %v3442
        %v3444 = vmul.f32 %v3441, %v3443
        %v3445 = vadd.f32 %v3441, %v3444
        %vm3446 = vweird.f32 %v3073
        %vm3447 = vweird.f32 %v3441
        %vm3448 = vmor %vm3446, %vm3447
        %v3449 = vsel %vm3448, %v3441, %v3445
        %v3450 = vand.u32 2147483647, %v3073
        %vm3451 = vcmp.eq.f32.partialorder %v3450, 8.507059e+37
        %v3452 = vand.u32 %v3073, 2147483648
        %v3453 = vor.u32 1.1754944e-38, %v3452
        %v3454 = vsel %vm3451, %v3453, %v3449
        %v3455 = vmul.f32 1.0, %v3454
        %v3456 = vrcp.pop %v3074
        %v3457 = vmul.f32 %v3074, %v3456
        %v3458 = vsub.f32 1.0, %v3457
        %v3459 = vmul.f32 %v3456, %v3458
        %v3460 = vadd.f32 %v3456, %v3459
        %vm3461 = vweird.f32 %v3074
        %vm3462 = vweird.f32 %v3456
        %vm3463 = vmor %vm3461, %vm3462
        %v3464 = vsel %vm3463, %v3456, %v3460
        %v3465 = vand.u32 2147483647, %v3074
        %vm3466 = vcmp.eq.f32.partialorder %v3465, 8.507059e+37
        %v3467 = vand.u32 %v3074, 2147483648
        %v3468 = vor.u32 1.1754944e-38, %v3467
        %v3469 = vsel %vm3466, %v3468, %v3464
        %v3470 = vmul.f32 1.0, %v3469
        %v3471 = vrcp.pop %v3075
        %v3472 = vmul.f32 %v3075, %v3471
        %v3473 = vsub.f32 1.0, %v3472
        %v3474 = vmul.f32 %v3471, %v3473
        %v3475 = vadd.f32 %v3471, %v3474
        %vm3476 = vweird.f32 %v3075
        %vm3477 = vweird.f32 %v3471
        %vm3478 = vmor %vm3476, %vm3477
        %v3479 = vsel %vm3478, %v3471, %v3475
        %v3480 = vand.u32 2147483647, %v3075
        %vm3481 = vcmp.eq.f32.partialorder %v3480, 8.507059e+37
        %v3482 = vand.u32 %v3075, 2147483648
        %v3483 = vor.u32 1.1754944e-38, %v3482
        %v3484 = vsel %vm3481, %v3483, %v3479
        %v3485 = vmul.f32 1.0, %v3484
        %v3486 = vrcp.pop %v3076
        %v3487 = vmul.f32 %v3076, %v3486
        %v3488 = vsub.f32 1.0, %v3487
        %v3489 = vmul.f32 %v3486, %v3488
        %v3490 = vadd.f32 %v3486, %v3489
        %vm3491 = vweird.f32 %v3076
        %vm3492 = vweird.f32 %v3486
        %vm3493 = vmor %vm3491, %vm3492
        %v3494 = vsel %vm3493, %v3486, %v3490
        %v3495 = vand.u32 2147483647, %v3076
        %vm3496 = vcmp.eq.f32.partialorder %v3495, 8.507059e+37
        %v3497 = vand.u32 %v3076, 2147483648
        %v3498 = vor.u32 1.1754944e-38, %v3497
        %v3499 = vsel %vm3496, %v3498, %v3494
        %v3500 = vmul.f32 1.0, %v3499
        %v3501 = vrcp.pop %v3077
        %v3502 = vmul.f32 %v3077, %v3501
        %v3503 = vsub.f32 1.0, %v3502
        %v3504 = vmul.f32 %v3501, %v3503
        %v3505 = vadd.f32 %v3501, %v3504
        %vm3506 = vweird.f32 %v3077
        %vm3507 = vweird.f32 %v3501
        %vm3508 = vmor %vm3506, %vm3507
        %v3509 = vsel %vm3508, %v3501, %v3505
        %v3510 = vand.u32 2147483647, %v3077
        %vm3511 = vcmp.eq.f32.partialorder %v3510, 8.507059e+37
        %v3512 = vand.u32 %v3077, 2147483648
        %v3513 = vor.u32 1.1754944e-38, %v3512
        %v3514 = vsel %vm3511, %v3513, %v3509
        %v3515 = vmul.f32 1.0, %v3514
        %v3516 = vrcp.pop %v3078
        %v3517 = vmul.f32 %v3078, %v3516
        %v3518 = vsub.f32 1.0, %v3517
        %v3519 = vmul.f32 %v3516, %v3518
        %v3520 = vadd.f32 %v3516, %v3519
        %vm3521 = vweird.f32 %v3078
        %vm3522 = vweird.f32 %v3516
        %vm3523 = vmor %vm3521, %vm3522
        %v3524 = vsel %vm3523, %v3516, %v3520
        %v3525 = vand.u32 2147483647, %v3078
        %vm3526 = vcmp.eq.f32.partialorder %v3525, 8.507059e+37
        %v3527 = vand.u32 %v3078, 2147483648
        %v3528 = vor.u32 1.1754944e-38, %v3527
        %v3529 = vsel %vm3526, %v3528, %v3524
        %v3530 = vmul.f32 1.0, %v3529
        %v3531 = vrcp.pop %v3079
        %v3532 = vmul.f32 %v3079, %v3531
        %v3533 = vsub.f32 1.0, %v3532
        %v3534 = vmul.f32 %v3531, %v3533
        %v3535 = vadd.f32 %v3531, %v3534
        %vm3536 = vweird.f32 %v3079
        %vm3537 = vweird.f32 %v3531
        %vm3538 = vmor %vm3536, %vm3537
        %v3539 = vsel %vm3538, %v3531, %v3535
        %v3540 = vand.u32 2147483647, %v3079
        %vm3541 = vcmp.eq.f32.partialorder %v3540, 8.507059e+37
        %v3542 = vand.u32 %v3079, 2147483648
        %v3543 = vor.u32 1.1754944e-38, %v3542
        %v3544 = vsel %vm3541, %v3543, %v3539
        %v3545 = vmul.f32 1.0, %v3544
        %v3546 = vrcp.pop %v3080
        %v3547 = vmul.f32 %v3080, %v3546
        %v3548 = vsub.f32 1.0, %v3547
        %v3549 = vmul.f32 %v3546, %v3548
        %v3550 = vadd.f32 %v3546, %v3549
        %vm3551 = vweird.f32 %v3080
        %vm3552 = vweird.f32 %v3546
        %vm3553 = vmor %vm3551, %vm3552
        %v3554 = vsel %vm3553, %v3546, %v3550
        %v3555 = vand.u32 2147483647, %v3080
        %vm3556 = vcmp.eq.f32.partialorder %v3555, 8.507059e+37
        %v3557 = vand.u32 %v3080, 2147483648
        %v3558 = vor.u32 1.1754944e-38, %v3557
        %v3559 = vsel %vm3556, %v3558, %v3554
        %v3560 = vmul.f32 1.0, %v3559
        %v3561 = vmul.f32 %v2874, %v3095
        %v3562 = vmul.f32 %v2876, %v3110
        %v3563 = vmul.f32 %v2879, %v3125
        %v3564 = vmul.f32 %v2881, %v3140
        %v3565 = vmul.f32 %v2884, %v3155
        %v3566 = vmul.f32 %v2886, %v3170
        %v3567 = vmul.f32 %v2889, %v3185
        %v3568 = vmul.f32 %v2891, %v3200
        %v3569 = vmul.f32 %v2894, %v3215
        %v3570 = vmul.f32 %v2896, %v3230
        %v3571 = vmul.f32 %v2899, %v3245
        %v3572 = vmul.f32 %v2901, %v3260
        %v3573 = vmul.f32 %v2904, %v3275
        %v3574 = vmul.f32 %v2906, %v3290
        %v3575 = vmul.f32 %v2909, %v3305
        %v3576 = vmul.f32 %v2911, %v3320
        %v3577 = vmul.f32 %v2914, %v3335
        %v3578 = vmul.f32 %v2916, %v3350
        %v3579 = vmul.f32 %v2919, %v3365
        %v3580 = vmul.f32 %v2921, %v3380
        %v3581 = vmul.f32 %v2924, %v3395
        %v3582 = vmul.f32 %v2926, %v3410
        %v3583 = vmul.f32 %v2929, %v3425
        %v3584 = vmul.f32 %v2931, %v3440
        %v3585 = vmul.f32 %v2934, %v3455
        %v3586 = vmul.f32 %v2936, %v3470
        %v3587 = vmul.f32 %v2939, %v3485
        %v3588 = vmul.f32 %v2941, %v3500
        %v3589 = vmul.f32 %v2944, %v3515
        %v3590 = vmul.f32 %v2946, %v3530
        %v3591 = vmul.f32 %v2949, %v3545
        %v3592 = vmul.f32 %v2951, %v3560
        %v3593 = vpack.c.bf16 %v3562, %v3561
        %v3594 = vpack.c.bf16 %v3564, %v3563
        %v3595 = vpack.c.bf16 %v3566, %v3565
        %v3596 = vpack.c.bf16 %v3568, %v3567
        %v3597 = vpack.c.bf16 %v3570, %v3569
        %v3598 = vpack.c.bf16 %v3572, %v3571
        %v3599 = vpack.c.bf16 %v3574, %v3573
        %v3600 = vpack.c.bf16 %v3576, %v3575
        %v3601 = vpack.c.bf16 %v3578, %v3577
        %v3602 = vpack.c.bf16 %v3580, %v3579
        %v3603 = vpack.c.bf16 %v3582, %v3581
        %v3604 = vpack.c.bf16 %v3584, %v3583
        %v3605 = vpack.c.bf16 %v3586, %v3585
        %v3606 = vpack.c.bf16 %v3588, %v3587
        %v3607 = vpack.c.bf16 %v3590, %v3589
        %v3608 = vpack.c.bf16 %v3592, %v3591
        %v3609 = vld [vmem:[#allocation14] sm:$0xf]
        %v3610 = vld [vmem:[#allocation14 + $0x4] sm:$0xf]
        %v3611 = vld [vmem:[#allocation14 + $0x8] sm:$0xf]
        %v3612 = vld [vmem:[#allocation14 + $0xc] sm:$0xf]
        %v3613 = vld [vmem:[#allocation14 + $0x10] sm:$0xf]
        %v3614 = vld [vmem:[#allocation14 + $0x14] sm:$0xf]
        %v3615 = vld [vmem:[#allocation14 + $0x18] sm:$0xf]
        %v3616 = vld [vmem:[#allocation14 + $0x1c] sm:$0xf]
        %v3617 = vld [vmem:[#allocation14 + $0x20] sm:$0xf]
        %v3618 = vld [vmem:[#allocation14 + $0x24] sm:$0xf]
        %v3619 = vld [vmem:[#allocation14 + $0x28] sm:$0xf]
        %v3620 = vld [vmem:[#allocation14 + $0x2c] sm:$0xf]
        %v3621 = vld [vmem:[#allocation14 + $0x30] sm:$0xf]
        %v3622 = vld [vmem:[#allocation14 + $0x34] sm:$0xf]
        %v3623 = vld [vmem:[#allocation14 + $0x38] sm:$0xf]
        %v3624 = vld [vmem:[#allocation14 + $0x3c] sm:$0xf]
        %v3625 = vld [vmem:[%s13] sm:$0x1]
        %v3627 = vperm.slane %v3625, 0
        %v3645 = vunpack.c.l.b16 %v3609
        %v3646 = vunpack.c.l.b16 %v3610
        %v3647 = vunpack.c.l.b16 %v3611
        %v3648 = vunpack.c.l.b16 %v3612
        %v3649 = vunpack.c.l.b16 %v3613
        %v3650 = vunpack.c.l.b16 %v3614
        %v3651 = vunpack.c.l.b16 %v3615
        %v3652 = vunpack.c.l.b16 %v3616
        %v3653 = vunpack.c.l.b16 %v3617
        %v3654 = vunpack.c.l.b16 %v3618
        %v3655 = vunpack.c.l.b16 %v3619
        %v3656 = vunpack.c.l.b16 %v3620
        %v3657 = vunpack.c.l.b16 %v3621
        %v3658 = vunpack.c.l.b16 %v3622
        %v3659 = vunpack.c.l.b16 %v3623
        %v3660 = vunpack.c.l.b16 %v3624
        %v3661 = vpack.c.b16 %v3646, %v3645
        %v3662 = vpack.c.b16 %v3648, %v3647
        %v3663 = vpack.c.b16 %v3650, %v3649
        %v3664 = vpack.c.b16 %v3652, %v3651
        %v3665 = vpack.c.b16 %v3654, %v3653
        %v3666 = vpack.c.b16 %v3656, %v3655
        %v3667 = vpack.c.b16 %v3658, %v3657
        %v3668 = vpack.c.b16 %v3660, %v3659
        %3677 = vmatpush.bf16.msra.mxu0 %v3668
        %3678 = vmatpush.bf16.msra.mxu0 %v3667
        %3679 = vmatpush.bf16.msra.mxu0 %v3666
        %3680 = vmatpush.bf16.msra.mxu0 %v3665
        %3681 = vmatpush.bf16.msra.mxu0 %v3664
        %3682 = vmatpush.bf16.msra.mxu0 %v3663
        %3683 = vmatpush.bf16.msra.mxu0 %v3662
        %3684 = vmatpush.bf16.msra.mxu0 %v3661
        %3685 = vmatmul.bf16.gmra.mxu0 %v3593
        %v3686 = vpop.f32.mrf.mxu0
        %v3687 = vadd.f32 %v3627, %v3686
        %v3688 = vpop.f32.mrf.mxu0
        %v3689 = vadd.f32 %v3627, %v3688
        %3690 = vmatmul.bf16.gmra.mxu0 %v3594
        %v3691 = vpop.f32.mrf.mxu0
        %v3692 = vadd.f32 %v3627, %v3691
        %v3693 = vpop.f32.mrf.mxu0
        %v3694 = vadd.f32 %v3627, %v3693
        %3695 = vmatmul.bf16.gmra.mxu0 %v3595
        %v3696 = vpop.f32.mrf.mxu0
        %v3697 = vadd.f32 %v3627, %v3696
        %v3698 = vpop.f32.mrf.mxu0
        %v3699 = vadd.f32 %v3627, %v3698
        %3700 = vmatmul.bf16.gmra.mxu0 %v3596
        %v3701 = vpop.f32.mrf.mxu0
        %v3702 = vadd.f32 %v3627, %v3701
        %v3703 = vpop.f32.mrf.mxu0
        %v3704 = vadd.f32 %v3627, %v3703
        %3705 = vmatmul.bf16.gmra.mxu0 %v3597
        %v3706 = vpop.f32.mrf.mxu0
        %v3707 = vadd.f32 %v3627, %v3706
        %v3708 = vpop.f32.mrf.mxu0
        %v3709 = vadd.f32 %v3627, %v3708
        %3710 = vmatmul.bf16.gmra.mxu0 %v3598
        %v3711 = vpop.f32.mrf.mxu0
        %v3712 = vadd.f32 %v3627, %v3711
        %v3713 = vpop.f32.mrf.mxu0
        %v3714 = vadd.f32 %v3627, %v3713
        %3715 = vmatmul.bf16.gmra.mxu0 %v3599
        %v3716 = vpop.f32.mrf.mxu0
        %v3717 = vadd.f32 %v3627, %v3716
        %v3718 = vpop.f32.mrf.mxu0
        %v3719 = vadd.f32 %v3627, %v3718
        %3720 = vmatmul.bf16.gmra.mxu0 %v3600
        %v3721 = vpop.f32.mrf.mxu0
        %v3722 = vadd.f32 %v3627, %v3721
        %v3723 = vpop.f32.mrf.mxu0
        %v3724 = vadd.f32 %v3627, %v3723
        %3725 = vmatmul.bf16.gmra.mxu0 %v3601
        %v3726 = vpop.f32.mrf.mxu0
        %v3727 = vadd.f32 %v3627, %v3726
        %v3728 = vpop.f32.mrf.mxu0
        %v3729 = vadd.f32 %v3627, %v3728
        %3730 = vmatmul.bf16.gmra.mxu0 %v3602
        %v3731 = vpop.f32.mrf.mxu0
        %v3732 = vadd.f32 %v3627, %v3731
        %v3733 = vpop.f32.mrf.mxu0
        %v3734 = vadd.f32 %v3627, %v3733
        %3735 = vmatmul.bf16.gmra.mxu0 %v3603
        %v3736 = vpop.f32.mrf.mxu0
        %v3737 = vadd.f32 %v3627, %v3736
        %v3738 = vpop.f32.mrf.mxu0
        %v3739 = vadd.f32 %v3627, %v3738
        %3740 = vmatmul.bf16.gmra.mxu0 %v3604
        %v3741 = vpop.f32.mrf.mxu0
        %v3742 = vadd.f32 %v3627, %v3741
        %v3743 = vpop.f32.mrf.mxu0
        %v3744 = vadd.f32 %v3627, %v3743
        %3745 = vmatmul.bf16.gmra.mxu0 %v3605
        %v3746 = vpop.f32.mrf.mxu0
        %v3747 = vadd.f32 %v3627, %v3746
        %v3748 = vpop.f32.mrf.mxu0
        %v3749 = vadd.f32 %v3627, %v3748
        %3750 = vmatmul.bf16.gmra.mxu0 %v3606
        %v3751 = vpop.f32.mrf.mxu0
        %v3752 = vadd.f32 %v3627, %v3751
        %v3753 = vpop.f32.mrf.mxu0
        %v3754 = vadd.f32 %v3627, %v3753
        %3755 = vmatmul.bf16.gmra.mxu0 %v3607
        %v3756 = vpop.f32.mrf.mxu0
        %v3757 = vadd.f32 %v3627, %v3756
        %v3758 = vpop.f32.mrf.mxu0
        %v3759 = vadd.f32 %v3627, %v3758
        %3760 = vmatmul.bf16.gmra.mxu0 %v3608
        %v3761 = vpop.f32.mrf.mxu0
        %v3762 = vadd.f32 %v3627, %v3761
        %v3763 = vpop.f32.mrf.mxu0
        %v3764 = vadd.f32 %v3627, %v3763
        %3765 = vdwg.mxu0
        %v3766 = vsub.f32 %v632, %v3687
        %v3767 = vsub.f32 %v633, %v3689
        %v3768 = vsub.f32 %v634, %v3692
        %v3769 = vsub.f32 %v635, %v3694
        %v3770 = vsub.f32 %v636, %v3697
        %v3771 = vsub.f32 %v637, %v3699
        %v3772 = vsub.f32 %v638, %v3702
        %v3773 = vsub.f32 %v639, %v3704
        %v3774 = vsub.f32 %v640, %v3707
        %v3775 = vsub.f32 %v641, %v3709
        %v3776 = vsub.f32 %v642, %v3712
        %v3777 = vsub.f32 %v643, %v3714
        %v3778 = vsub.f32 %v644, %v3717
        %v3779 = vsub.f32 %v645, %v3719
        %v3780 = vsub.f32 %v646, %v3722
        %v3781 = vsub.f32 %v647, %v3724
        %v3782 = vsub.f32 %v648, %v3727
        %v3783 = vsub.f32 %v649, %v3729
        %v3784 = vsub.f32 %v650, %v3732
        %v3785 = vsub.f32 %v651, %v3734
        %v3786 = vsub.f32 %v652, %v3737
        %v3787 = vsub.f32 %v653, %v3739
        %v3788 = vsub.f32 %v654, %v3742
        %v3789 = vsub.f32 %v655, %v3744
        %v3790 = vsub.f32 %v656, %v3747
        %v3791 = vsub.f32 %v657, %v3749
        %v3792 = vsub.f32 %v658, %v3752
        %v3793 = vsub.f32 %v659, %v3754
        %v3794 = vsub.f32 %v660, %v3757
        %v3795 = vsub.f32 %v661, %v3759
        %v3796 = vsub.f32 %v662, %v3762
        %v3797 = vsub.f32 %v663, %v3764
        %3798 = vst [vmem:[%s628] sm:$0xff] %v3766
        %3799 = vst [vmem:[%s628 + $0x8] sm:$0xff] %v3767
        %3800 = vst [vmem:[%s628 + $0x10] sm:$0xff] %v3768
        %3801 = vst [vmem:[%s628 + $0x18] sm:$0xff] %v3769
        %3802 = vst [vmem:[%s628 + $0x20] sm:$0xff] %v3770
        %3803 = vst [vmem:[%s628 + $0x28] sm:$0xff] %v3771
        %3804 = vst [vmem:[%s628 + $0x30] sm:$0xff] %v3772
        %3805 = vst [vmem:[%s628 + $0x38] sm:$0xff] %v3773
        %3806 = vst [vmem:[%s628 + $0x40] sm:$0xff] %v3774
        %3807 = vst [vmem:[%s628 + $0x48] sm:$0xff] %v3775
        %3808 = vst [vmem:[%s628 + $0x50] sm:$0xff] %v3776
        %3809 = vst [vmem:[%s628 + $0x58] sm:$0xff] %v3777
        %3810 = vst [vmem:[%s628 + $0x60] sm:$0xff] %v3778
        %3811 = vst [vmem:[%s628 + $0x68] sm:$0xff] %v3779
        %3812 = vst [vmem:[%s628 + $0x70] sm:$0xff] %v3780
        %3813 = vst [vmem:[%s628 + $0x78] sm:$0xff] %v3781
        %3814 = vst [vmem:[%s628 + $0x80] sm:$0xff] %v3782
        %3815 = vst [vmem:[%s628 + $0x88] sm:$0xff] %v3783
        %3816 = vst [vmem:[%s628 + $0x90] sm:$0xff] %v3784
        %3817 = vst [vmem:[%s628 + $0x98] sm:$0xff] %v3785
        %3818 = vst [vmem:[%s628 + $0xa0] sm:$0xff] %v3786
        %3819 = vst [vmem:[%s628 + $0xa8] sm:$0xff] %v3787
        %3820 = vst [vmem:[%s628 + $0xb0] sm:$0xff] %v3788
        %3821 = vst [vmem:[%s628 + $0xb8] sm:$0xff] %v3789
        %3822 = vst [vmem:[%s628 + $0xc0] sm:$0xff] %v3790
        %3823 = vst [vmem:[%s628 + $0xc8] sm:$0xff] %v3791
        %3824 = vst [vmem:[%s628 + $0xd0] sm:$0xff] %v3792
        %3825 = vst [vmem:[%s628 + $0xd8] sm:$0xff] %v3793
        %3826 = vst [vmem:[%s628 + $0xe0] sm:$0xff] %v3794
        %3827 = vst [vmem:[%s628 + $0xe8] sm:$0xff] %v3795
        %3828 = vst [vmem:[%s628 + $0xf0] sm:$0xff] %v3796
        %3829 = vst [vmem:[%s628 + $0xf8] sm:$0xff] %v3797
        %s3830 = sand.u32 %s349, 1
        %s3831 = scalar_lea.sflag [#allocation4], %s3830
        %s3832 = sand.u32 %s349, 1
        %s3833 = smul.addr %s3832, 256
        %s3834 = scalar_lea.vmem [#allocation16], %s3833
        // Predicated region
        $region109: #{tpu_custom_call.1} parent=75 // pred_check
          %p3835 = pneg %p359
        $region110: #{tpu_custom_call.1} parent=75 // pred_check_branch
          %3837 = sbr.rel (%p3835) target = $region112
        $region111: #{tpu_custom_call.1} parent=75 // pred_region
          %s3838 = smul.u32 32, %s37
          %3840 = vsyncadd %s3831, 0
          %s3841 = smul.addr %s3838, 8
          %s3842 = scalar_lea.hbm %s14, %s3841
          %s3843 = sshll.u32 %s3834, 4
          %s3844 = int_to_ptr.vmem [resolvable:$true] %s3843
          %s3845 = sshll.u32 %s3842, 4
          %s3846 = int_to_ptr.hbm [resolvable:$true] %s3845
          %3851 = dma.vmem_to_hbm [thread:$0]  %s3844, 4096, %s3846, %s3831, 128, 128, 8
        $region112: #{tpu_custom_call.1} parent=75 // pred_fallthru
          _
      $region76: #{tpu_custom_call.1} parent=5 // pred_fallthru
        _
      %p3852 = scmp.le.s32.totalorder 2, %s32
      // Predicated region
      $region113: #{tpu_custom_call.1} parent=5 // pred_check
        %p3853 = pneg %p3852
      $region114: #{tpu_custom_call.1} parent=5 // pred_check_branch
        %3855 = sbr.rel (%p3853) target = $region116
      $region115: #{tpu_custom_call.1} parent=5 // pred_region
        %s3856 = ssub.s32 %s32, 2
        // Predicated region
        $region117: #{tpu_custom_call.1} parent=115 // pred_check
          %p3857 = pneg %p365
        $region118: #{tpu_custom_call.1} parent=115 // pred_check_branch
          %3859 = sbr.rel (%p3857) target = $region120
        $region119: #{tpu_custom_call.1} parent=115 // pred_region
          %s3860 = sand.u32 %s350, 1
          %s3861 = scalar_lea.sflag [#allocation4], %s3860
          %s3862 = sand.u32 %s350, 1
          %s3863 = smul.addr %s3862, 256
          %s3864 = scalar_lea.vmem [#allocation16], %s3863
          %3866 = dma.done %s3861, 4096
        $region120: #{tpu_custom_call.1} parent=115 // pred_fallthru
          _
      $region116: #{tpu_custom_call.1} parent=5 // pred_fallthru
        _
    $region6: #{tpu_custom_call.1} parent=1 // loop_footer
      %s36 = sadd.s32 1, %s32
    $region7: #{tpu_custom_call.1} parent=1 // loop_footer_branch
      %31 = sbr.rel target = $region3
    $region8: #{tpu_custom_call.1} parent=1 // loop_exit
      _
    %3867 = vsyncpa [#allocation3], 1
    %s3868 = scalar_lea.sflag [#allocation3], 1
    %3869 = vsyncpa %s3868, 1
    %3870 = vsyncpa [#allocation6], 1
    %s3871 = scalar_lea.sflag [#allocation6], 1
    %3872 = vsyncpa %s3871, 1
    %3873 = vsyncpa [#allocation9], 1
    %3874 = vsyncpa [#allocation12], 1
    %3875 = vsyncpa [#allocation15], 1
    %3876 = vsyncpa [#allocation4], 1
    %s3877 = scalar_lea.sflag [#allocation4], 1
    %3878 = vsyncpa %s3877, 1

</llo_original>
